<compile_context>
chip_gen: v6e
topology: v6e:2x2x1
jax: 0.10.0
libtpu: 0.0.40
codegen_flags: <defaults>
</compile_context>

<pallas_src>
import jax
import jax.numpy as jnp
from jax import lax
from jax.experimental import pallas as pl
from jax.experimental.pallas import tpu as pltpu


def _preact_block_kernel(xpad_ref, w1_ref, w2_ref, o_ref, acc_ref, mid_ref):
    """One batch element.  xpad_ref: (H+2, W+2, Cin) bf16 zero-padded NHWC input.
    w1_ref/w2_ref: (3, 3*Cin, Cmid)/(3, 3*Cmid, Cout) bf16 weight slabs (dy, dx*C+ci, co).
    o_ref: (H*W, Cout) f32 output slab.  acc_ref: f32 conv1 accumulator.
    mid_ref: (H+2, W+2, Cmid) bf16 zero-padded relu(conv1) scratch."""
    Hp, Wp, Cin = xpad_ref.shape
    H, W = Hp - 2, Wp - 2
    Cmid = mid_ref.shape[-1]
    flat = H * W

    # ---- identity shortcut: interior of the padded input (no separate x DMA, no eye-matmul)
    o_ref[...] = xpad_ref[1:H + 1, 1:W + 1, :].reshape(flat, Cin).astype(jnp.float32)

    # ---- conv1(relu(x)): 3 matmuls, width taps folded into K = 3*Cin ----
    # relu(zero-pad(x)) == zero-pad(relu(x)), so relu is applied to the padded rows.
    for dy in range(3):
        rows = jnp.maximum(xpad_ref[dy:dy + H, :, :], 0)                      # (H, W+2, Cin)
        patch = jnp.concatenate(
            [rows[:, 0:W, :], rows[:, 1:W + 1, :], rows[:, 2:W + 2, :]], axis=-1)
        part = jnp.dot(patch.reshape(flat, 3 * Cin), w1_ref[dy],
                       preferred_element_type=jnp.float32)
        if dy == 0:
            acc_ref[...] = part
        else:
            acc_ref[...] += part

    # ---- mid = zero-pad(relu(conv1 out)); only the 1-px border is (re)zeroed ----
    zrow = jnp.zeros((1, Wp, Cmid), mid_ref.dtype)
    zcol = jnp.zeros((Hp, 1, Cmid), mid_ref.dtype)
    mid_ref[0:1, :, :] = zrow
    mid_ref[Hp - 1:Hp, :, :] = zrow
    mid_ref[:, 0:1, :] = zcol
    mid_ref[:, Wp - 1:Wp, :] = zcol
    mid_ref[1:H + 1, 1:W + 1, :] = (
        jnp.maximum(acc_ref[...], 0).reshape(H, W, Cmid).astype(mid_ref.dtype))

    # ---- conv2(relu(conv1 out)), accumulated into the output block on top of the shortcut
    for dy in range(3):
        rows = mid_ref[dy:dy + H, :, :]                                        # already relu'd
        patch = jnp.concatenate(
            [rows[:, 0:W, :], rows[:, 1:W + 1, :], rows[:, 2:W + 2, :]], axis=-1)
        o_ref[...] += jnp.dot(patch.reshape(flat, 3 * Cmid), w2_ref[dy],
                              preferred_element_type=jnp.float32)


def preact_block_without_bn(x_nchw, w1_oihw, w2_oihw, *, compute_dtype=jnp.bfloat16):
    """Forward of the stride-1 PreActBlockWithoutBN.  x is NCHW like PyTorch."""
    N, Cin, H, W = x_nchw.shape
    Cmid = w1_oihw.shape[0]
    Cout = w2_oihw.shape[0]
    assert Cin == Cout, "identity shortcut requires in_planes == planes (stride=1)"
    # TODO(synk): stride != 1 / channel-changing 1x1 downsample shortcut not implemented here.
    # TODO(synk): for large images, also tile H with a 1-row halo instead of whole-image blocks.

    Hp, Wp, flat = H + 2, W + 2, H * W

    x = jnp.transpose(x_nchw, (0, 2, 3, 1))                                    # NHWC
    xpad = jnp.pad(x, ((0, 0), (1, 1), (1, 1), (0, 0))).astype(compute_dtype)  # bf16 -> half DMA

    # OIHW -> HWIO -> per-dy slabs (3, 3*Cin, Cout) with K index = dx*Cin + ci.
    w1 = jnp.transpose(w1_oihw, (2, 3, 1, 0)).reshape(3, 3 * Cin, Cmid).astype(compute_dtype)
    w2 = jnp.transpose(w2_oihw, (2, 3, 1, 0)).reshape(3, 3 * Cmid, Cout).astype(compute_dtype)

    # VMEM budget: double-buffered input/output tiles + resident weights + scratch (+headroom),
    # capped well below v7x's 64 MiB physical VMEM.
    est = (2 * Hp * Wp * Cin * 2            # xpad tile, bf16, double buffered
           + 2 * flat * Cout * 4            # output tile, f32, double buffered
           + (w1.size + w2.size) * 2 * 2    # weight slabs, bf16
           + flat * Cmid * 4                # f32 conv1 accumulator scratch
           + Hp * Wp * Cmid * 2)            # padded mid scratch, bf16
    vmem_limit = int(min(40 * 2**20, max(16 * 2**20, 4 * est)))

    out2d = pl.pallas_call(
        _preact_block_kernel,
        out_shape=jax.ShapeDtypeStruct((N, flat, Cout), jnp.float32),
        grid=(N,),                                                   # one image per grid step
        in_specs=[
            pl.BlockSpec((None, Hp, Wp, Cin), lambda n: (n, 0, 0, 0)),   # per-image block
            pl.BlockSpec((3, 3 * Cin, Cmid), lambda n: (0, 0, 0)),       # weights: constant index
            pl.BlockSpec((3, 3 * Cmid, Cout), lambda n: (0, 0, 0)),      #   -> DMA'd once, resident
        ],
        out_specs=pl.BlockSpec((None, flat, Cout), lambda n: (n, 0, 0)),
        scratch_shapes=[
            pltpu.VMEM((flat, Cmid), jnp.float32),        # conv1 f32 accumulator
            pltpu.VMEM((Hp, Wp, Cmid), compute_dtype),    # zero-padded relu(conv1) for conv2
        ],
        compiler_params=pltpu.CompilerParams(
            dimension_semantics=("parallel",),            # pipeline over batch; shard across TCs
            vmem_limit_bytes=vmem_limit,
        ),
    )(xpad, w1, w2)

    return jnp.transpose(out2d.reshape(N, H, W, Cout), (0, 3, 1, 2))           # back to NCHW


def _ref_forward(x, w1, w2):
    """Pure-JAX reference matching the PyTorch block forward (NCHW, f32)."""
    dn = ("NCHW", "OIHW", "NCHW")
    out = lax.conv_general_dilated(jax.nn.relu(x), w1, (1, 1), ((1, 1), (1, 1)),
                                   dimension_numbers=dn)
    out = lax.conv_general_dilated(jax.nn.relu(out), w2, (1, 1), ((1, 1), (1, 1)),
                                   dimension_numbers=dn)
    return out + x


if __name__ == "__main__":
    key = jax.random.PRNGKey(0)
    kx, k1, k2 = jax.random.split(key, 3)

    # in_planes = planes = 4, stride = 1 -> identity shortcut (the common block config).
    N, C, H, W = 2, 4, 16, 16
    x = jax.random.normal(kx, (N, C, H, W), jnp.float32)
    w1 = jax.random.normal(k1, (C, C, 3, 3), jnp.float32) * 0.1   # conv1.weight (OIHW)
    w2 = jax.random.normal(k2, (C, C, 3, 3), jnp.float32) * 0.1   # conv2.weight (OIHW)

    out = jax.block_until_ready(preact_block_without_bn(x, w1, w2))
    assert out.shape == (N, C, H, W), out.shape

    # The kernel feeds the MXU in bf16 (f32 accumulation), so compare against a reference
    # that sees the same bf16-rounded inputs; tolerance covers the in-kernel bf16 mid cast.
    q = lambda a: a.astype(jnp.bfloat16).astype(jnp.float32)
    ref = _ref_forward(q(x), q(w1), q(w2))
    max_err = float(jnp.max(jnp.abs(out - ref)))
    assert jnp.allclose(out, ref, atol=5e-2, rtol=5e-2), f"max_err={max_err}"
    print("KERNEL_OK")
</pallas_src>

<mosaic_0001>
module attributes {stable_mosaic.version = 11 : i64} {
  func.func @_preact_block_kernel(%arg0: i32, %arg1: memref<1x18x18x4xbf16, #tpu.memory_space<vmem>>, %arg2: memref<3x12x4xbf16, #tpu.memory_space<vmem>>, %arg3: memref<3x12x4xbf16, #tpu.memory_space<vmem>>, %arg4: memref<1x256x4xf32, #tpu.memory_space<vmem>>, %arg5: memref<256x4xf32, #tpu.memory_space<vmem>>, %arg6: memref<18x18x4xbf16, #tpu.memory_space<vmem>>) attributes {dimension_semantics = [#tpu.dimension_semantics<parallel>], iteration_bounds = array<i64: 2>, scalar_prefetch = 0 : i64, scratch_operands = 2 : i64, tpu.core_type = #tpu.core_type<tc>, window_params = [{transform_indices = @transform_0, window_bounds = array<i64: 1, 18, 18, 4>}, {pipeline_mode = #tpu.pipeline_mode<synchronous>, transform_indices = @transform_1, window_bounds = array<i64: 3, 12, 4>}, {pipeline_mode = #tpu.pipeline_mode<synchronous>, transform_indices = @transform_2, window_bounds = array<i64: 3, 12, 4>}, {transform_indices = @transform_3, window_bounds = array<i64: 1, 256, 4>}]} {
    %c0 = arith.constant 0 : index
    %c1 = arith.constant 1 : index
    %c1_0 = arith.constant 1 : index
    %c0_1 = arith.constant 0 : index
    %0 = vector.load %arg1[%c0, %c1, %c1_0, %c0_1] : memref<1x18x18x4xbf16, #tpu.memory_space<vmem>>, vector<1x16x16x4xbf16>
    %1 = vector.shape_cast %0 : vector<1x16x16x4xbf16> to vector<16x16x4xbf16>
    %2 = vector.shape_cast %1 : vector<16x16x4xbf16> to vector<256x4xbf16>
    %3 = arith.extf %2 : vector<256x4xbf16> to vector<256x4xf32>
    %c0_2 = arith.constant 0 : index
    %c0_3 = arith.constant 0 : index
    %c0_4 = arith.constant 0 : index
    %4 = vector.load %arg4[%c0_2, %c0_3, %c0_4] : memref<1x256x4xf32, #tpu.memory_space<vmem>>, vector<1x256x4xf32>
    %5 = vector.shape_cast %4 : vector<1x256x4xf32> to vector<256x4xf32>
    %6 = vector.shape_cast %3 : vector<256x4xf32> to vector<1x256x4xf32>
    tpu.vector_store %arg4[%c0_2, %c0_3, %c0_4], %6 {strides = array<i32>} : memref<1x256x4xf32, #tpu.memory_space<vmem>>, vector<1x256x4xf32>,
    %c0_5 = arith.constant 0 : index
    %c0_6 = arith.constant 0 : index
    %c0_7 = arith.constant 0 : index
    %c0_8 = arith.constant 0 : index
    %7 = vector.load %arg1[%c0_5, %c0_6, %c0_7, %c0_8] : memref<1x18x18x4xbf16, #tpu.memory_space<vmem>>, vector<1x16x18x4xbf16>
    %8 = vector.shape_cast %7 : vector<1x16x18x4xbf16> to vector<16x18x4xbf16>
    %cst = arith.constant 0.000000e+00 : bf16
    %9 = vector.broadcast %cst : bf16 to vector<16x18x4xbf16>
    %10 = arith.maximumf %8, %9 : vector<16x18x4xbf16>
    %11 = vector.extract_strided_slice %10 {offsets = [0, 0, 0], sizes = [16, 16, 4], strides = [1, 1, 1]} : vector<16x18x4xbf16> to vector<16x16x4xbf16>
    %12 = vector.extract_strided_slice %10 {offsets = [0, 1, 0], sizes = [16, 16, 4], strides = [1, 1, 1]} : vector<16x18x4xbf16> to vector<16x16x4xbf16>
    %13 = vector.extract_strided_slice %10 {offsets = [0, 2, 0], sizes = [16, 16, 4], strides = [1, 1, 1]} : vector<16x18x4xbf16> to vector<16x16x4xbf16>
    %14 = tpu.concatenate %11, %12, %13 in 2 : vector<16x16x4xbf16>, vector<16x16x4xbf16>, vector<16x16x4xbf16> -> vector<16x16x12xbf16>
    %15 = vector.shape_cast %14 : vector<16x16x12xbf16> to vector<256x12xbf16>
    %c0_9 = arith.constant 0 : index
    %c0_10 = arith.constant 0 : index
    %c0_11 = arith.constant 0 : index
    %16 = vector.load %arg2[%c0_9, %c0_10, %c0_11] : memref<3x12x4xbf16, #tpu.memory_space<vmem>>, vector<1x12x4xbf16>
    %17 = vector.shape_cast %16 : vector<1x12x4xbf16> to vector<12x4xbf16>
    %cst_12 = arith.constant dense<0.000000e+00> : vector<256x4xf32>
    %18 = tpu.matmul %15, %17, %cst_12 {dimension_numbers = #tpu.dot_dimension_numbers<[1], [0], [0], [1], [0, 0, 1, 1], [], []>} : vector<256x12xbf16>, vector<12x4xbf16>, vector<256x4xf32> -> vector<256x4xf32>
    %c0_13 = arith.constant 0 : index
    %c0_14 = arith.constant 0 : index
    %19 = vector.load %arg5[%c0_13, %c0_14] : memref<256x4xf32, #tpu.memory_space<vmem>>, vector<256x4xf32>
    tpu.vector_store %arg5[%c0_13, %c0_14], %18 {strides = array<i32>} : memref<256x4xf32, #tpu.memory_space<vmem>>, vector<256x4xf32>,
    %c0_15 = arith.constant 0 : index
    %c1_16 = arith.constant 1 : index
    %c0_17 = arith.constant 0 : index
    %c0_18 = arith.constant 0 : index
    %20 = vector.load %arg1[%c0_15, %c1_16, %c0_17, %c0_18] : memref<1x18x18x4xbf16, #tpu.memory_space<vmem>>, vector<1x16x18x4xbf16>
    %21 = vector.shape_cast %20 : vector<1x16x18x4xbf16> to vector<16x18x4xbf16>
    %cst_19 = arith.constant 0.000000e+00 : bf16
    %22 = vector.broadcast %cst_19 : bf16 to vector<16x18x4xbf16>
    %23 = arith.maximumf %21, %22 : vector<16x18x4xbf16>
    %24 = vector.extract_strided_slice %23 {offsets = [0, 0, 0], sizes = [16, 16, 4], strides = [1, 1, 1]} : vector<16x18x4xbf16> to vector<16x16x4xbf16>
    %25 = vector.extract_strided_slice %23 {offsets = [0, 1, 0], sizes = [16, 16, 4], strides = [1, 1, 1]} : vector<16x18x4xbf16> to vector<16x16x4xbf16>
    %26 = vector.extract_strided_slice %23 {offsets = [0, 2, 0], sizes = [16, 16, 4], strides = [1, 1, 1]} : vector<16x18x4xbf16> to vector<16x16x4xbf16>
    %27 = tpu.concatenate %24, %25, %26 in 2 : vector<16x16x4xbf16>, vector<16x16x4xbf16>, vector<16x16x4xbf16> -> vector<16x16x12xbf16>
    %28 = vector.shape_cast %27 : vector<16x16x12xbf16> to vector<256x12xbf16>
    %c1_20 = arith.constant 1 : index
    %c0_21 = arith.constant 0 : index
    %c0_22 = arith.constant 0 : index
    %29 = vector.load %arg2[%c1_20, %c0_21, %c0_22] : memref<3x12x4xbf16, #tpu.memory_space<vmem>>, vector<1x12x4xbf16>
    %30 = vector.shape_cast %29 : vector<1x12x4xbf16> to vector<12x4xbf16>
    %cst_23 = arith.constant dense<0.000000e+00> : vector<256x4xf32>
    %31 = tpu.matmul %28, %30, %cst_23 {dimension_numbers = #tpu.dot_dimension_numbers<[1], [0], [0], [1], [0, 0, 1, 1], [], []>} : vector<256x12xbf16>, vector<12x4xbf16>, vector<256x4xf32> -> vector<256x4xf32>
    %c0_24 = arith.constant 0 : index
    %c0_25 = arith.constant 0 : index
    %32 = vector.load %arg5[%c0_24, %c0_25] : memref<256x4xf32, #tpu.memory_space<vmem>>, vector<256x4xf32>
    %33 = arith.addf %32, %31 : vector<256x4xf32>
    %c0_26 = arith.constant 0 : index
    %c0_27 = arith.constant 0 : index
    %34 = vector.load %arg5[%c0_26, %c0_27] : memref<256x4xf32, #tpu.memory_space<vmem>>, vector<256x4xf32>
    tpu.vector_store %arg5[%c0_26, %c0_27], %33 {strides = array<i32>} : memref<256x4xf32, #tpu.memory_space<vmem>>, vector<256x4xf32>,
    %c0_28 = arith.constant 0 : index
    %c2 = arith.constant 2 : index
    %c0_29 = arith.constant 0 : index
    %c0_30 = arith.constant 0 : index
    %35 = vector.load %arg1[%c0_28, %c2, %c0_29, %c0_30] : memref<1x18x18x4xbf16, #tpu.memory_space<vmem>>, vector<1x16x18x4xbf16>
    %36 = vector.shape_cast %35 : vector<1x16x18x4xbf16> to vector<16x18x4xbf16>
    %cst_31 = arith.constant 0.000000e+00 : bf16
    %37 = vector.broadcast %cst_31 : bf16 to vector<16x18x4xbf16>
    %38 = arith.maximumf %36, %37 : vector<16x18x4xbf16>
    %39 = vector.extract_strided_slice %38 {offsets = [0, 0, 0], sizes = [16, 16, 4], strides = [1, 1, 1]} : vector<16x18x4xbf16> to vector<16x16x4xbf16>
    %40 = vector.extract_strided_slice %38 {offsets = [0, 1, 0], sizes = [16, 16, 4], strides = [1, 1, 1]} : vector<16x18x4xbf16> to vector<16x16x4xbf16>
    %41 = vector.extract_strided_slice %38 {offsets = [0, 2, 0], sizes = [16, 16, 4], strides = [1, 1, 1]} : vector<16x18x4xbf16> to vector<16x16x4xbf16>
    %42 = tpu.concatenate %39, %40, %41 in 2 : vector<16x16x4xbf16>, vector<16x16x4xbf16>, vector<16x16x4xbf16> -> vector<16x16x12xbf16>
    %43 = vector.shape_cast %42 : vector<16x16x12xbf16> to vector<256x12xbf16>
    %c2_32 = arith.constant 2 : index
    %c0_33 = arith.constant 0 : index
    %c0_34 = arith.constant 0 : index
    %44 = vector.load %arg2[%c2_32, %c0_33, %c0_34] : memref<3x12x4xbf16, #tpu.memory_space<vmem>>, vector<1x12x4xbf16>
    %45 = vector.shape_cast %44 : vector<1x12x4xbf16> to vector<12x4xbf16>
    %cst_35 = arith.constant dense<0.000000e+00> : vector<256x4xf32>
    %46 = tpu.matmul %43, %45, %cst_35 {dimension_numbers = #tpu.dot_dimension_numbers<[1], [0], [0], [1], [0, 0, 1, 1], [], []>} : vector<256x12xbf16>, vector<12x4xbf16>, vector<256x4xf32> -> vector<256x4xf32>
    %c0_36 = arith.constant 0 : index
    %c0_37 = arith.constant 0 : index
    %47 = vector.load %arg5[%c0_36, %c0_37] : memref<256x4xf32, #tpu.memory_space<vmem>>, vector<256x4xf32>
    %48 = arith.addf %47, %46 : vector<256x4xf32>
    %c0_38 = arith.constant 0 : index
    %c0_39 = arith.constant 0 : index
    %49 = vector.load %arg5[%c0_38, %c0_39] : memref<256x4xf32, #tpu.memory_space<vmem>>, vector<256x4xf32>
    tpu.vector_store %arg5[%c0_38, %c0_39], %48 {strides = array<i32>} : memref<256x4xf32, #tpu.memory_space<vmem>>, vector<256x4xf32>,
    %cst_40 = arith.constant 0.000000e+00 : bf16
    %50 = vector.broadcast %cst_40 : bf16 to vector<1x18x4xbf16>
    %cst_41 = arith.constant 0.000000e+00 : bf16
    %51 = vector.broadcast %cst_41 : bf16 to vector<18x1x4xbf16>
    %c0_42 = arith.constant 0 : index
    %c0_43 = arith.constant 0 : index
    %c0_44 = arith.constant 0 : index
    %52 = vector.load %arg6[%c0_42, %c0_43, %c0_44] : memref<18x18x4xbf16, #tpu.memory_space<vmem>>, vector<1x18x4xbf16>
    tpu.vector_store %arg6[%c0_42, %c0_43, %c0_44], %50 {strides = array<i32>} : memref<18x18x4xbf16, #tpu.memory_space<vmem>>, vector<1x18x4xbf16>,
    %c17 = arith.constant 17 : index
    %c0_45 = arith.constant 0 : index
    %c0_46 = arith.constant 0 : index
    %53 = vector.load %arg6[%c17, %c0_45, %c0_46] : memref<18x18x4xbf16, #tpu.memory_space<vmem>>, vector<1x18x4xbf16>
    tpu.vector_store %arg6[%c17, %c0_45, %c0_46], %50 {strides = array<i32>} : memref<18x18x4xbf16, #tpu.memory_space<vmem>>, vector<1x18x4xbf16>,
    %c0_47 = arith.constant 0 : index
    %c0_48 = arith.constant 0 : index
    %c0_49 = arith.constant 0 : index
    %54 = vector.load %arg6[%c0_47, %c0_48, %c0_49] : memref<18x18x4xbf16, #tpu.memory_space<vmem>>, vector<18x1x4xbf16>
    tpu.vector_store %arg6[%c0_47, %c0_48, %c0_49], %51 {strides = array<i32>} : memref<18x18x4xbf16, #tpu.memory_space<vmem>>, vector<18x1x4xbf16>,
    %c0_50 = arith.constant 0 : index
    %c17_51 = arith.constant 17 : index
    %c0_52 = arith.constant 0 : index
    %55 = vector.load %arg6[%c0_50, %c17_51, %c0_52] : memref<18x18x4xbf16, #tpu.memory_space<vmem>>, vector<18x1x4xbf16>
    tpu.vector_store %arg6[%c0_50, %c17_51, %c0_52], %51 {strides = array<i32>} : memref<18x18x4xbf16, #tpu.memory_space<vmem>>, vector<18x1x4xbf16>,
    %c0_53 = arith.constant 0 : index
    %c0_54 = arith.constant 0 : index
    %56 = vector.load %arg5[%c0_53, %c0_54] : memref<256x4xf32, #tpu.memory_space<vmem>>, vector<256x4xf32>
    %cst_55 = arith.constant 0.000000e+00 : f32
    %57 = vector.broadcast %cst_55 : f32 to vector<256x4xf32>
    %58 = arith.maximumf %56, %57 : vector<256x4xf32>
    %59 = vector.shape_cast %58 : vector<256x4xf32> to vector<16x16x4xf32>
    %60 = arith.truncf %59 : vector<16x16x4xf32> to vector<16x16x4xbf16>
    %c1_56 = arith.constant 1 : index
    %c1_57 = arith.constant 1 : index
    %c0_58 = arith.constant 0 : index
    %61 = vector.load %arg6[%c1_56, %c1_57, %c0_58] : memref<18x18x4xbf16, #tpu.memory_space<vmem>>, vector<16x16x4xbf16>
    tpu.vector_store %arg6[%c1_56, %c1_57, %c0_58], %60 {strides = array<i32>} : memref<18x18x4xbf16, #tpu.memory_space<vmem>>, vector<16x16x4xbf16>,
    %c0_59 = arith.constant 0 : index
    %c0_60 = arith.constant 0 : index
    %c0_61 = arith.constant 0 : index
    %62 = vector.load %arg6[%c0_59, %c0_60, %c0_61] : memref<18x18x4xbf16, #tpu.memory_space<vmem>>, vector<16x18x4xbf16>
    %63 = vector.extract_strided_slice %62 {offsets = [0, 0, 0], sizes = [16, 16, 4], strides = [1, 1, 1]} : vector<16x18x4xbf16> to vector<16x16x4xbf16>
    %64 = vector.extract_strided_slice %62 {offsets = [0, 1, 0], sizes = [16, 16, 4], strides = [1, 1, 1]} : vector<16x18x4xbf16> to vector<16x16x4xbf16>
    %65 = vector.extract_strided_slice %62 {offsets = [0, 2, 0], sizes = [16, 16, 4], strides = [1, 1, 1]} : vector<16x18x4xbf16> to vector<16x16x4xbf16>
    %66 = tpu.concatenate %63, %64, %65 in 2 : vector<16x16x4xbf16>, vector<16x16x4xbf16>, vector<16x16x4xbf16> -> vector<16x16x12xbf16>
    %c0_62 = arith.constant 0 : index
    %c0_63 = arith.constant 0 : index
    %c0_64 = arith.constant 0 : index
    %67 = vector.load %arg4[%c0_62, %c0_63, %c0_64] : memref<1x256x4xf32, #tpu.memory_space<vmem>>, vector<1x256x4xf32>
    %68 = vector.shape_cast %67 : vector<1x256x4xf32> to vector<256x4xf32>
    %69 = vector.shape_cast %66 : vector<16x16x12xbf16> to vector<256x12xbf16>
    %c0_65 = arith.constant 0 : index
    %c0_66 = arith.constant 0 : index
    %c0_67 = arith.constant 0 : index
    %70 = vector.load %arg3[%c0_65, %c0_66, %c0_67] : memref<3x12x4xbf16, #tpu.memory_space<vmem>>, vector<1x12x4xbf16>
    %71 = vector.shape_cast %70 : vector<1x12x4xbf16> to vector<12x4xbf16>
    %cst_68 = arith.constant dense<0.000000e+00> : vector<256x4xf32>
    %72 = tpu.matmul %69, %71, %cst_68 {dimension_numbers = #tpu.dot_dimension_numbers<[1], [0], [0], [1], [0, 0, 1, 1], [], []>} : vector<256x12xbf16>, vector<12x4xbf16>, vector<256x4xf32> -> vector<256x4xf32>
    %73 = arith.addf %68, %72 : vector<256x4xf32>
    %c0_69 = arith.constant 0 : index
    %c0_70 = arith.constant 0 : index
    %c0_71 = arith.constant 0 : index
    %74 = vector.load %arg4[%c0_69, %c0_70, %c0_71] : memref<1x256x4xf32, #tpu.memory_space<vmem>>, vector<1x256x4xf32>
    %75 = vector.shape_cast %74 : vector<1x256x4xf32> to vector<256x4xf32>
    %76 = vector.shape_cast %73 : vector<256x4xf32> to vector<1x256x4xf32>
    tpu.vector_store %arg4[%c0_69, %c0_70, %c0_71], %76 {strides = array<i32>} : memref<1x256x4xf32, #tpu.memory_space<vmem>>, vector<1x256x4xf32>,
    %c1_72 = arith.constant 1 : index
    %c0_73 = arith.constant 0 : index
    %c0_74 = arith.constant 0 : index
    %77 = vector.load %arg6[%c1_72, %c0_73, %c0_74] : memref<18x18x4xbf16, #tpu.memory_space<vmem>>, vector<16x18x4xbf16>
    %78 = vector.extract_strided_slice %77 {offsets = [0, 0, 0], sizes = [16, 16, 4], strides = [1, 1, 1]} : vector<16x18x4xbf16> to vector<16x16x4xbf16>
    %79 = vector.extract_strided_slice %77 {offsets = [0, 1, 0], sizes = [16, 16, 4], strides = [1, 1, 1]} : vector<16x18x4xbf16> to vector<16x16x4xbf16>
    %80 = vector.extract_strided_slice %77 {offsets = [0, 2, 0], sizes = [16, 16, 4], strides = [1, 1, 1]} : vector<16x18x4xbf16> to vector<16x16x4xbf16>
    %81 = tpu.concatenate %78, %79, %80 in 2 : vector<16x16x4xbf16>, vector<16x16x4xbf16>, vector<16x16x4xbf16> -> vector<16x16x12xbf16>
    %c0_75 = arith.constant 0 : index
    %c0_76 = arith.constant 0 : index
    %c0_77 = arith.constant 0 : index
    %82 = vector.load %arg4[%c0_75, %c0_76, %c0_77] : memref<1x256x4xf32, #tpu.memory_space<vmem>>, vector<1x256x4xf32>
    %83 = vector.shape_cast %82 : vector<1x256x4xf32> to vector<256x4xf32>
    %84 = vector.shape_cast %81 : vector<16x16x12xbf16> to vector<256x12xbf16>
    %c1_78 = arith.constant 1 : index
    %c0_79 = arith.constant 0 : index
    %c0_80 = arith.constant 0 : index
    %85 = vector.load %arg3[%c1_78, %c0_79, %c0_80] : memref<3x12x4xbf16, #tpu.memory_space<vmem>>, vector<1x12x4xbf16>
    %86 = vector.shape_cast %85 : vector<1x12x4xbf16> to vector<12x4xbf16>
    %cst_81 = arith.constant dense<0.000000e+00> : vector<256x4xf32>
    %87 = tpu.matmul %84, %86, %cst_81 {dimension_numbers = #tpu.dot_dimension_numbers<[1], [0], [0], [1], [0, 0, 1, 1], [], []>} : vector<256x12xbf16>, vector<12x4xbf16>, vector<256x4xf32> -> vector<256x4xf32>
    %88 = arith.addf %83, %87 : vector<256x4xf32>
    %c0_82 = arith.constant 0 : index
    %c0_83 = arith.constant 0 : index
    %c0_84 = arith.constant 0 : index
    %89 = vector.load %arg4[%c0_82, %c0_83, %c0_84] : memref<1x256x4xf32, #tpu.memory_space<vmem>>, vector<1x256x4xf32>
    %90 = vector.shape_cast %89 : vector<1x256x4xf32> to vector<256x4xf32>
    %91 = vector.shape_cast %88 : vector<256x4xf32> to vector<1x256x4xf32>
    tpu.vector_store %arg4[%c0_82, %c0_83, %c0_84], %91 {strides = array<i32>} : memref<1x256x4xf32, #tpu.memory_space<vmem>>, vector<1x256x4xf32>,
    %c2_85 = arith.constant 2 : index
    %c0_86 = arith.constant 0 : index
    %c0_87 = arith.constant 0 : index
    %92 = vector.load %arg6[%c2_85, %c0_86, %c0_87] : memref<18x18x4xbf16, #tpu.memory_space<vmem>>, vector<16x18x4xbf16>
    %93 = vector.extract_strided_slice %92 {offsets = [0, 0, 0], sizes = [16, 16, 4], strides = [1, 1, 1]} : vector<16x18x4xbf16> to vector<16x16x4xbf16>
    %94 = vector.extract_strided_slice %92 {offsets = [0, 1, 0], sizes = [16, 16, 4], strides = [1, 1, 1]} : vector<16x18x4xbf16> to vector<16x16x4xbf16>
    %95 = vector.extract_strided_slice %92 {offsets = [0, 2, 0], sizes = [16, 16, 4], strides = [1, 1, 1]} : vector<16x18x4xbf16> to vector<16x16x4xbf16>
    %96 = tpu.concatenate %93, %94, %95 in 2 : vector<16x16x4xbf16>, vector<16x16x4xbf16>, vector<16x16x4xbf16> -> vector<16x16x12xbf16>
    %c0_88 = arith.constant 0 : index
    %c0_89 = arith.constant 0 : index
    %c0_90 = arith.constant 0 : index
    %97 = vector.load %arg4[%c0_88, %c0_89, %c0_90] : memref<1x256x4xf32, #tpu.memory_space<vmem>>, vector<1x256x4xf32>
    %98 = vector.shape_cast %97 : vector<1x256x4xf32> to vector<256x4xf32>
    %99 = vector.shape_cast %96 : vector<16x16x12xbf16> to vector<256x12xbf16>
    %c2_91 = arith.constant 2 : index
    %c0_92 = arith.constant 0 : index
    %c0_93 = arith.constant 0 : index
    %100 = vector.load %arg3[%c2_91, %c0_92, %c0_93] : memref<3x12x4xbf16, #tpu.memory_space<vmem>>, vector<1x12x4xbf16>
    %101 = vector.shape_cast %100 : vector<1x12x4xbf16> to vector<12x4xbf16>
    %cst_94 = arith.constant dense<0.000000e+00> : vector<256x4xf32>
    %102 = tpu.matmul %99, %101, %cst_94 {dimension_numbers = #tpu.dot_dimension_numbers<[1], [0], [0], [1], [0, 0, 1, 1], [], []>} : vector<256x12xbf16>, vector<12x4xbf16>, vector<256x4xf32> -> vector<256x4xf32>
    %103 = arith.addf %98, %102 : vector<256x4xf32>
    %c0_95 = arith.constant 0 : index
    %c0_96 = arith.constant 0 : index
    %c0_97 = arith.constant 0 : index
    %104 = vector.load %arg4[%c0_95, %c0_96, %c0_97] : memref<1x256x4xf32, #tpu.memory_space<vmem>>, vector<1x256x4xf32>
    %105 = vector.shape_cast %104 : vector<1x256x4xf32> to vector<256x4xf32>
    %106 = vector.shape_cast %103 : vector<256x4xf32> to vector<1x256x4xf32>
    tpu.vector_store %arg4[%c0_95, %c0_96, %c0_97], %106 {strides = array<i32>} : memref<1x256x4xf32, #tpu.memory_space<vmem>>, vector<1x256x4xf32>,
    return
  }
  func.func @transform_0(%arg0: i32) -> (i32, i32, i32, i32) {
    %c0_i32 = arith.constant 0 : i32
    %c0_i32_0 = arith.constant 0 : i32
    %c0_i32_1 = arith.constant 0 : i32
    %c0_i32_2 = arith.constant 0 : i32
    return %arg0, %c0_i32, %c0_i32_0, %c0_i32_1 : i32, i32, i32, i32
  }
  func.func @transform_1(%arg0: i32) -> (i32, i32, i32) {
    %c0_i32 = arith.constant 0 : i32
    %c0_i32_0 = arith.constant 0 : i32
    %c0_i32_1 = arith.constant 0 : i32
    %c0_i32_2 = arith.constant 0 : i32
    return %c0_i32, %c0_i32_0, %c0_i32_1 : i32, i32, i32
  }
  func.func @transform_2(%arg0: i32) -> (i32, i32, i32) {
    %c0_i32 = arith.constant 0 : i32
    %c0_i32_0 = arith.constant 0 : i32
    %c0_i32_1 = arith.constant 0 : i32
    %c0_i32_2 = arith.constant 0 : i32
    return %c0_i32, %c0_i32_0, %c0_i32_1 : i32, i32, i32
  }
  func.func @transform_3(%arg0: i32) -> (i32, i32, i32) {
    %c0_i32 = arith.constant 0 : i32
    %c0_i32_0 = arith.constant 0 : i32
    %c0_i32_1 = arith.constant 0 : i32
    return %arg0, %c0_i32, %c0_i32_0 : i32, i32, i32
  }
}

</mosaic_0001>

<llo_original>
// kernel: tpu_custom_call.1
$region0: #{tpu_custom_call.1}
  #allocation0 [shape = 'u32[]', space=smem, size = 0x4, offset = 0x4, fixed_abs, tag = 'smem constant byte address 0x4 - core index']
  #allocation1 [shape = 'u32[144,128]{1,0:T(1,128)}', space=vmem, size = 0x12000, scoped, tag = 'internal scratch']
  #allocation2 [shape = 'f32[256,4]{1,0:T(8,128)}', space=vmem, size = 0x20000, scoped, tag = 'scratch operand']
  #allocation3 [shape = 'bf16[18,18,4]{2,1,0:T(8,128)(2,1)}', space=vmem, size = 0x1b000, scoped, tag = 'scratch operand']
  %s0 = inlined_call_operand.vmem [shape: bf16[2,18,18,4], index: 0, kind: input, shape index: {}]
  %s1 = inlined_call_operand.vmem [shape: bf16[3,12,4], index: 1, kind: input, shape index: {}]
  %s2 = inlined_call_operand.vmem [shape: bf16[3,12,4], index: 2, kind: input, shape index: {}]
  %s3 = inlined_call_operand.vmem [shape: f32[2,256,4], index: 3, kind: output, shape index: {}]
  %s4 = sld [smem:[#allocation0]]
  $region45: #{tpu_custom_call.1} parent=0
    _
  %s6 = ssub.s32 1, %s4
  %s7 = scalar_select 0, %s6, %s4
  loop: start=0, step=1, limit=4
  $region2: #{tpu_custom_call.1} parent=0 // loop_pre_header
    _
  $region3: #{tpu_custom_call.1} parent=0 // loop_header
    %s9 = sphi 0, %s13
    %p10 = scmp.ge.s32.totalorder %s9, 4
    %s19 = sphi 0, %s21
    %s22 = sphi 0, %s19
    %s23 = sphi 0, %s22
    %s39 = sphi 0, %s23
    %s43 = sphi 0, %s43
    %s45 = sphi 0, %s43
    %s46 = sphi 0, %s45
    %s60 = sphi 0, %s46
    %s64 = sphi 0, %s64
    %s66 = sphi 0, %s64
    %s67 = sphi 0, %s66
    %s81 = sphi 0, %s67
    %s87 = sphi 0, %s89
    %s90 = sphi 0, %s87
    %s91 = sphi 0, %s90
    %s107 = sphi 0, %s91
  $region4: #{tpu_custom_call.1} parent=0 // loop_header_branch
    %12 = sbr.rel (%p10) target = $region8
  $region5: #{tpu_custom_call.1} parent=0 // loop_body
    %s14 = ssub.s32 %s9, 1
    %s15 = ssub.s32 %s9, 2
    %s16 = sadd.s32 %s9, 1
    %s17 = ssub.s32 %s9, %s16
    %p18 = scmp.eq.s32.totalorder %s17, 0
    %s20 = sadd.s32 %s19, 1
    %s21 = scalar_select %p18, %s19, %s20
    %p24 = pneg %p18
    %p25 = scmp.eq.s32.totalorder %s9, 1
    %p26 = por %p24, %p25
    %p27 = scmp.ne.s32.totalorder %s19, %s22
    %p28 = scmp.eq.s32.totalorder %s9, 0
    %p29 = por %p27, %p28
    %p30 = scmp.ne.s32.totalorder %s19, %s22
    %p31 = scmp.eq.s32.totalorder %s14, 1
    %p32 = por %p30, %p31
    %p33 = scmp.ne.s32.totalorder %s22, %s23
    %p34 = scmp.eq.s32.totalorder %s14, 0
    %p35 = por %p33, %p34
    %p36 = scmp.ne.s32.totalorder %s22, %s23
    %p37 = scmp.eq.s32.totalorder %s15, 1
    %p38 = por %p36, %p37
    %p40 = scmp.ne.s32.totalorder %s23, %s39
    %p41 = scmp.eq.s32.totalorder %s15, 0
    %p42 = por %p40, %p41
    %s44 = sadd.s32 %s43, 1
    %p47 = scmp.eq.s32.totalorder %s9, 1
    %p48 = scmp.ne.s32.totalorder %s43, %s45
    %p49 = scmp.eq.s32.totalorder %s9, 0
    %p50 = por %p48, %p49
    %p51 = scmp.ne.s32.totalorder %s43, %s45
    %p52 = scmp.eq.s32.totalorder %s14, 1
    %p53 = por %p51, %p52
    %p54 = scmp.ne.s32.totalorder %s45, %s46
    %p55 = scmp.eq.s32.totalorder %s14, 0
    %p56 = por %p54, %p55
    %p57 = scmp.ne.s32.totalorder %s45, %s46
    %p58 = scmp.eq.s32.totalorder %s15, 1
    %p59 = por %p57, %p58
    %p61 = scmp.ne.s32.totalorder %s46, %s60
    %p62 = scmp.eq.s32.totalorder %s15, 0
    %p63 = por %p61, %p62
    %s65 = sadd.s32 %s64, 1
    %p68 = scmp.eq.s32.totalorder %s9, 1
    %p69 = scmp.ne.s32.totalorder %s64, %s66
    %p70 = scmp.eq.s32.totalorder %s9, 0
    %p71 = por %p69, %p70
    %p72 = scmp.ne.s32.totalorder %s64, %s66
    %p73 = scmp.eq.s32.totalorder %s14, 1
    %p74 = por %p72, %p73
    %p75 = scmp.ne.s32.totalorder %s66, %s67
    %p76 = scmp.eq.s32.totalorder %s14, 0
    %p77 = por %p75, %p76
    %p78 = scmp.ne.s32.totalorder %s66, %s67
    %p79 = scmp.eq.s32.totalorder %s15, 1
    %p80 = por %p78, %p79
    %p82 = scmp.ne.s32.totalorder %s67, %s81
    %p83 = scmp.eq.s32.totalorder %s15, 0
    %p84 = por %p82, %p83
    %s85 = ssub.s32 %s9, %s16
    %p86 = scmp.eq.s32.totalorder %s85, 0
    %s88 = sadd.s32 %s87, 1
    %s89 = scalar_select %p86, %s87, %s88
    %p92 = pneg %p86
    %p93 = scmp.eq.s32.totalorder %s9, 1
    %p94 = por %p92, %p93
    %p95 = scmp.ne.s32.totalorder %s87, %s90
    %p96 = scmp.eq.s32.totalorder %s9, 0
    %p97 = por %p95, %p96
    %p98 = scmp.ne.s32.totalorder %s87, %s90
    %p99 = scmp.eq.s32.totalorder %s14, 1
    %p100 = por %p98, %p99
    %p101 = scmp.ne.s32.totalorder %s90, %s91
    %p102 = scmp.eq.s32.totalorder %s14, 0
    %p103 = por %p101, %p102
    %p104 = scmp.ne.s32.totalorder %s90, %s91
    %p105 = scmp.eq.s32.totalorder %s15, 1
    %p106 = por %p104, %p105
    %p108 = scmp.ne.s32.totalorder %s91, %s107
    %p109 = scmp.eq.s32.totalorder %s15, 0
    %p110 = por %p108, %p109
    %p111 = scmp.le.s32.totalorder 1, %s9
    %p112 = scmp.lt.s32.totalorder %s9, 3
    %p113 = pnand %p111, %p112
    %p114 = pneg %p113
    // Predicated region
    $region9: #{tpu_custom_call.1} parent=5 // pred_check
      _
    $region10: #{tpu_custom_call.1} parent=5 // pred_check_branch
      %116 = sbr.rel (%p113) target = $region12
    $region11: #{tpu_custom_call.1} parent=5 // pred_region
      %s117 = ssub.s32 %s9, 1
      // Predicated region
      $region13: #{tpu_custom_call.1} parent=11 // pred_check
        %p118 = pneg %p56
      $region14: #{tpu_custom_call.1} parent=11 // pred_check_branch
        %120 = sbr.rel (%p118) target = $region16
      $region15: #{tpu_custom_call.1} parent=11 // pred_region
        _
      $region16: #{tpu_custom_call.1} parent=11 // pred_fallthru
        _
      // Predicated region
      $region17: #{tpu_custom_call.1} parent=11 // pred_check
        %p121 = pneg %p77
      $region18: #{tpu_custom_call.1} parent=11 // pred_check_branch
        %123 = sbr.rel (%p121) target = $region20
      $region19: #{tpu_custom_call.1} parent=11 // pred_region
        _
      $region20: #{tpu_custom_call.1} parent=11 // pred_fallthru
        _
    $region12: #{tpu_custom_call.1} parent=5 // pred_fallthru
      _
    %p124 = scmp.lt.s32.totalorder %s9, 2
    // Predicated region
    $region21: #{tpu_custom_call.1} parent=5 // pred_check
      %p125 = pneg %p124
    $region22: #{tpu_custom_call.1} parent=5 // pred_check_branch
      %127 = sbr.rel (%p125) target = $region24
    $region23: #{tpu_custom_call.1} parent=5 // pred_region
      // Predicated region
      $region25: #{tpu_custom_call.1} parent=23 // pred_check
        %p128 = pneg %p29
      $region26: #{tpu_custom_call.1} parent=23 // pred_check_branch
        %130 = sbr.rel (%p128) target = $region28
      $region27: #{tpu_custom_call.1} parent=23 // pred_region
        %p131 = scmp.lt.s32.totalorder %s9, 1
        %s132 = scalar_select %p131, %s9, 1
        %s133 = smul.addr %s132, 54
        %s134 = smul.addr %s133, 4
        %s135 = scalar_lea.vmem %s0, %s134
      $region28: #{tpu_custom_call.1} parent=23 // pred_fallthru
        _
    $region24: #{tpu_custom_call.1} parent=5 // pred_fallthru
      _
    %p136 = scmp.le.s32.totalorder 1, %s9
    %p137 = scmp.lt.s32.totalorder %s9, 3
    %p138 = pnand %p136, %p137
    %p139 = pneg %p138
    // Predicated region
    $region29: #{tpu_custom_call.1} parent=5 // pred_check
      _
    $region30: #{tpu_custom_call.1} parent=5 // pred_check_branch
      %141 = sbr.rel (%p138) target = $region32
    $region31: #{tpu_custom_call.1} parent=5 // pred_region
      %s142 = ssub.s32 %s9, 1
      %p143 = scmp.lt.s32.totalorder %s14, 1
      %s144 = scalar_select %p143, %s14, 1
      %s145 = smul.addr %s144, 54
      %s146 = smul.addr %s145, 4
      %s147 = scalar_lea.vmem %s0, %s146
      %p148 = pneg %p35
      %p149 = pneg %p32
      %p150 = pneg %p56
      %p151 = pneg %p53
      %p152 = pneg %p77
      %p153 = pneg %p74
      %p154 = pneg %p103
      %p155 = pneg %p100
      %p156 = scmp.lt.s32.totalorder %s14, 1
      %s157 = scalar_select %p156, %s14, 1
      %s158 = smul.addr %s157, 32
      %s159 = smul.addr %s158, 8
      %s160 = scalar_lea.vmem %s3, %s159
      %p161 = scmp.lt.s32.totalorder %s14, 1
      %s162 = scalar_select %p161, %s14, 1
      %s163 = smul.addr %s162, 54
      %s164 = smul.addr %s163, 4
      %s165 = scalar_lea.vmem %s0, %s164
      %p166 = scmp.lt.s32.totalorder %s14, 1
      %s167 = scalar_select %p166, %s14, 1
      %s168 = smul.addr %s167, 32
      %s169 = smul.addr %s168, 8
      %s170 = scalar_lea.vmem %s3, %s169
      %s172 = scalar_lea.vmem %s165, 12
      %v173 = vld [vmem:[%s172] sm:$0xf]
      %v174 = vld [vmem:[%s172 + $0x4] sm:$0xf]
      %v175 = vld [vmem:[%s172 + $0x8] sm:$0x1]
      %v176 = vld [vmem:[%s172 + $0xc] sm:$0xf]
      %v177 = vld [vmem:[%s172 + $0x10] sm:$0xf]
      %v178 = vld [vmem:[%s172 + $0x14] sm:$0x1]
      %v179 = vld [vmem:[%s172 + $0x18] sm:$0xf]
      %v180 = vld [vmem:[%s172 + $0x1c] sm:$0xf]
      %v181 = vld [vmem:[%s172 + $0x20] sm:$0x1]
      %v182 = vld [vmem:[%s172 + $0x24] sm:$0xf]
      %v183 = vld [vmem:[%s172 + $0x28] sm:$0xf]
      %v184 = vld [vmem:[%s172 + $0x2c] sm:$0x1]
      %v185 = vld [vmem:[%s172 + $0x30] sm:$0xf]
      %v186 = vld [vmem:[%s172 + $0x34] sm:$0xf]
      %v187 = vld [vmem:[%s172 + $0x38] sm:$0x1]
      %v188 = vld [vmem:[%s172 + $0x3c] sm:$0xf]
      %v189 = vld [vmem:[%s172 + $0x40] sm:$0xf]
      %v190 = vld [vmem:[%s172 + $0x44] sm:$0x1]
      %v191 = vld [vmem:[%s172 + $0x48] sm:$0xf]
      %v192 = vld [vmem:[%s172 + $0x4c] sm:$0xf]
      %v193 = vld [vmem:[%s172 + $0x50] sm:$0x1]
      %v194 = vld [vmem:[%s172 + $0x54] sm:$0xf]
      %v195 = vld [vmem:[%s172 + $0x58] sm:$0xf]
      %v196 = vld [vmem:[%s172 + $0x5c] sm:$0x1]
      %v197 = vld [vmem:[%s172 + $0x60] sm:$0xf]
      %v198 = vld [vmem:[%s172 + $0x64] sm:$0xf]
      %v199 = vld [vmem:[%s172 + $0x68] sm:$0x1]
      %v200 = vld [vmem:[%s172 + $0x6c] sm:$0xf]
      %v201 = vld [vmem:[%s172 + $0x70] sm:$0xf]
      %v202 = vld [vmem:[%s172 + $0x74] sm:$0x1]
      %v203 = vld [vmem:[%s172 + $0x78] sm:$0xf]
      %v204 = vld [vmem:[%s172 + $0x7c] sm:$0xf]
      %v205 = vld [vmem:[%s172 + $0x80] sm:$0x1]
      %v206 = vld [vmem:[%s172 + $0x84] sm:$0xf]
      %v207 = vld [vmem:[%s172 + $0x88] sm:$0xf]
      %v208 = vld [vmem:[%s172 + $0x8c] sm:$0x1]
      %v209 = vld [vmem:[%s172 + $0x90] sm:$0xf]
      %v210 = vld [vmem:[%s172 + $0x94] sm:$0xf]
      %v211 = vld [vmem:[%s172 + $0x98] sm:$0x1]
      %v212 = vld [vmem:[%s172 + $0x9c] sm:$0xf]
      %v213 = vld [vmem:[%s172 + $0xa0] sm:$0xf]
      %v214 = vld [vmem:[%s172 + $0xa4] sm:$0x1]
      %v215 = vld [vmem:[%s172 + $0xa8] sm:$0xf]
      %v216 = vld [vmem:[%s172 + $0xac] sm:$0xf]
      %v217 = vld [vmem:[%s172 + $0xb0] sm:$0x1]
      %v218 = vld [vmem:[%s172 + $0xb4] sm:$0xf]
      %v219 = vld [vmem:[%s172 + $0xb8] sm:$0xf]
      %v220 = vld [vmem:[%s172 + $0xbc] sm:$0x1]
      %vm221 = vsmask.f32 3328
      %vm222 = vsmask.f32 7440
      %vm223 = vmor %vm221, %vm222
      %v225 = vshrl.u32 %v173, 16
      %v227 = vrot.slane %v225, 4
      %v228 = vshll.u32 %v173, 16
      %v230 = vrot.slane %v228, 5
      %v231 = vor.u32 %v227, %v230
      %v232 = vrot.slane %v231, 4
      %v234 = vshll.u32 %v174, 16
      %v236 = vrot.slane %v234, 5
      %v237 = vsel %vm223, %v232, %v236
      %v238 = vshrl.u32 %v174, 16
      %v240 = vrot.slane %v238, 4
      %v241 = vor.u32 %v240, %v236
      %v242 = vrot.slane %v241, 4
      %v244 = vshll.u32 %v175, 16
      %v246 = vrot.slane %v244, 5
      %v247 = vsel %vm223, %v242, %v246
      %v249 = vshrl.u32 %v176, 16
      %v251 = vrot.slane %v249, 4
      %v252 = vshll.u32 %v176, 16
      %v254 = vrot.slane %v252, 5
      %v255 = vor.u32 %v251, %v254
      %v256 = vrot.slane %v255, 4
      %v258 = vshll.u32 %v177, 16
      %v260 = vrot.slane %v258, 5
      %v261 = vsel %vm223, %v256, %v260
      %v262 = vshrl.u32 %v177, 16
      %v264 = vrot.slane %v262, 4
      %v265 = vor.u32 %v264, %v260
      %v266 = vrot.slane %v265, 4
      %v268 = vshll.u32 %v178, 16
      %v270 = vrot.slane %v268, 5
      %v271 = vsel %vm223, %v266, %v270
      %v273 = vshrl.u32 %v179, 16
      %v275 = vrot.slane %v273, 4
      %v276 = vshll.u32 %v179, 16
      %v278 = vrot.slane %v276, 5
      %v279 = vor.u32 %v275, %v278
      %v280 = vrot.slane %v279, 4
      %v282 = vshll.u32 %v180, 16
      %v284 = vrot.slane %v282, 5
      %v285 = vsel %vm223, %v280, %v284
      %v286 = vshrl.u32 %v180, 16
      %v288 = vrot.slane %v286, 4
      %v289 = vor.u32 %v288, %v284
      %v290 = vrot.slane %v289, 4
      %v292 = vshll.u32 %v181, 16
      %v294 = vrot.slane %v292, 5
      %v295 = vsel %vm223, %v290, %v294
      %v297 = vshrl.u32 %v182, 16
      %v299 = vrot.slane %v297, 4
      %v300 = vshll.u32 %v182, 16
      %v302 = vrot.slane %v300, 5
      %v303 = vor.u32 %v299, %v302
      %v304 = vrot.slane %v303, 4
      %v306 = vshll.u32 %v183, 16
      %v308 = vrot.slane %v306, 5
      %v309 = vsel %vm223, %v304, %v308
      %v310 = vshrl.u32 %v183, 16
      %v312 = vrot.slane %v310, 4
      %v313 = vor.u32 %v312, %v308
      %v314 = vrot.slane %v313, 4
      %v316 = vshll.u32 %v184, 16
      %v318 = vrot.slane %v316, 5
      %v319 = vsel %vm223, %v314, %v318
      %v321 = vshrl.u32 %v185, 16
      %v323 = vrot.slane %v321, 4
      %v324 = vshll.u32 %v185, 16
      %v326 = vrot.slane %v324, 5
      %v327 = vor.u32 %v323, %v326
      %v328 = vrot.slane %v327, 4
      %v330 = vshll.u32 %v186, 16
      %v332 = vrot.slane %v330, 5
      %v333 = vsel %vm223, %v328, %v332
      %v334 = vshrl.u32 %v186, 16
      %v336 = vrot.slane %v334, 4
      %v337 = vor.u32 %v336, %v332
      %v338 = vrot.slane %v337, 4
      %v340 = vshll.u32 %v187, 16
      %v342 = vrot.slane %v340, 5
      %v343 = vsel %vm223, %v338, %v342
      %v345 = vshrl.u32 %v188, 16
      %v347 = vrot.slane %v345, 4
      %v348 = vshll.u32 %v188, 16
      %v350 = vrot.slane %v348, 5
      %v351 = vor.u32 %v347, %v350
      %v352 = vrot.slane %v351, 4
      %v354 = vshll.u32 %v189, 16
      %v356 = vrot.slane %v354, 5
      %v357 = vsel %vm223, %v352, %v356
      %v358 = vshrl.u32 %v189, 16
      %v360 = vrot.slane %v358, 4
      %v361 = vor.u32 %v360, %v356
      %v362 = vrot.slane %v361, 4
      %v364 = vshll.u32 %v190, 16
      %v366 = vrot.slane %v364, 5
      %v367 = vsel %vm223, %v362, %v366
      %v369 = vshrl.u32 %v191, 16
      %v371 = vrot.slane %v369, 4
      %v372 = vshll.u32 %v191, 16
      %v374 = vrot.slane %v372, 5
      %v375 = vor.u32 %v371, %v374
      %v376 = vrot.slane %v375, 4
      %v378 = vshll.u32 %v192, 16
      %v380 = vrot.slane %v378, 5
      %v381 = vsel %vm223, %v376, %v380
      %v382 = vshrl.u32 %v192, 16
      %v384 = vrot.slane %v382, 4
      %v385 = vor.u32 %v384, %v380
      %v386 = vrot.slane %v385, 4
      %v388 = vshll.u32 %v193, 16
      %v390 = vrot.slane %v388, 5
      %v391 = vsel %vm223, %v386, %v390
      %v393 = vshrl.u32 %v194, 16
      %v395 = vrot.slane %v393, 4
      %v396 = vshll.u32 %v194, 16
      %v398 = vrot.slane %v396, 5
      %v399 = vor.u32 %v395, %v398
      %v400 = vrot.slane %v399, 4
      %v402 = vshll.u32 %v195, 16
      %v404 = vrot.slane %v402, 5
      %v405 = vsel %vm223, %v400, %v404
      %v406 = vshrl.u32 %v195, 16
      %v408 = vrot.slane %v406, 4
      %v409 = vor.u32 %v408, %v404
      %v410 = vrot.slane %v409, 4
      %v412 = vshll.u32 %v196, 16
      %v414 = vrot.slane %v412, 5
      %v415 = vsel %vm223, %v410, %v414
      %v417 = vshrl.u32 %v197, 16
      %v419 = vrot.slane %v417, 4
      %v420 = vshll.u32 %v197, 16
      %v422 = vrot.slane %v420, 5
      %v423 = vor.u32 %v419, %v422
      %v424 = vrot.slane %v423, 4
      %v426 = vshll.u32 %v198, 16
      %v428 = vrot.slane %v426, 5
      %v429 = vsel %vm223, %v424, %v428
      %v430 = vshrl.u32 %v198, 16
      %v432 = vrot.slane %v430, 4
      %v433 = vor.u32 %v432, %v428
      %v434 = vrot.slane %v433, 4
      %v436 = vshll.u32 %v199, 16
      %v438 = vrot.slane %v436, 5
      %v439 = vsel %vm223, %v434, %v438
      %v441 = vshrl.u32 %v200, 16
      %v443 = vrot.slane %v441, 4
      %v444 = vshll.u32 %v200, 16
      %v446 = vrot.slane %v444, 5
      %v447 = vor.u32 %v443, %v446
      %v448 = vrot.slane %v447, 4
      %v450 = vshll.u32 %v201, 16
      %v452 = vrot.slane %v450, 5
      %v453 = vsel %vm223, %v448, %v452
      %v454 = vshrl.u32 %v201, 16
      %v456 = vrot.slane %v454, 4
      %v457 = vor.u32 %v456, %v452
      %v458 = vrot.slane %v457, 4
      %v460 = vshll.u32 %v202, 16
      %v462 = vrot.slane %v460, 5
      %v463 = vsel %vm223, %v458, %v462
      %v465 = vshrl.u32 %v203, 16
      %v467 = vrot.slane %v465, 4
      %v468 = vshll.u32 %v203, 16
      %v470 = vrot.slane %v468, 5
      %v471 = vor.u32 %v467, %v470
      %v472 = vrot.slane %v471, 4
      %v474 = vshll.u32 %v204, 16
      %v476 = vrot.slane %v474, 5
      %v477 = vsel %vm223, %v472, %v476
      %v478 = vshrl.u32 %v204, 16
      %v480 = vrot.slane %v478, 4
      %v481 = vor.u32 %v480, %v476
      %v482 = vrot.slane %v481, 4
      %v484 = vshll.u32 %v205, 16
      %v486 = vrot.slane %v484, 5
      %v487 = vsel %vm223, %v482, %v486
      %v489 = vshrl.u32 %v206, 16
      %v491 = vrot.slane %v489, 4
      %v492 = vshll.u32 %v206, 16
      %v494 = vrot.slane %v492, 5
      %v495 = vor.u32 %v491, %v494
      %v496 = vrot.slane %v495, 4
      %v498 = vshll.u32 %v207, 16
      %v500 = vrot.slane %v498, 5
      %v501 = vsel %vm223, %v496, %v500
      %v502 = vshrl.u32 %v207, 16
      %v504 = vrot.slane %v502, 4
      %v505 = vor.u32 %v504, %v500
      %v506 = vrot.slane %v505, 4
      %v508 = vshll.u32 %v208, 16
      %v510 = vrot.slane %v508, 5
      %v511 = vsel %vm223, %v506, %v510
      %v513 = vshrl.u32 %v209, 16
      %v515 = vrot.slane %v513, 4
      %v516 = vshll.u32 %v209, 16
      %v518 = vrot.slane %v516, 5
      %v519 = vor.u32 %v515, %v518
      %v520 = vrot.slane %v519, 4
      %v522 = vshll.u32 %v210, 16
      %v524 = vrot.slane %v522, 5
      %v525 = vsel %vm223, %v520, %v524
      %v526 = vshrl.u32 %v210, 16
      %v528 = vrot.slane %v526, 4
      %v529 = vor.u32 %v528, %v524
      %v530 = vrot.slane %v529, 4
      %v532 = vshll.u32 %v211, 16
      %v534 = vrot.slane %v532, 5
      %v535 = vsel %vm223, %v530, %v534
      %v537 = vshrl.u32 %v212, 16
      %v539 = vrot.slane %v537, 4
      %v540 = vshll.u32 %v212, 16
      %v542 = vrot.slane %v540, 5
      %v543 = vor.u32 %v539, %v542
      %v544 = vrot.slane %v543, 4
      %v546 = vshll.u32 %v213, 16
      %v548 = vrot.slane %v546, 5
      %v549 = vsel %vm223, %v544, %v548
      %v550 = vshrl.u32 %v213, 16
      %v552 = vrot.slane %v550, 4
      %v553 = vor.u32 %v552, %v548
      %v554 = vrot.slane %v553, 4
      %v556 = vshll.u32 %v214, 16
      %v558 = vrot.slane %v556, 5
      %v559 = vsel %vm223, %v554, %v558
      %v561 = vshrl.u32 %v215, 16
      %v563 = vrot.slane %v561, 4
      %v564 = vshll.u32 %v215, 16
      %v566 = vrot.slane %v564, 5
      %v567 = vor.u32 %v563, %v566
      %v568 = vrot.slane %v567, 4
      %v570 = vshll.u32 %v216, 16
      %v572 = vrot.slane %v570, 5
      %v573 = vsel %vm223, %v568, %v572
      %v574 = vshrl.u32 %v216, 16
      %v576 = vrot.slane %v574, 4
      %v577 = vor.u32 %v576, %v572
      %v578 = vrot.slane %v577, 4
      %v580 = vshll.u32 %v217, 16
      %v582 = vrot.slane %v580, 5
      %v583 = vsel %vm223, %v578, %v582
      %v585 = vshrl.u32 %v218, 16
      %v587 = vrot.slane %v585, 4
      %v588 = vshll.u32 %v218, 16
      %v590 = vrot.slane %v588, 5
      %v591 = vor.u32 %v587, %v590
      %v592 = vrot.slane %v591, 4
      %v594 = vshll.u32 %v219, 16
      %v596 = vrot.slane %v594, 5
      %v597 = vsel %vm223, %v592, %v596
      %v598 = vshrl.u32 %v219, 16
      %v600 = vrot.slane %v598, 4
      %v601 = vor.u32 %v600, %v596
      %v602 = vrot.slane %v601, 4
      %v604 = vshll.u32 %v220, 16
      %v606 = vrot.slane %v604, 5
      %v607 = vsel %vm223, %v602, %v606
      %v640 = vunpack.c.l.bf16 %v237
      %v641 = vunpack.c.l.bf16 %v247
      %v642 = vunpack.c.l.bf16 %v261
      %v643 = vunpack.c.l.bf16 %v271
      %v644 = vunpack.c.l.bf16 %v285
      %v645 = vunpack.c.l.bf16 %v295
      %v646 = vunpack.c.l.bf16 %v309
      %v647 = vunpack.c.l.bf16 %v319
      %v648 = vunpack.c.l.bf16 %v333
      %v649 = vunpack.c.l.bf16 %v343
      %v650 = vunpack.c.l.bf16 %v357
      %v651 = vunpack.c.l.bf16 %v367
      %v652 = vunpack.c.l.bf16 %v381
      %v653 = vunpack.c.l.bf16 %v391
      %v654 = vunpack.c.l.bf16 %v405
      %v655 = vunpack.c.l.bf16 %v415
      %v656 = vunpack.c.l.bf16 %v429
      %v657 = vunpack.c.l.bf16 %v439
      %v658 = vunpack.c.l.bf16 %v453
      %v659 = vunpack.c.l.bf16 %v463
      %v660 = vunpack.c.l.bf16 %v477
      %v661 = vunpack.c.l.bf16 %v487
      %v662 = vunpack.c.l.bf16 %v501
      %v663 = vunpack.c.l.bf16 %v511
      %v664 = vunpack.c.l.bf16 %v525
      %v665 = vunpack.c.l.bf16 %v535
      %v666 = vunpack.c.l.bf16 %v549
      %v667 = vunpack.c.l.bf16 %v559
      %v668 = vunpack.c.l.bf16 %v573
      %v669 = vunpack.c.l.bf16 %v583
      %v670 = vunpack.c.l.bf16 %v597
      %v671 = vunpack.c.l.bf16 %v607
      %vm672 = vcmask 31744
      %673 = vst.msk [vmem:[%s170] sm:$0xff] %vm672, %v640
      %674 = vst.msk [vmem:[%s170 + $0x8] sm:$0xff] %vm672, %v641
      %675 = vst.msk [vmem:[%s170 + $0x10] sm:$0xff] %vm672, %v642
      %676 = vst.msk [vmem:[%s170 + $0x18] sm:$0xff] %vm672, %v643
      %677 = vst.msk [vmem:[%s170 + $0x20] sm:$0xff] %vm672, %v644
      %678 = vst.msk [vmem:[%s170 + $0x28] sm:$0xff] %vm672, %v645
      %679 = vst.msk [vmem:[%s170 + $0x30] sm:$0xff] %vm672, %v646
      %680 = vst.msk [vmem:[%s170 + $0x38] sm:$0xff] %vm672, %v647
      %681 = vst.msk [vmem:[%s170 + $0x40] sm:$0xff] %vm672, %v648
      %682 = vst.msk [vmem:[%s170 + $0x48] sm:$0xff] %vm672, %v649
      %683 = vst.msk [vmem:[%s170 + $0x50] sm:$0xff] %vm672, %v650
      %684 = vst.msk [vmem:[%s170 + $0x58] sm:$0xff] %vm672, %v651
      %685 = vst.msk [vmem:[%s170 + $0x60] sm:$0xff] %vm672, %v652
      %686 = vst.msk [vmem:[%s170 + $0x68] sm:$0xff] %vm672, %v653
      %687 = vst.msk [vmem:[%s170 + $0x70] sm:$0xff] %vm672, %v654
      %688 = vst.msk [vmem:[%s170 + $0x78] sm:$0xff] %vm672, %v655
      %689 = vst.msk [vmem:[%s170 + $0x80] sm:$0xff] %vm672, %v656
      %690 = vst.msk [vmem:[%s170 + $0x88] sm:$0xff] %vm672, %v657
      %691 = vst.msk [vmem:[%s170 + $0x90] sm:$0xff] %vm672, %v658
      %692 = vst.msk [vmem:[%s170 + $0x98] sm:$0xff] %vm672, %v659
      %693 = vst.msk [vmem:[%s170 + $0xa0] sm:$0xff] %vm672, %v660
      %694 = vst.msk [vmem:[%s170 + $0xa8] sm:$0xff] %vm672, %v661
      %695 = vst.msk [vmem:[%s170 + $0xb0] sm:$0xff] %vm672, %v662
      %696 = vst.msk [vmem:[%s170 + $0xb8] sm:$0xff] %vm672, %v663
      %697 = vst.msk [vmem:[%s170 + $0xc0] sm:$0xff] %vm672, %v664
      %698 = vst.msk [vmem:[%s170 + $0xc8] sm:$0xff] %vm672, %v665
      %699 = vst.msk [vmem:[%s170 + $0xd0] sm:$0xff] %vm672, %v666
      %700 = vst.msk [vmem:[%s170 + $0xd8] sm:$0xff] %vm672, %v667
      %701 = vst.msk [vmem:[%s170 + $0xe0] sm:$0xff] %vm672, %v668
      %702 = vst.msk [vmem:[%s170 + $0xe8] sm:$0xff] %vm672, %v669
      %703 = vst.msk [vmem:[%s170 + $0xf0] sm:$0xff] %vm672, %v670
      %704 = vst.msk [vmem:[%s170 + $0xf8] sm:$0xff] %vm672, %v671
      %v705 = vld [vmem:[%s165] sm:$0xf]
      %v706 = vld [vmem:[%s165 + $0x4] sm:$0xf]
      %v707 = vld [vmem:[%s165 + $0x8] sm:$0x1]
      %v708 = vld [vmem:[%s165 + $0xc] sm:$0xf]
      %v709 = vld [vmem:[%s165 + $0x10] sm:$0xf]
      %v710 = vld [vmem:[%s165 + $0x14] sm:$0x1]
      %v711 = vld [vmem:[%s165 + $0x18] sm:$0xf]
      %v712 = vld [vmem:[%s165 + $0x1c] sm:$0xf]
      %v713 = vld [vmem:[%s165 + $0x20] sm:$0x1]
      %v714 = vld [vmem:[%s165 + $0x24] sm:$0xf]
      %v715 = vld [vmem:[%s165 + $0x28] sm:$0xf]
      %v716 = vld [vmem:[%s165 + $0x2c] sm:$0x1]
      %v717 = vld [vmem:[%s165 + $0x30] sm:$0xf]
      %v718 = vld [vmem:[%s165 + $0x34] sm:$0xf]
      %v719 = vld [vmem:[%s165 + $0x38] sm:$0x1]
      %v720 = vld [vmem:[%s165 + $0x3c] sm:$0xf]
      %v721 = vld [vmem:[%s165 + $0x40] sm:$0xf]
      %v722 = vld [vmem:[%s165 + $0x44] sm:$0x1]
      %v723 = vld [vmem:[%s165 + $0x48] sm:$0xf]
      %v724 = vld [vmem:[%s165 + $0x4c] sm:$0xf]
      %v725 = vld [vmem:[%s165 + $0x50] sm:$0x1]
      %v726 = vld [vmem:[%s165 + $0x54] sm:$0xf]
      %v727 = vld [vmem:[%s165 + $0x58] sm:$0xf]
      %v728 = vld [vmem:[%s165 + $0x5c] sm:$0x1]
      %v729 = vld [vmem:[%s165 + $0x60] sm:$0xf]
      %v730 = vld [vmem:[%s165 + $0x64] sm:$0xf]
      %v731 = vld [vmem:[%s165 + $0x68] sm:$0x1]
      %v732 = vld [vmem:[%s165 + $0x6c] sm:$0xf]
      %v733 = vld [vmem:[%s165 + $0x70] sm:$0xf]
      %v734 = vld [vmem:[%s165 + $0x74] sm:$0x1]
      %v735 = vld [vmem:[%s165 + $0x78] sm:$0xf]
      %v736 = vld [vmem:[%s165 + $0x7c] sm:$0xf]
      %v737 = vld [vmem:[%s165 + $0x80] sm:$0x1]
      %v738 = vld [vmem:[%s165 + $0x84] sm:$0xf]
      %v739 = vld [vmem:[%s165 + $0x88] sm:$0xf]
      %v740 = vld [vmem:[%s165 + $0x8c] sm:$0x1]
      %v741 = vld [vmem:[%s165 + $0x90] sm:$0xf]
      %v742 = vld [vmem:[%s165 + $0x94] sm:$0xf]
      %v743 = vld [vmem:[%s165 + $0x98] sm:$0x1]
      %v744 = vld [vmem:[%s165 + $0x9c] sm:$0xf]
      %v745 = vld [vmem:[%s165 + $0xa0] sm:$0xf]
      %v746 = vld [vmem:[%s165 + $0xa4] sm:$0x1]
      %v747 = vld [vmem:[%s165 + $0xa8] sm:$0xf]
      %v748 = vld [vmem:[%s165 + $0xac] sm:$0xf]
      %v749 = vld [vmem:[%s165 + $0xb0] sm:$0x1]
      %v750 = vld [vmem:[%s165 + $0xb4] sm:$0xf]
      %v751 = vld [vmem:[%s165 + $0xb8] sm:$0xf]
      %v752 = vld [vmem:[%s165 + $0xbc] sm:$0x1]
      %v753 = vmax.bf16 %v705, 0
      %v754 = vmax.bf16 %v706, 0
      %v755 = vmax.bf16 %v707, 0
      %v756 = vmax.bf16 %v708, 0
      %v757 = vmax.bf16 %v709, 0
      %v758 = vmax.bf16 %v710, 0
      %v759 = vmax.bf16 %v711, 0
      %v760 = vmax.bf16 %v712, 0
      %v761 = vmax.bf16 %v713, 0
      %v762 = vmax.bf16 %v714, 0
      %v763 = vmax.bf16 %v715, 0
      %v764 = vmax.bf16 %v716, 0
      %v765 = vmax.bf16 %v717, 0
      %v766 = vmax.bf16 %v718, 0
      %v767 = vmax.bf16 %v719, 0
      %v768 = vmax.bf16 %v720, 0
      %v769 = vmax.bf16 %v721, 0
      %v770 = vmax.bf16 %v722, 0
      %v771 = vmax.bf16 %v723, 0
      %v772 = vmax.bf16 %v724, 0
      %v773 = vmax.bf16 %v725, 0
      %v774 = vmax.bf16 %v726, 0
      %v775 = vmax.bf16 %v727, 0
      %v776 = vmax.bf16 %v728, 0
      %v777 = vmax.bf16 %v729, 0
      %v778 = vmax.bf16 %v730, 0
      %v779 = vmax.bf16 %v731, 0
      %v780 = vmax.bf16 %v732, 0
      %v781 = vmax.bf16 %v733, 0
      %v782 = vmax.bf16 %v734, 0
      %v783 = vmax.bf16 %v735, 0
      %v784 = vmax.bf16 %v736, 0
      %v785 = vmax.bf16 %v737, 0
      %v786 = vmax.bf16 %v738, 0
      %v787 = vmax.bf16 %v739, 0
      %v788 = vmax.bf16 %v740, 0
      %v789 = vmax.bf16 %v741, 0
      %v790 = vmax.bf16 %v742, 0
      %v791 = vmax.bf16 %v743, 0
      %v792 = vmax.bf16 %v744, 0
      %v793 = vmax.bf16 %v745, 0
      %v794 = vmax.bf16 %v746, 0
      %v795 = vmax.bf16 %v747, 0
      %v796 = vmax.bf16 %v748, 0
      %v797 = vmax.bf16 %v749, 0
      %v798 = vmax.bf16 %v750, 0
      %v799 = vmax.bf16 %v751, 0
      %v800 = vmax.bf16 %v752, 0
      %v833 = vunpack.c.l.b16 %v753
      %v834 = vunpack.c.l.b16 %v754
      %v835 = vunpack.c.l.b16 %v756
      %v836 = vunpack.c.l.b16 %v757
      %v837 = vunpack.c.l.b16 %v759
      %v838 = vunpack.c.l.b16 %v760
      %v839 = vunpack.c.l.b16 %v762
      %v840 = vunpack.c.l.b16 %v763
      %v841 = vunpack.c.l.b16 %v765
      %v842 = vunpack.c.l.b16 %v766
      %v843 = vunpack.c.l.b16 %v768
      %v844 = vunpack.c.l.b16 %v769
      %v845 = vunpack.c.l.b16 %v771
      %v846 = vunpack.c.l.b16 %v772
      %v847 = vunpack.c.l.b16 %v774
      %v848 = vunpack.c.l.b16 %v775
      %v849 = vunpack.c.l.b16 %v777
      %v850 = vunpack.c.l.b16 %v778
      %v851 = vunpack.c.l.b16 %v780
      %v852 = vunpack.c.l.b16 %v781
      %v853 = vunpack.c.l.b16 %v783
      %v854 = vunpack.c.l.b16 %v784
      %v855 = vunpack.c.l.b16 %v786
      %v856 = vunpack.c.l.b16 %v787
      %v857 = vunpack.c.l.b16 %v789
      %v858 = vunpack.c.l.b16 %v790
      %v859 = vunpack.c.l.b16 %v792
      %v860 = vunpack.c.l.b16 %v793
      %v861 = vunpack.c.l.b16 %v795
      %v862 = vunpack.c.l.b16 %v796
      %v863 = vunpack.c.l.b16 %v798
      %v864 = vunpack.c.l.b16 %v799
      %v865 = vpack.c.b16 %v834, %v833
      %v866 = vpack.c.b16 %v836, %v835
      %v867 = vpack.c.b16 %v838, %v837
      %v868 = vpack.c.b16 %v840, %v839
      %v869 = vpack.c.b16 %v842, %v841
      %v870 = vpack.c.b16 %v844, %v843
      %v871 = vpack.c.b16 %v846, %v845
      %v872 = vpack.c.b16 %v848, %v847
      %v873 = vpack.c.b16 %v850, %v849
      %v874 = vpack.c.b16 %v852, %v851
      %v875 = vpack.c.b16 %v854, %v853
      %v876 = vpack.c.b16 %v856, %v855
      %v877 = vpack.c.b16 %v858, %v857
      %v878 = vpack.c.b16 %v860, %v859
      %v879 = vpack.c.b16 %v862, %v861
      %v880 = vpack.c.b16 %v864, %v863
      %v897 = vunpack.c.l.b16 %v755
      %v898 = vunpack.c.l.b16 %v758
      %v899 = vunpack.c.l.b16 %v761
      %v900 = vunpack.c.l.b16 %v764
      %v901 = vunpack.c.l.b16 %v767
      %v902 = vunpack.c.l.b16 %v770
      %v903 = vunpack.c.l.b16 %v773
      %v904 = vunpack.c.l.b16 %v776
      %v905 = vunpack.c.l.b16 %v779
      %v906 = vunpack.c.l.b16 %v782
      %v907 = vunpack.c.l.b16 %v785
      %v908 = vunpack.c.l.b16 %v788
      %v909 = vunpack.c.l.b16 %v791
      %v910 = vunpack.c.l.b16 %v794
      %v911 = vunpack.c.l.b16 %v797
      %v912 = vunpack.c.l.b16 %v800
      %v913 = vpack.c.b16 %v897, %v897
      %v914 = vpack.c.b16 %v898, %v898
      %v915 = vpack.c.b16 %v899, %v899
      %v916 = vpack.c.b16 %v900, %v900
      %v917 = vpack.c.b16 %v901, %v901
      %v918 = vpack.c.b16 %v902, %v902
      %v919 = vpack.c.b16 %v903, %v903
      %v920 = vpack.c.b16 %v904, %v904
      %v921 = vpack.c.b16 %v905, %v905
      %v922 = vpack.c.b16 %v906, %v906
      %v923 = vpack.c.b16 %v907, %v907
      %v924 = vpack.c.b16 %v908, %v908
      %v925 = vpack.c.b16 %v909, %v909
      %v926 = vpack.c.b16 %v910, %v910
      %v927 = vpack.c.b16 %v911, %v911
      %v928 = vpack.c.b16 %v912, %v912
      %vm929 = vsmask.f32 7424
      %v931 = vshrl.u32 %v865, 16
      %v933 = vshll.u32 %v865, 16
      %v935 = vrot.slane %v933, 1
      %v936 = vor.u32 %v931, %v935
      %v938 = vshll.u32 %v913, 16
      %v940 = vrot.slane %v938, 1
      %v941 = vsel %vm929, %v936, %v940
      %v943 = vshrl.u32 %v866, 16
      %v945 = vshll.u32 %v866, 16
      %v947 = vrot.slane %v945, 1
      %v948 = vor.u32 %v943, %v947
      %v950 = vshll.u32 %v914, 16
      %v952 = vrot.slane %v950, 1
      %v953 = vsel %vm929, %v948, %v952
      %v955 = vshrl.u32 %v867, 16
      %v957 = vshll.u32 %v867, 16
      %v959 = vrot.slane %v957, 1
      %v960 = vor.u32 %v955, %v959
      %v962 = vshll.u32 %v915, 16
      %v964 = vrot.slane %v962, 1
      %v965 = vsel %vm929, %v960, %v964
      %v967 = vshrl.u32 %v868, 16
      %v969 = vshll.u32 %v868, 16
      %v971 = vrot.slane %v969, 1
      %v972 = vor.u32 %v967, %v971
      %v974 = vshll.u32 %v916, 16
      %v976 = vrot.slane %v974, 1
      %v977 = vsel %vm929, %v972, %v976
      %v979 = vshrl.u32 %v869, 16
      %v981 = vshll.u32 %v869, 16
      %v983 = vrot.slane %v981, 1
      %v984 = vor.u32 %v979, %v983
      %v986 = vshll.u32 %v917, 16
      %v988 = vrot.slane %v986, 1
      %v989 = vsel %vm929, %v984, %v988
      %v991 = vshrl.u32 %v870, 16
      %v993 = vshll.u32 %v870, 16
      %v995 = vrot.slane %v993, 1
      %v996 = vor.u32 %v991, %v995
      %v998 = vshll.u32 %v918, 16
      %v1000 = vrot.slane %v998, 1
      %v1001 = vsel %vm929, %v996, %v1000
      %v1003 = vshrl.u32 %v871, 16
      %v1005 = vshll.u32 %v871, 16
      %v1007 = vrot.slane %v1005, 1
      %v1008 = vor.u32 %v1003, %v1007
      %v1010 = vshll.u32 %v919, 16
      %v1012 = vrot.slane %v1010, 1
      %v1013 = vsel %vm929, %v1008, %v1012
      %v1015 = vshrl.u32 %v872, 16
      %v1017 = vshll.u32 %v872, 16
      %v1019 = vrot.slane %v1017, 1
      %v1020 = vor.u32 %v1015, %v1019
      %v1022 = vshll.u32 %v920, 16
      %v1024 = vrot.slane %v1022, 1
      %v1025 = vsel %vm929, %v1020, %v1024
      %v1027 = vshrl.u32 %v873, 16
      %v1029 = vshll.u32 %v873, 16
      %v1031 = vrot.slane %v1029, 1
      %v1032 = vor.u32 %v1027, %v1031
      %v1034 = vshll.u32 %v921, 16
      %v1036 = vrot.slane %v1034, 1
      %v1037 = vsel %vm929, %v1032, %v1036
      %v1039 = vshrl.u32 %v874, 16
      %v1041 = vshll.u32 %v874, 16
      %v1043 = vrot.slane %v1041, 1
      %v1044 = vor.u32 %v1039, %v1043
      %v1046 = vshll.u32 %v922, 16
      %v1048 = vrot.slane %v1046, 1
      %v1049 = vsel %vm929, %v1044, %v1048
      %v1051 = vshrl.u32 %v875, 16
      %v1053 = vshll.u32 %v875, 16
      %v1055 = vrot.slane %v1053, 1
      %v1056 = vor.u32 %v1051, %v1055
      %v1058 = vshll.u32 %v923, 16
      %v1060 = vrot.slane %v1058, 1
      %v1061 = vsel %vm929, %v1056, %v1060
      %v1063 = vshrl.u32 %v876, 16
      %v1065 = vshll.u32 %v876, 16
      %v1067 = vrot.slane %v1065, 1
      %v1068 = vor.u32 %v1063, %v1067
      %v1070 = vshll.u32 %v924, 16
      %v1072 = vrot.slane %v1070, 1
      %v1073 = vsel %vm929, %v1068, %v1072
      %v1075 = vshrl.u32 %v877, 16
      %v1077 = vshll.u32 %v877, 16
      %v1079 = vrot.slane %v1077, 1
      %v1080 = vor.u32 %v1075, %v1079
      %v1082 = vshll.u32 %v925, 16
      %v1084 = vrot.slane %v1082, 1
      %v1085 = vsel %vm929, %v1080, %v1084
      %v1087 = vshrl.u32 %v878, 16
      %v1089 = vshll.u32 %v878, 16
      %v1091 = vrot.slane %v1089, 1
      %v1092 = vor.u32 %v1087, %v1091
      %v1094 = vshll.u32 %v926, 16
      %v1096 = vrot.slane %v1094, 1
      %v1097 = vsel %vm929, %v1092, %v1096
      %v1099 = vshrl.u32 %v879, 16
      %v1101 = vshll.u32 %v879, 16
      %v1103 = vrot.slane %v1101, 1
      %v1104 = vor.u32 %v1099, %v1103
      %v1106 = vshll.u32 %v927, 16
      %v1108 = vrot.slane %v1106, 1
      %v1109 = vsel %vm929, %v1104, %v1108
      %v1111 = vshrl.u32 %v880, 16
      %v1113 = vshll.u32 %v880, 16
      %v1115 = vrot.slane %v1113, 1
      %v1116 = vor.u32 %v1111, %v1115
      %v1118 = vshll.u32 %v928, 16
      %v1120 = vrot.slane %v1118, 1
      %v1121 = vsel %vm929, %v1116, %v1120
      %1122 = vrot.lane.b32.xlu0 %v941, 4
      %v1123 = vpop.permute.xlu0 %1122
      %1124 = vrot.lane.b32.xlu0 %v953, 4
      %v1125 = vpop.permute.xlu0 %1124
      %1126 = vrot.lane.b32.xlu0 %v965, 4
      %v1127 = vpop.permute.xlu0 %1126
      %1128 = vrot.lane.b32.xlu0 %v977, 4
      %v1129 = vpop.permute.xlu0 %1128
      %1130 = vrot.lane.b32.xlu0 %v989, 4
      %v1131 = vpop.permute.xlu0 %1130
      %1132 = vrot.lane.b32.xlu0 %v1001, 4
      %v1133 = vpop.permute.xlu0 %1132
      %1134 = vrot.lane.b32.xlu0 %v1013, 4
      %v1135 = vpop.permute.xlu0 %1134
      %1136 = vrot.lane.b32.xlu0 %v1025, 4
      %v1137 = vpop.permute.xlu0 %1136
      %1138 = vrot.lane.b32.xlu0 %v1037, 4
      %v1139 = vpop.permute.xlu0 %1138
      %1140 = vrot.lane.b32.xlu0 %v1049, 4
      %v1141 = vpop.permute.xlu0 %1140
      %1142 = vrot.lane.b32.xlu0 %v1061, 4
      %v1143 = vpop.permute.xlu0 %1142
      %1144 = vrot.lane.b32.xlu0 %v1073, 4
      %v1145 = vpop.permute.xlu0 %1144
      %1146 = vrot.lane.b32.xlu0 %v1085, 4
      %v1147 = vpop.permute.xlu0 %1146
      %1148 = vrot.lane.b32.xlu0 %v1097, 4
      %v1149 = vpop.permute.xlu0 %1148
      %1150 = vrot.lane.b32.xlu0 %v1109, 4
      %v1151 = vpop.permute.xlu0 %1150
      %1152 = vrot.lane.b32.xlu0 %v1121, 4
      %v1153 = vpop.permute.xlu0 %1152
      %vm1154 = vcmask 1046528
      %v1155 = vrot.slane %v865, 1
      %v1156 = vrot.slane %v913, 1
      %v1157 = vsel %vm1154, %v1155, %v1156
      %v1158 = vrot.slane %v866, 1
      %v1159 = vrot.slane %v914, 1
      %v1160 = vsel %vm1154, %v1158, %v1159
      %v1161 = vrot.slane %v867, 1
      %v1162 = vrot.slane %v915, 1
      %v1163 = vsel %vm1154, %v1161, %v1162
      %v1164 = vrot.slane %v868, 1
      %v1165 = vrot.slane %v916, 1
      %v1166 = vsel %vm1154, %v1164, %v1165
      %v1167 = vrot.slane %v869, 1
      %v1168 = vrot.slane %v917, 1
      %v1169 = vsel %vm1154, %v1167, %v1168
      %v1170 = vrot.slane %v870, 1
      %v1171 = vrot.slane %v918, 1
      %v1172 = vsel %vm1154, %v1170, %v1171
      %v1173 = vrot.slane %v871, 1
      %v1174 = vrot.slane %v919, 1
      %v1175 = vsel %vm1154, %v1173, %v1174
      %v1176 = vrot.slane %v872, 1
      %v1177 = vrot.slane %v920, 1
      %v1178 = vsel %vm1154, %v1176, %v1177
      %v1179 = vrot.slane %v873, 1
      %v1180 = vrot.slane %v921, 1
      %v1181 = vsel %vm1154, %v1179, %v1180
      %v1182 = vrot.slane %v874, 1
      %v1183 = vrot.slane %v922, 1
      %v1184 = vsel %vm1154, %v1182, %v1183
      %v1185 = vrot.slane %v875, 1
      %v1186 = vrot.slane %v923, 1
      %v1187 = vsel %vm1154, %v1185, %v1186
      %v1188 = vrot.slane %v876, 1
      %v1189 = vrot.slane %v924, 1
      %v1190 = vsel %vm1154, %v1188, %v1189
      %v1191 = vrot.slane %v877, 1
      %v1192 = vrot.slane %v925, 1
      %v1193 = vsel %vm1154, %v1191, %v1192
      %v1194 = vrot.slane %v878, 1
      %v1195 = vrot.slane %v926, 1
      %v1196 = vsel %vm1154, %v1194, %v1195
      %v1197 = vrot.slane %v879, 1
      %v1198 = vrot.slane %v927, 1
      %v1199 = vsel %vm1154, %v1197, %v1198
      %v1200 = vrot.slane %v880, 1
      %v1201 = vrot.slane %v928, 1
      %v1202 = vsel %vm1154, %v1200, %v1201
      %1203 = vrot.lane.b32.xlu0 %v1157, 8
      %v1204 = vpop.permute.xlu0 %1203
      %1205 = vrot.lane.b32.xlu0 %v1160, 8
      %v1206 = vpop.permute.xlu0 %1205
      %1207 = vrot.lane.b32.xlu0 %v1163, 8
      %v1208 = vpop.permute.xlu0 %1207
      %1209 = vrot.lane.b32.xlu0 %v1166, 8
      %v1210 = vpop.permute.xlu0 %1209
      %1211 = vrot.lane.b32.xlu0 %v1169, 8
      %v1212 = vpop.permute.xlu0 %1211
      %1213 = vrot.lane.b32.xlu0 %v1172, 8
      %v1214 = vpop.permute.xlu0 %1213
      %1215 = vrot.lane.b32.xlu0 %v1175, 8
      %v1216 = vpop.permute.xlu0 %1215
      %1217 = vrot.lane.b32.xlu0 %v1178, 8
      %v1218 = vpop.permute.xlu0 %1217
      %1219 = vrot.lane.b32.xlu0 %v1181, 8
      %v1220 = vpop.permute.xlu0 %1219
      %1221 = vrot.lane.b32.xlu0 %v1184, 8
      %v1222 = vpop.permute.xlu0 %1221
      %1223 = vrot.lane.b32.xlu0 %v1187, 8
      %v1224 = vpop.permute.xlu0 %1223
      %1225 = vrot.lane.b32.xlu0 %v1190, 8
      %v1226 = vpop.permute.xlu0 %1225
      %1227 = vrot.lane.b32.xlu0 %v1193, 8
      %v1228 = vpop.permute.xlu0 %1227
      %1229 = vrot.lane.b32.xlu0 %v1196, 8
      %v1230 = vpop.permute.xlu0 %1229
      %1231 = vrot.lane.b32.xlu0 %v1199, 8
      %v1232 = vpop.permute.xlu0 %1231
      %1233 = vrot.lane.b32.xlu0 %v1202, 8
      %v1234 = vpop.permute.xlu0 %1233
      %v1236 = vsel %vm672, %v865, %v1123
      %v1238 = vsel %vm672, %v866, %v1125
      %v1240 = vsel %vm672, %v867, %v1127
      %v1242 = vsel %vm672, %v868, %v1129
      %v1244 = vsel %vm672, %v869, %v1131
      %v1246 = vsel %vm672, %v870, %v1133
      %v1248 = vsel %vm672, %v871, %v1135
      %v1250 = vsel %vm672, %v872, %v1137
      %v1252 = vsel %vm672, %v873, %v1139
      %v1254 = vsel %vm672, %v874, %v1141
      %v1256 = vsel %vm672, %v875, %v1143
      %v1258 = vsel %vm672, %v876, %v1145
      %v1260 = vsel %vm672, %v877, %v1147
      %v1262 = vsel %vm672, %v878, %v1149
      %v1264 = vsel %vm672, %v879, %v1151
      %v1266 = vsel %vm672, %v880, %v1153
      %vm1267 = vcmask 64512
      %v1269 = vsel %vm1267, %v1236, %v1204
      %v1271 = vsel %vm1267, %v1238, %v1206
      %v1273 = vsel %vm1267, %v1240, %v1208
      %v1275 = vsel %vm1267, %v1242, %v1210
      %v1277 = vsel %vm1267, %v1244, %v1212
      %v1279 = vsel %vm1267, %v1246, %v1214
      %v1281 = vsel %vm1267, %v1248, %v1216
      %v1283 = vsel %vm1267, %v1250, %v1218
      %v1285 = vsel %vm1267, %v1252, %v1220
      %v1287 = vsel %vm1267, %v1254, %v1222
      %v1289 = vsel %vm1267, %v1256, %v1224
      %v1291 = vsel %vm1267, %v1258, %v1226
      %v1293 = vsel %vm1267, %v1260, %v1228
      %v1295 = vsel %vm1267, %v1262, %v1230
      %v1297 = vsel %vm1267, %v1264, %v1232
      %v1299 = vsel %vm1267, %v1266, %v1234
      %v1300 = vld [vmem:[%s1] sm:$0xf]
      %v1301 = vld [vmem:[%s1 + $0x4] sm:$0x3]
      %v1304 = vunpack.c.l.b16 %v1300
      %v1305 = vunpack.c.l.b16 %v1301
      %v1306 = vpack.c.b16 %v1305, %v1304
      %vm1307 = vcmask 97280
      %v1308 = vsel %vm1307, %v1269, 0
      %v1310 = vsel %vm1307, %v1271, 0
      %v1312 = vsel %vm1307, %v1273, 0
      %v1314 = vsel %vm1307, %v1275, 0
      %v1316 = vsel %vm1307, %v1277, 0
      %v1318 = vsel %vm1307, %v1279, 0
      %v1320 = vsel %vm1307, %v1281, 0
      %v1322 = vsel %vm1307, %v1283, 0
      %v1324 = vsel %vm1307, %v1285, 0
      %v1326 = vsel %vm1307, %v1287, 0
      %v1328 = vsel %vm1307, %v1289, 0
      %v1330 = vsel %vm1307, %v1291, 0
      %v1332 = vsel %vm1307, %v1293, 0
      %v1334 = vsel %vm1307, %v1295, 0
      %v1336 = vsel %vm1307, %v1297, 0
      %v1338 = vsel %vm1307, %v1299, 0
      %vm1340 = vcmask 1045504
      %v1342 = vsel %vm1340, %v1306, 0
      %1344 = vmatprep.subr.bf16.mxu0 0
      %1345 = vmatpush1.bf16.msra.mxu0 0
      %1346 = vmatprep.subr.bf16.mxu0 0
      %1347 = vmatpush1.bf16.msra.mxu0 0
      %1348 = vmatprep.subr.bf16.mxu0 0
      %1349 = vmatpush1.bf16.msra.mxu0 0
      %1350 = vmatprep.subr.bf16.mxu0 0
      %1351 = vmatpush1.bf16.msra.mxu0 0
      %1352 = vmatprep.subr.bf16.mxu0 0
      %1353 = vmatpush1.bf16.msra.mxu0 0
      %1354 = vmatprep.subr.bf16.mxu0 0
      %1355 = vmatpush1.bf16.msra.mxu0 0
      %1356 = vmatprep.subr.bf16.mxu0 0
      %1357 = vmatpush1.bf16.msra.mxu0 0
      %1358 = vmatprep.subr.bf16.mxu0 0
      %1359 = vmatpush1.bf16.msra.mxu0 %v1342
      %1360 = vmatprep.subr.bf16.mxu0 0
      %1361 = vmatpush2.bf16.msra.mxu0 0
      %1362 = vmatprep.subr.bf16.mxu0 0
      %1363 = vmatpush2.bf16.msra.mxu0 0
      %1364 = vmatprep.subr.bf16.mxu0 0
      %1365 = vmatpush2.bf16.msra.mxu0 0
      %1366 = vmatprep.subr.bf16.mxu0 0
      %1367 = vmatpush2.bf16.msra.mxu0 0
      %1368 = vmatprep.subr.bf16.mxu0 0
      %1369 = vmatpush2.bf16.msra.mxu0 0
      %1370 = vmatprep.subr.bf16.mxu0 0
      %1371 = vmatpush2.bf16.msra.mxu0 0
      %1372 = vmatprep.subr.bf16.mxu0 0
      %1373 = vmatpush2.bf16.msra.mxu0 0
      %1374 = vmatprep.subr.bf16.mxu0 0
      %1375 = vmatpush2.bf16.msra.mxu0 0
      %1376 = vmatprep.mubr.bf16.mxu0 0
      %1377 = vmatmul.mubr.bf16.gmra.mxu0 %v1308
      %v1378 = vpop.f32.mrf.mxu0
      %v1379 = vadd.f32 0.0, %v1378
      %v1380 = vpop.f32.mrf.mxu0
      %v1381 = vpop.f32.mrf.mxu0
      %v1382 = vadd.f32 0.0, %v1381
      %v1383 = vpop.f32.mrf.mxu0
      %1384 = vmatprep.mubr.bf16.mxu0 0
      %1385 = vmatmul.mubr.bf16.gmra.mxu0 %v1310
      %v1386 = vpop.f32.mrf.mxu0
      %v1387 = vadd.f32 0.0, %v1386
      %v1388 = vpop.f32.mrf.mxu0
      %v1389 = vpop.f32.mrf.mxu0
      %v1390 = vadd.f32 0.0, %v1389
      %v1391 = vpop.f32.mrf.mxu0
      %1392 = vmatprep.mubr.bf16.mxu0 0
      %1393 = vmatmul.mubr.bf16.gmra.mxu0 %v1312
      %v1394 = vpop.f32.mrf.mxu0
      %v1395 = vadd.f32 0.0, %v1394
      %v1396 = vpop.f32.mrf.mxu0
      %v1397 = vpop.f32.mrf.mxu0
      %v1398 = vadd.f32 0.0, %v1397
      %v1399 = vpop.f32.mrf.mxu0
      %1400 = vmatprep.mubr.bf16.mxu0 0
      %1401 = vmatmul.mubr.bf16.gmra.mxu0 %v1314
      %v1402 = vpop.f32.mrf.mxu0
      %v1403 = vadd.f32 0.0, %v1402
      %v1404 = vpop.f32.mrf.mxu0
      %v1405 = vpop.f32.mrf.mxu0
      %v1406 = vadd.f32 0.0, %v1405
      %v1407 = vpop.f32.mrf.mxu0
      %1408 = vmatprep.mubr.bf16.mxu0 0
      %1409 = vmatmul.mubr.bf16.gmra.mxu0 %v1316
      %v1410 = vpop.f32.mrf.mxu0
      %v1411 = vadd.f32 0.0, %v1410
      %v1412 = vpop.f32.mrf.mxu0
      %v1413 = vpop.f32.mrf.mxu0
      %v1414 = vadd.f32 0.0, %v1413
      %v1415 = vpop.f32.mrf.mxu0
      %1416 = vmatprep.mubr.bf16.mxu0 0
      %1417 = vmatmul.mubr.bf16.gmra.mxu0 %v1318
      %v1418 = vpop.f32.mrf.mxu0
      %v1419 = vadd.f32 0.0, %v1418
      %v1420 = vpop.f32.mrf.mxu0
      %v1421 = vpop.f32.mrf.mxu0
      %v1422 = vadd.f32 0.0, %v1421
      %v1423 = vpop.f32.mrf.mxu0
      %1424 = vmatprep.mubr.bf16.mxu0 0
      %1425 = vmatmul.mubr.bf16.gmra.mxu0 %v1320
      %v1426 = vpop.f32.mrf.mxu0
      %v1427 = vadd.f32 0.0, %v1426
      %v1428 = vpop.f32.mrf.mxu0
      %v1429 = vpop.f32.mrf.mxu0
      %v1430 = vadd.f32 0.0, %v1429
      %v1431 = vpop.f32.mrf.mxu0
      %1432 = vmatprep.mubr.bf16.mxu0 0
      %1433 = vmatmul.mubr.bf16.gmra.mxu0 %v1322
      %v1434 = vpop.f32.mrf.mxu0
      %v1435 = vadd.f32 0.0, %v1434
      %v1436 = vpop.f32.mrf.mxu0
      %v1437 = vpop.f32.mrf.mxu0
      %v1438 = vadd.f32 0.0, %v1437
      %v1439 = vpop.f32.mrf.mxu0
      %1440 = vmatprep.mubr.bf16.mxu0 0
      %1441 = vmatmul.mubr.bf16.gmra.mxu0 %v1324
      %v1442 = vpop.f32.mrf.mxu0
      %v1443 = vadd.f32 0.0, %v1442
      %v1444 = vpop.f32.mrf.mxu0
      %v1445 = vpop.f32.mrf.mxu0
      %v1446 = vadd.f32 0.0, %v1445
      %v1447 = vpop.f32.mrf.mxu0
      %1448 = vmatprep.mubr.bf16.mxu0 0
      %1449 = vmatmul.mubr.bf16.gmra.mxu0 %v1326
      %v1450 = vpop.f32.mrf.mxu0
      %v1451 = vadd.f32 0.0, %v1450
      %v1452 = vpop.f32.mrf.mxu0
      %v1453 = vpop.f32.mrf.mxu0
      %v1454 = vadd.f32 0.0, %v1453
      %v1455 = vpop.f32.mrf.mxu0
      %1456 = vmatprep.mubr.bf16.mxu0 0
      %1457 = vmatmul.mubr.bf16.gmra.mxu0 %v1328
      %v1458 = vpop.f32.mrf.mxu0
      %v1459 = vadd.f32 0.0, %v1458
      %v1460 = vpop.f32.mrf.mxu0
      %v1461 = vpop.f32.mrf.mxu0
      %v1462 = vadd.f32 0.0, %v1461
      %v1463 = vpop.f32.mrf.mxu0
      %1464 = vmatprep.mubr.bf16.mxu0 0
      %1465 = vmatmul.mubr.bf16.gmra.mxu0 %v1330
      %v1466 = vpop.f32.mrf.mxu0
      %v1467 = vadd.f32 0.0, %v1466
      %v1468 = vpop.f32.mrf.mxu0
      %v1469 = vpop.f32.mrf.mxu0
      %v1470 = vadd.f32 0.0, %v1469
      %v1471 = vpop.f32.mrf.mxu0
      %1472 = vmatprep.mubr.bf16.mxu0 0
      %1473 = vmatmul.mubr.bf16.gmra.mxu0 %v1332
      %v1474 = vpop.f32.mrf.mxu0
      %v1475 = vadd.f32 0.0, %v1474
      %v1476 = vpop.f32.mrf.mxu0
      %v1477 = vpop.f32.mrf.mxu0
      %v1478 = vadd.f32 0.0, %v1477
      %v1479 = vpop.f32.mrf.mxu0
      %1480 = vmatprep.mubr.bf16.mxu0 0
      %1481 = vmatmul.mubr.bf16.gmra.mxu0 %v1334
      %v1482 = vpop.f32.mrf.mxu0
      %v1483 = vadd.f32 0.0, %v1482
      %v1484 = vpop.f32.mrf.mxu0
      %v1485 = vpop.f32.mrf.mxu0
      %v1486 = vadd.f32 0.0, %v1485
      %v1487 = vpop.f32.mrf.mxu0
      %1488 = vmatprep.mubr.bf16.mxu0 0
      %1489 = vmatmul.mubr.bf16.gmra.mxu0 %v1336
      %v1490 = vpop.f32.mrf.mxu0
      %v1491 = vadd.f32 0.0, %v1490
      %v1492 = vpop.f32.mrf.mxu0
      %v1493 = vpop.f32.mrf.mxu0
      %v1494 = vadd.f32 0.0, %v1493
      %v1495 = vpop.f32.mrf.mxu0
      %1496 = vmatprep.mubr.bf16.mxu0 0
      %1497 = vmatmul.mubr.bf16.gmra.mxu0 %v1338
      %v1498 = vpop.f32.mrf.mxu0
      %v1499 = vadd.f32 0.0, %v1498
      %v1500 = vpop.f32.mrf.mxu0
      %v1501 = vpop.f32.mrf.mxu0
      %v1502 = vadd.f32 0.0, %v1501
      %v1503 = vpop.f32.mrf.mxu0
      %1504 = vdwg.mxu0
      %1505 = vst.msk [vmem:[#allocation2] sm:$0xff] %vm672, %v1379
      %1506 = vst.msk [vmem:[#allocation2 + $0x8] sm:$0xff] %vm672, %v1382
      %1507 = vst.msk [vmem:[#allocation2 + $0x10] sm:$0xff] %vm672, %v1387
      %1508 = vst.msk [vmem:[#allocation2 + $0x18] sm:$0xff] %vm672, %v1390
      %1509 = vst.msk [vmem:[#allocation2 + $0x20] sm:$0xff] %vm672, %v1395
      %1510 = vst.msk [vmem:[#allocation2 + $0x28] sm:$0xff] %vm672, %v1398
      %1511 = vst.msk [vmem:[#allocation2 + $0x30] sm:$0xff] %vm672, %v1403
      %1512 = vst.msk [vmem:[#allocation2 + $0x38] sm:$0xff] %vm672, %v1406
      %1513 = vst.msk [vmem:[#allocation2 + $0x40] sm:$0xff] %vm672, %v1411
      %1514 = vst.msk [vmem:[#allocation2 + $0x48] sm:$0xff] %vm672, %v1414
      %1515 = vst.msk [vmem:[#allocation2 + $0x50] sm:$0xff] %vm672, %v1419
      %1516 = vst.msk [vmem:[#allocation2 + $0x58] sm:$0xff] %vm672, %v1422
      %1517 = vst.msk [vmem:[#allocation2 + $0x60] sm:$0xff] %vm672, %v1427
      %1518 = vst.msk [vmem:[#allocation2 + $0x68] sm:$0xff] %vm672, %v1430
      %1519 = vst.msk [vmem:[#allocation2 + $0x70] sm:$0xff] %vm672, %v1435
      %1520 = vst.msk [vmem:[#allocation2 + $0x78] sm:$0xff] %vm672, %v1438
      %1521 = vst.msk [vmem:[#allocation2 + $0x80] sm:$0xff] %vm672, %v1443
      %1522 = vst.msk [vmem:[#allocation2 + $0x88] sm:$0xff] %vm672, %v1446
      %1523 = vst.msk [vmem:[#allocation2 + $0x90] sm:$0xff] %vm672, %v1451
      %1524 = vst.msk [vmem:[#allocation2 + $0x98] sm:$0xff] %vm672, %v1454
      %1525 = vst.msk [vmem:[#allocation2 + $0xa0] sm:$0xff] %vm672, %v1459
      %1526 = vst.msk [vmem:[#allocation2 + $0xa8] sm:$0xff] %vm672, %v1462
      %1527 = vst.msk [vmem:[#allocation2 + $0xb0] sm:$0xff] %vm672, %v1467
      %1528 = vst.msk [vmem:[#allocation2 + $0xb8] sm:$0xff] %vm672, %v1470
      %1529 = vst.msk [vmem:[#allocation2 + $0xc0] sm:$0xff] %vm672, %v1475
      %1530 = vst.msk [vmem:[#allocation2 + $0xc8] sm:$0xff] %vm672, %v1478
      %1531 = vst.msk [vmem:[#allocation2 + $0xd0] sm:$0xff] %vm672, %v1483
      %1532 = vst.msk [vmem:[#allocation2 + $0xd8] sm:$0xff] %vm672, %v1486
      %1533 = vst.msk [vmem:[#allocation2 + $0xe0] sm:$0xff] %vm672, %v1491
      %1534 = vst.msk [vmem:[#allocation2 + $0xe8] sm:$0xff] %vm672, %v1494
      %1535 = vst.msk [vmem:[#allocation2 + $0xf0] sm:$0xff] %vm672, %v1499
      %1536 = vst.msk [vmem:[#allocation2 + $0xf8] sm:$0xff] %vm672, %v1502
      %v1537 = vld [vmem:[%s172] sm:$0xf]
      %v1538 = vld [vmem:[%s172 + $0x4] sm:$0xf]
      %v1539 = vld [vmem:[%s172 + $0x8] sm:$0x1]
      %v1540 = vld [vmem:[%s172 + $0xc] sm:$0xf]
      %v1541 = vld [vmem:[%s172 + $0x10] sm:$0xf]
      %v1542 = vld [vmem:[%s172 + $0x14] sm:$0x1]
      %v1543 = vld [vmem:[%s172 + $0x18] sm:$0xf]
      %v1544 = vld [vmem:[%s172 + $0x1c] sm:$0xf]
      %v1545 = vld [vmem:[%s172 + $0x20] sm:$0x1]
      %v1546 = vld [vmem:[%s172 + $0x24] sm:$0xf]
      %v1547 = vld [vmem:[%s172 + $0x28] sm:$0xf]
      %v1548 = vld [vmem:[%s172 + $0x2c] sm:$0x1]
      %v1549 = vld [vmem:[%s172 + $0x30] sm:$0xf]
      %v1550 = vld [vmem:[%s172 + $0x34] sm:$0xf]
      %v1551 = vld [vmem:[%s172 + $0x38] sm:$0x1]
      %v1552 = vld [vmem:[%s172 + $0x3c] sm:$0xf]
      %v1553 = vld [vmem:[%s172 + $0x40] sm:$0xf]
      %v1554 = vld [vmem:[%s172 + $0x44] sm:$0x1]
      %v1555 = vld [vmem:[%s172 + $0x48] sm:$0xf]
      %v1556 = vld [vmem:[%s172 + $0x4c] sm:$0xf]
      %v1557 = vld [vmem:[%s172 + $0x50] sm:$0x1]
      %v1558 = vld [vmem:[%s172 + $0x54] sm:$0xf]
      %v1559 = vld [vmem:[%s172 + $0x58] sm:$0xf]
      %v1560 = vld [vmem:[%s172 + $0x5c] sm:$0x1]
      %v1561 = vld [vmem:[%s172 + $0x60] sm:$0xf]
      %v1562 = vld [vmem:[%s172 + $0x64] sm:$0xf]
      %v1563 = vld [vmem:[%s172 + $0x68] sm:$0x1]
      %v1564 = vld [vmem:[%s172 + $0x6c] sm:$0xf]
      %v1565 = vld [vmem:[%s172 + $0x70] sm:$0xf]
      %v1566 = vld [vmem:[%s172 + $0x74] sm:$0x1]
      %v1567 = vld [vmem:[%s172 + $0x78] sm:$0xf]
      %v1568 = vld [vmem:[%s172 + $0x7c] sm:$0xf]
      %v1569 = vld [vmem:[%s172 + $0x80] sm:$0x1]
      %v1570 = vld [vmem:[%s172 + $0x84] sm:$0xf]
      %v1571 = vld [vmem:[%s172 + $0x88] sm:$0xf]
      %v1572 = vld [vmem:[%s172 + $0x8c] sm:$0x1]
      %v1573 = vld [vmem:[%s172 + $0x90] sm:$0xf]
      %v1574 = vld [vmem:[%s172 + $0x94] sm:$0xf]
      %v1575 = vld [vmem:[%s172 + $0x98] sm:$0x1]
      %v1576 = vld [vmem:[%s172 + $0x9c] sm:$0xf]
      %v1577 = vld [vmem:[%s172 + $0xa0] sm:$0xf]
      %v1578 = vld [vmem:[%s172 + $0xa4] sm:$0x1]
      %v1579 = vld [vmem:[%s172 + $0xa8] sm:$0xf]
      %v1580 = vld [vmem:[%s172 + $0xac] sm:$0xf]
      %v1581 = vld [vmem:[%s172 + $0xb0] sm:$0x1]
      %v1582 = vld [vmem:[%s172 + $0xb4] sm:$0xf]
      %v1583 = vld [vmem:[%s172 + $0xb8] sm:$0xf]
      %v1584 = vld [vmem:[%s172 + $0xbc] sm:$0x1]
      %v1585 = vmax.bf16 %v1537, 0
      %v1586 = vmax.bf16 %v1538, 0
      %v1587 = vmax.bf16 %v1539, 0
      %v1588 = vmax.bf16 %v1540, 0
      %v1589 = vmax.bf16 %v1541, 0
      %v1590 = vmax.bf16 %v1542, 0
      %v1591 = vmax.bf16 %v1543, 0
      %v1592 = vmax.bf16 %v1544, 0
      %v1593 = vmax.bf16 %v1545, 0
      %v1594 = vmax.bf16 %v1546, 0
      %v1595 = vmax.bf16 %v1547, 0
      %v1596 = vmax.bf16 %v1548, 0
      %v1597 = vmax.bf16 %v1549, 0
      %v1598 = vmax.bf16 %v1550, 0
      %v1599 = vmax.bf16 %v1551, 0
      %v1600 = vmax.bf16 %v1552, 0
      %v1601 = vmax.bf16 %v1553, 0
      %v1602 = vmax.bf16 %v1554, 0
      %v1603 = vmax.bf16 %v1555, 0
      %v1604 = vmax.bf16 %v1556, 0
      %v1605 = vmax.bf16 %v1557, 0
      %v1606 = vmax.bf16 %v1558, 0
      %v1607 = vmax.bf16 %v1559, 0
      %v1608 = vmax.bf16 %v1560, 0
      %v1609 = vmax.bf16 %v1561, 0
      %v1610 = vmax.bf16 %v1562, 0
      %v1611 = vmax.bf16 %v1563, 0
      %v1612 = vmax.bf16 %v1564, 0
      %v1613 = vmax.bf16 %v1565, 0
      %v1614 = vmax.bf16 %v1566, 0
      %v1615 = vmax.bf16 %v1567, 0
      %v1616 = vmax.bf16 %v1568, 0
      %v1617 = vmax.bf16 %v1569, 0
      %v1618 = vmax.bf16 %v1570, 0
      %v1619 = vmax.bf16 %v1571, 0
      %v1620 = vmax.bf16 %v1572, 0
      %v1621 = vmax.bf16 %v1573, 0
      %v1622 = vmax.bf16 %v1574, 0
      %v1623 = vmax.bf16 %v1575, 0
      %v1624 = vmax.bf16 %v1576, 0
      %v1625 = vmax.bf16 %v1577, 0
      %v1626 = vmax.bf16 %v1578, 0
      %v1627 = vmax.bf16 %v1579, 0
      %v1628 = vmax.bf16 %v1580, 0
      %v1629 = vmax.bf16 %v1581, 0
      %v1630 = vmax.bf16 %v1582, 0
      %v1631 = vmax.bf16 %v1583, 0
      %v1632 = vmax.bf16 %v1584, 0
      %v1665 = vunpack.c.l.b16 %v1585
      %v1666 = vunpack.c.l.b16 %v1586
      %v1667 = vunpack.c.l.b16 %v1588
      %v1668 = vunpack.c.l.b16 %v1589
      %v1669 = vunpack.c.l.b16 %v1591
      %v1670 = vunpack.c.l.b16 %v1592
      %v1671 = vunpack.c.l.b16 %v1594
      %v1672 = vunpack.c.l.b16 %v1595
      %v1673 = vunpack.c.l.b16 %v1597
      %v1674 = vunpack.c.l.b16 %v1598
      %v1675 = vunpack.c.l.b16 %v1600
      %v1676 = vunpack.c.l.b16 %v1601
      %v1677 = vunpack.c.l.b16 %v1603
      %v1678 = vunpack.c.l.b16 %v1604
      %v1679 = vunpack.c.l.b16 %v1606
      %v1680 = vunpack.c.l.b16 %v1607
      %v1681 = vunpack.c.l.b16 %v1609
      %v1682 = vunpack.c.l.b16 %v1610
      %v1683 = vunpack.c.l.b16 %v1612
      %v1684 = vunpack.c.l.b16 %v1613
      %v1685 = vunpack.c.l.b16 %v1615
      %v1686 = vunpack.c.l.b16 %v1616
      %v1687 = vunpack.c.l.b16 %v1618
      %v1688 = vunpack.c.l.b16 %v1619
      %v1689 = vunpack.c.l.b16 %v1621
      %v1690 = vunpack.c.l.b16 %v1622
      %v1691 = vunpack.c.l.b16 %v1624
      %v1692 = vunpack.c.l.b16 %v1625
      %v1693 = vunpack.c.l.b16 %v1627
      %v1694 = vunpack.c.l.b16 %v1628
      %v1695 = vunpack.c.l.b16 %v1630
      %v1696 = vunpack.c.l.b16 %v1631
      %v1697 = vpack.c.b16 %v1666, %v1665
      %v1698 = vpack.c.b16 %v1668, %v1667
      %v1699 = vpack.c.b16 %v1670, %v1669
      %v1700 = vpack.c.b16 %v1672, %v1671
      %v1701 = vpack.c.b16 %v1674, %v1673
      %v1702 = vpack.c.b16 %v1676, %v1675
      %v1703 = vpack.c.b16 %v1678, %v1677
      %v1704 = vpack.c.b16 %v1680, %v1679
      %v1705 = vpack.c.b16 %v1682, %v1681
      %v1706 = vpack.c.b16 %v1684, %v1683
      %v1707 = vpack.c.b16 %v1686, %v1685
      %v1708 = vpack.c.b16 %v1688, %v1687
      %v1709 = vpack.c.b16 %v1690, %v1689
      %v1710 = vpack.c.b16 %v1692, %v1691
      %v1711 = vpack.c.b16 %v1694, %v1693
      %v1712 = vpack.c.b16 %v1696, %v1695
      %v1729 = vunpack.c.l.b16 %v1587
      %v1730 = vunpack.c.l.b16 %v1590
      %v1731 = vunpack.c.l.b16 %v1593
      %v1732 = vunpack.c.l.b16 %v1596
      %v1733 = vunpack.c.l.b16 %v1599
      %v1734 = vunpack.c.l.b16 %v1602
      %v1735 = vunpack.c.l.b16 %v1605
      %v1736 = vunpack.c.l.b16 %v1608
      %v1737 = vunpack.c.l.b16 %v1611
      %v1738 = vunpack.c.l.b16 %v1614
      %v1739 = vunpack.c.l.b16 %v1617
      %v1740 = vunpack.c.l.b16 %v1620
      %v1741 = vunpack.c.l.b16 %v1623
      %v1742 = vunpack.c.l.b16 %v1626
      %v1743 = vunpack.c.l.b16 %v1629
      %v1744 = vunpack.c.l.b16 %v1632
      %v1745 = vpack.c.b16 %v1729, %v1729
      %v1746 = vpack.c.b16 %v1730, %v1730
      %v1747 = vpack.c.b16 %v1731, %v1731
      %v1748 = vpack.c.b16 %v1732, %v1732
      %v1749 = vpack.c.b16 %v1733, %v1733
      %v1750 = vpack.c.b16 %v1734, %v1734
      %v1751 = vpack.c.b16 %v1735, %v1735
      %v1752 = vpack.c.b16 %v1736, %v1736
      %v1753 = vpack.c.b16 %v1737, %v1737
      %v1754 = vpack.c.b16 %v1738, %v1738
      %v1755 = vpack.c.b16 %v1739, %v1739
      %v1756 = vpack.c.b16 %v1740, %v1740
      %v1757 = vpack.c.b16 %v1741, %v1741
      %v1758 = vpack.c.b16 %v1742, %v1742
      %v1759 = vpack.c.b16 %v1743, %v1743
      %v1760 = vpack.c.b16 %v1744, %v1744
      %v1762 = vshrl.u32 %v1697, 16
      %v1764 = vshll.u32 %v1697, 16
      %v1766 = vrot.slane %v1764, 1
      %v1767 = vor.u32 %v1762, %v1766
      %v1769 = vshll.u32 %v1745, 16
      %v1771 = vrot.slane %v1769, 1
      %v1772 = vsel %vm929, %v1767, %v1771
      %v1774 = vshrl.u32 %v1698, 16
      %v1776 = vshll.u32 %v1698, 16
      %v1778 = vrot.slane %v1776, 1
      %v1779 = vor.u32 %v1774, %v1778
      %v1781 = vshll.u32 %v1746, 16
      %v1783 = vrot.slane %v1781, 1
      %v1784 = vsel %vm929, %v1779, %v1783
      %v1786 = vshrl.u32 %v1699, 16
      %v1788 = vshll.u32 %v1699, 16
      %v1790 = vrot.slane %v1788, 1
      %v1791 = vor.u32 %v1786, %v1790
      %v1793 = vshll.u32 %v1747, 16
      %v1795 = vrot.slane %v1793, 1
      %v1796 = vsel %vm929, %v1791, %v1795
      %v1798 = vshrl.u32 %v1700, 16
      %v1800 = vshll.u32 %v1700, 16
      %v1802 = vrot.slane %v1800, 1
      %v1803 = vor.u32 %v1798, %v1802
      %v1805 = vshll.u32 %v1748, 16
      %v1807 = vrot.slane %v1805, 1
      %v1808 = vsel %vm929, %v1803, %v1807
      %v1810 = vshrl.u32 %v1701, 16
      %v1812 = vshll.u32 %v1701, 16
      %v1814 = vrot.slane %v1812, 1
      %v1815 = vor.u32 %v1810, %v1814
      %v1817 = vshll.u32 %v1749, 16
      %v1819 = vrot.slane %v1817, 1
      %v1820 = vsel %vm929, %v1815, %v1819
      %v1822 = vshrl.u32 %v1702, 16
      %v1824 = vshll.u32 %v1702, 16
      %v1826 = vrot.slane %v1824, 1
      %v1827 = vor.u32 %v1822, %v1826
      %v1829 = vshll.u32 %v1750, 16
      %v1831 = vrot.slane %v1829, 1
      %v1832 = vsel %vm929, %v1827, %v1831
      %v1834 = vshrl.u32 %v1703, 16
      %v1836 = vshll.u32 %v1703, 16
      %v1838 = vrot.slane %v1836, 1
      %v1839 = vor.u32 %v1834, %v1838
      %v1841 = vshll.u32 %v1751, 16
      %v1843 = vrot.slane %v1841, 1
      %v1844 = vsel %vm929, %v1839, %v1843
      %v1846 = vshrl.u32 %v1704, 16
      %v1848 = vshll.u32 %v1704, 16
      %v1850 = vrot.slane %v1848, 1
      %v1851 = vor.u32 %v1846, %v1850
      %v1853 = vshll.u32 %v1752, 16
      %v1855 = vrot.slane %v1853, 1
      %v1856 = vsel %vm929, %v1851, %v1855
      %v1858 = vshrl.u32 %v1705, 16
      %v1860 = vshll.u32 %v1705, 16
      %v1862 = vrot.slane %v1860, 1
      %v1863 = vor.u32 %v1858, %v1862
      %v1865 = vshll.u32 %v1753, 16
      %v1867 = vrot.slane %v1865, 1
      %v1868 = vsel %vm929, %v1863, %v1867
      %v1870 = vshrl.u32 %v1706, 16
      %v1872 = vshll.u32 %v1706, 16
      %v1874 = vrot.slane %v1872, 1
      %v1875 = vor.u32 %v1870, %v1874
      %v1877 = vshll.u32 %v1754, 16
      %v1879 = vrot.slane %v1877, 1
      %v1880 = vsel %vm929, %v1875, %v1879
      %v1882 = vshrl.u32 %v1707, 16
      %v1884 = vshll.u32 %v1707, 16
      %v1886 = vrot.slane %v1884, 1
      %v1887 = vor.u32 %v1882, %v1886
      %v1889 = vshll.u32 %v1755, 16
      %v1891 = vrot.slane %v1889, 1
      %v1892 = vsel %vm929, %v1887, %v1891
      %v1894 = vshrl.u32 %v1708, 16
      %v1896 = vshll.u32 %v1708, 16
      %v1898 = vrot.slane %v1896, 1
      %v1899 = vor.u32 %v1894, %v1898
      %v1901 = vshll.u32 %v1756, 16
      %v1903 = vrot.slane %v1901, 1
      %v1904 = vsel %vm929, %v1899, %v1903
      %v1906 = vshrl.u32 %v1709, 16
      %v1908 = vshll.u32 %v1709, 16
      %v1910 = vrot.slane %v1908, 1
      %v1911 = vor.u32 %v1906, %v1910
      %v1913 = vshll.u32 %v1757, 16
      %v1915 = vrot.slane %v1913, 1
      %v1916 = vsel %vm929, %v1911, %v1915
      %v1918 = vshrl.u32 %v1710, 16
      %v1920 = vshll.u32 %v1710, 16
      %v1922 = vrot.slane %v1920, 1
      %v1923 = vor.u32 %v1918, %v1922
      %v1925 = vshll.u32 %v1758, 16
      %v1927 = vrot.slane %v1925, 1
      %v1928 = vsel %vm929, %v1923, %v1927
      %v1930 = vshrl.u32 %v1711, 16
      %v1932 = vshll.u32 %v1711, 16
      %v1934 = vrot.slane %v1932, 1
      %v1935 = vor.u32 %v1930, %v1934
      %v1937 = vshll.u32 %v1759, 16
      %v1939 = vrot.slane %v1937, 1
      %v1940 = vsel %vm929, %v1935, %v1939
      %v1942 = vshrl.u32 %v1712, 16
      %v1944 = vshll.u32 %v1712, 16
      %v1946 = vrot.slane %v1944, 1
      %v1947 = vor.u32 %v1942, %v1946
      %v1949 = vshll.u32 %v1760, 16
      %v1951 = vrot.slane %v1949, 1
      %v1952 = vsel %vm929, %v1947, %v1951
      %1953 = vrot.lane.b32.xlu0 %v1772, 4
      %v1954 = vpop.permute.xlu0 %1953
      %1955 = vrot.lane.b32.xlu0 %v1784, 4
      %v1956 = vpop.permute.xlu0 %1955
      %1957 = vrot.lane.b32.xlu0 %v1796, 4
      %v1958 = vpop.permute.xlu0 %1957
      %1959 = vrot.lane.b32.xlu0 %v1808, 4
      %v1960 = vpop.permute.xlu0 %1959
      %1961 = vrot.lane.b32.xlu0 %v1820, 4
      %v1962 = vpop.permute.xlu0 %1961
      %1963 = vrot.lane.b32.xlu0 %v1832, 4
      %v1964 = vpop.permute.xlu0 %1963
      %1965 = vrot.lane.b32.xlu0 %v1844, 4
      %v1966 = vpop.permute.xlu0 %1965
      %1967 = vrot.lane.b32.xlu0 %v1856, 4
      %v1968 = vpop.permute.xlu0 %1967
      %1969 = vrot.lane.b32.xlu0 %v1868, 4
      %v1970 = vpop.permute.xlu0 %1969
      %1971 = vrot.lane.b32.xlu0 %v1880, 4
      %v1972 = vpop.permute.xlu0 %1971
      %1973 = vrot.lane.b32.xlu0 %v1892, 4
      %v1974 = vpop.permute.xlu0 %1973
      %1975 = vrot.lane.b32.xlu0 %v1904, 4
      %v1976 = vpop.permute.xlu0 %1975
      %1977 = vrot.lane.b32.xlu0 %v1916, 4
      %v1978 = vpop.permute.xlu0 %1977
      %1979 = vrot.lane.b32.xlu0 %v1928, 4
      %v1980 = vpop.permute.xlu0 %1979
      %1981 = vrot.lane.b32.xlu0 %v1940, 4
      %v1982 = vpop.permute.xlu0 %1981
      %1983 = vrot.lane.b32.xlu0 %v1952, 4
      %v1984 = vpop.permute.xlu0 %1983
      %v1985 = vrot.slane %v1697, 1
      %v1986 = vrot.slane %v1745, 1
      %v1987 = vsel %vm1154, %v1985, %v1986
      %v1988 = vrot.slane %v1698, 1
      %v1989 = vrot.slane %v1746, 1
      %v1990 = vsel %vm1154, %v1988, %v1989
      %v1991 = vrot.slane %v1699, 1
      %v1992 = vrot.slane %v1747, 1
      %v1993 = vsel %vm1154, %v1991, %v1992
      %v1994 = vrot.slane %v1700, 1
      %v1995 = vrot.slane %v1748, 1
      %v1996 = vsel %vm1154, %v1994, %v1995
      %v1997 = vrot.slane %v1701, 1
      %v1998 = vrot.slane %v1749, 1
      %v1999 = vsel %vm1154, %v1997, %v1998
      %v2000 = vrot.slane %v1702, 1
      %v2001 = vrot.slane %v1750, 1
      %v2002 = vsel %vm1154, %v2000, %v2001
      %v2003 = vrot.slane %v1703, 1
      %v2004 = vrot.slane %v1751, 1
      %v2005 = vsel %vm1154, %v2003, %v2004
      %v2006 = vrot.slane %v1704, 1
      %v2007 = vrot.slane %v1752, 1
      %v2008 = vsel %vm1154, %v2006, %v2007
      %v2009 = vrot.slane %v1705, 1
      %v2010 = vrot.slane %v1753, 1
      %v2011 = vsel %vm1154, %v2009, %v2010
      %v2012 = vrot.slane %v1706, 1
      %v2013 = vrot.slane %v1754, 1
      %v2014 = vsel %vm1154, %v2012, %v2013
      %v2015 = vrot.slane %v1707, 1
      %v2016 = vrot.slane %v1755, 1
      %v2017 = vsel %vm1154, %v2015, %v2016
      %v2018 = vrot.slane %v1708, 1
      %v2019 = vrot.slane %v1756, 1
      %v2020 = vsel %vm1154, %v2018, %v2019
      %v2021 = vrot.slane %v1709, 1
      %v2022 = vrot.slane %v1757, 1
      %v2023 = vsel %vm1154, %v2021, %v2022
      %v2024 = vrot.slane %v1710, 1
      %v2025 = vrot.slane %v1758, 1
      %v2026 = vsel %vm1154, %v2024, %v2025
      %v2027 = vrot.slane %v1711, 1
      %v2028 = vrot.slane %v1759, 1
      %v2029 = vsel %vm1154, %v2027, %v2028
      %v2030 = vrot.slane %v1712, 1
      %v2031 = vrot.slane %v1760, 1
      %v2032 = vsel %vm1154, %v2030, %v2031
      %2033 = vrot.lane.b32.xlu0 %v1987, 8
      %v2034 = vpop.permute.xlu0 %2033
      %2035 = vrot.lane.b32.xlu0 %v1990, 8
      %v2036 = vpop.permute.xlu0 %2035
      %2037 = vrot.lane.b32.xlu0 %v1993, 8
      %v2038 = vpop.permute.xlu0 %2037
      %2039 = vrot.lane.b32.xlu0 %v1996, 8
      %v2040 = vpop.permute.xlu0 %2039
      %2041 = vrot.lane.b32.xlu0 %v1999, 8
      %v2042 = vpop.permute.xlu0 %2041
      %2043 = vrot.lane.b32.xlu0 %v2002, 8
      %v2044 = vpop.permute.xlu0 %2043
      %2045 = vrot.lane.b32.xlu0 %v2005, 8
      %v2046 = vpop.permute.xlu0 %2045
      %2047 = vrot.lane.b32.xlu0 %v2008, 8
      %v2048 = vpop.permute.xlu0 %2047
      %2049 = vrot.lane.b32.xlu0 %v2011, 8
      %v2050 = vpop.permute.xlu0 %2049
      %2051 = vrot.lane.b32.xlu0 %v2014, 8
      %v2052 = vpop.permute.xlu0 %2051
      %2053 = vrot.lane.b32.xlu0 %v2017, 8
      %v2054 = vpop.permute.xlu0 %2053
      %2055 = vrot.lane.b32.xlu0 %v2020, 8
      %v2056 = vpop.permute.xlu0 %2055
      %2057 = vrot.lane.b32.xlu0 %v2023, 8
      %v2058 = vpop.permute.xlu0 %2057
      %2059 = vrot.lane.b32.xlu0 %v2026, 8
      %v2060 = vpop.permute.xlu0 %2059
      %2061 = vrot.lane.b32.xlu0 %v2029, 8
      %v2062 = vpop.permute.xlu0 %2061
      %2063 = vrot.lane.b32.xlu0 %v2032, 8
      %v2064 = vpop.permute.xlu0 %2063
      %v2066 = vsel %vm672, %v1697, %v1954
      %v2068 = vsel %vm672, %v1698, %v1956
      %v2070 = vsel %vm672, %v1699, %v1958
      %v2072 = vsel %vm672, %v1700, %v1960
      %v2074 = vsel %vm672, %v1701, %v1962
      %v2076 = vsel %vm672, %v1702, %v1964
      %v2078 = vsel %vm672, %v1703, %v1966
      %v2080 = vsel %vm672, %v1704, %v1968
      %v2082 = vsel %vm672, %v1705, %v1970
      %v2084 = vsel %vm672, %v1706, %v1972
      %v2086 = vsel %vm672, %v1707, %v1974
      %v2088 = vsel %vm672, %v1708, %v1976
      %v2090 = vsel %vm672, %v1709, %v1978
      %v2092 = vsel %vm672, %v1710, %v1980
      %v2094 = vsel %vm672, %v1711, %v1982
      %v2096 = vsel %vm672, %v1712, %v1984
      %v2098 = vsel %vm1267, %v2066, %v2034
      %v2100 = vsel %vm1267, %v2068, %v2036
      %v2102 = vsel %vm1267, %v2070, %v2038
      %v2104 = vsel %vm1267, %v2072, %v2040
      %v2106 = vsel %vm1267, %v2074, %v2042
      %v2108 = vsel %vm1267, %v2076, %v2044
      %v2110 = vsel %vm1267, %v2078, %v2046
      %v2112 = vsel %vm1267, %v2080, %v2048
      %v2114 = vsel %vm1267, %v2082, %v2050
      %v2116 = vsel %vm1267, %v2084, %v2052
      %v2118 = vsel %vm1267, %v2086, %v2054
      %v2120 = vsel %vm1267, %v2088, %v2056
      %v2122 = vsel %vm1267, %v2090, %v2058
      %v2124 = vsel %vm1267, %v2092, %v2060
      %v2126 = vsel %vm1267, %v2094, %v2062
      %v2128 = vsel %vm1267, %v2096, %v2064
      %s2129 = scalar_lea.vmem %s1, 8
      %v2130 = vld [vmem:[%s2129] sm:$0xf]
      %v2131 = vld [vmem:[%s2129 + $0x4] sm:$0x3]
      %v2134 = vunpack.c.l.b16 %v2130
      %v2135 = vunpack.c.l.b16 %v2131
      %v2136 = vpack.c.b16 %v2135, %v2134
      %v2137 = vsel %vm1307, %v2098, 0
      %v2139 = vsel %vm1307, %v2100, 0
      %v2141 = vsel %vm1307, %v2102, 0
      %v2143 = vsel %vm1307, %v2104, 0
      %v2145 = vsel %vm1307, %v2106, 0
      %v2147 = vsel %vm1307, %v2108, 0
      %v2149 = vsel %vm1307, %v2110, 0
      %v2151 = vsel %vm1307, %v2112, 0
      %v2153 = vsel %vm1307, %v2114, 0
      %v2155 = vsel %vm1307, %v2116, 0
      %v2157 = vsel %vm1307, %v2118, 0
      %v2159 = vsel %vm1307, %v2120, 0
      %v2161 = vsel %vm1307, %v2122, 0
      %v2163 = vsel %vm1307, %v2124, 0
      %v2165 = vsel %vm1307, %v2126, 0
      %v2167 = vsel %vm1307, %v2128, 0
      %v2170 = vsel %vm1340, %v2136, 0
      %2172 = vmatprep.subr.bf16.mxu0 0
      %2173 = vmatpush1.bf16.msra.mxu0 0
      %2174 = vmatprep.subr.bf16.mxu0 0
      %2175 = vmatpush1.bf16.msra.mxu0 0
      %2176 = vmatprep.subr.bf16.mxu0 0
      %2177 = vmatpush1.bf16.msra.mxu0 0
      %2178 = vmatprep.subr.bf16.mxu0 0
      %2179 = vmatpush1.bf16.msra.mxu0 0
      %2180 = vmatprep.subr.bf16.mxu0 0
      %2181 = vmatpush1.bf16.msra.mxu0 0
      %2182 = vmatprep.subr.bf16.mxu0 0
      %2183 = vmatpush1.bf16.msra.mxu0 0
      %2184 = vmatprep.subr.bf16.mxu0 0
      %2185 = vmatpush1.bf16.msra.mxu0 0
      %2186 = vmatprep.subr.bf16.mxu0 0
      %2187 = vmatpush1.bf16.msra.mxu0 %v2170
      %2188 = vmatprep.subr.bf16.mxu0 0
      %2189 = vmatpush2.bf16.msra.mxu0 0
      %2190 = vmatprep.subr.bf16.mxu0 0
      %2191 = vmatpush2.bf16.msra.mxu0 0
      %2192 = vmatprep.subr.bf16.mxu0 0
      %2193 = vmatpush2.bf16.msra.mxu0 0
      %2194 = vmatprep.subr.bf16.mxu0 0
      %2195 = vmatpush2.bf16.msra.mxu0 0
      %2196 = vmatprep.subr.bf16.mxu0 0
      %2197 = vmatpush2.bf16.msra.mxu0 0
      %2198 = vmatprep.subr.bf16.mxu0 0
      %2199 = vmatpush2.bf16.msra.mxu0 0
      %2200 = vmatprep.subr.bf16.mxu0 0
      %2201 = vmatpush2.bf16.msra.mxu0 0
      %2202 = vmatprep.subr.bf16.mxu0 0
      %2203 = vmatpush2.bf16.msra.mxu0 0
      %2204 = vmatprep.mubr.bf16.mxu0 0
      %2205 = vmatmul.mubr.bf16.gmra.mxu0 %v2137
      %v2206 = vpop.f32.mrf.mxu0
      %v2207 = vadd.f32 0.0, %v2206
      %v2208 = vpop.f32.mrf.mxu0
      %v2209 = vpop.f32.mrf.mxu0
      %v2210 = vadd.f32 0.0, %v2209
      %v2211 = vpop.f32.mrf.mxu0
      %2212 = vmatprep.mubr.bf16.mxu0 0
      %2213 = vmatmul.mubr.bf16.gmra.mxu0 %v2139
      %v2214 = vpop.f32.mrf.mxu0
      %v2215 = vadd.f32 0.0, %v2214
      %v2216 = vpop.f32.mrf.mxu0
      %v2217 = vpop.f32.mrf.mxu0
      %v2218 = vadd.f32 0.0, %v2217
      %v2219 = vpop.f32.mrf.mxu0
      %2220 = vmatprep.mubr.bf16.mxu0 0
      %2221 = vmatmul.mubr.bf16.gmra.mxu0 %v2141
      %v2222 = vpop.f32.mrf.mxu0
      %v2223 = vadd.f32 0.0, %v2222
      %v2224 = vpop.f32.mrf.mxu0
      %v2225 = vpop.f32.mrf.mxu0
      %v2226 = vadd.f32 0.0, %v2225
      %v2227 = vpop.f32.mrf.mxu0
      %2228 = vmatprep.mubr.bf16.mxu0 0
      %2229 = vmatmul.mubr.bf16.gmra.mxu0 %v2143
      %v2230 = vpop.f32.mrf.mxu0
      %v2231 = vadd.f32 0.0, %v2230
      %v2232 = vpop.f32.mrf.mxu0
      %v2233 = vpop.f32.mrf.mxu0
      %v2234 = vadd.f32 0.0, %v2233
      %v2235 = vpop.f32.mrf.mxu0
      %2236 = vmatprep.mubr.bf16.mxu0 0
      %2237 = vmatmul.mubr.bf16.gmra.mxu0 %v2145
      %v2238 = vpop.f32.mrf.mxu0
      %v2239 = vadd.f32 0.0, %v2238
      %v2240 = vpop.f32.mrf.mxu0
      %v2241 = vpop.f32.mrf.mxu0
      %v2242 = vadd.f32 0.0, %v2241
      %v2243 = vpop.f32.mrf.mxu0
      %2244 = vmatprep.mubr.bf16.mxu0 0
      %2245 = vmatmul.mubr.bf16.gmra.mxu0 %v2147
      %v2246 = vpop.f32.mrf.mxu0
      %v2247 = vadd.f32 0.0, %v2246
      %v2248 = vpop.f32.mrf.mxu0
      %v2249 = vpop.f32.mrf.mxu0
      %v2250 = vadd.f32 0.0, %v2249
      %v2251 = vpop.f32.mrf.mxu0
      %2252 = vmatprep.mubr.bf16.mxu0 0
      %2253 = vmatmul.mubr.bf16.gmra.mxu0 %v2149
      %v2254 = vpop.f32.mrf.mxu0
      %v2255 = vadd.f32 0.0, %v2254
      %v2256 = vpop.f32.mrf.mxu0
      %v2257 = vpop.f32.mrf.mxu0
      %v2258 = vadd.f32 0.0, %v2257
      %v2259 = vpop.f32.mrf.mxu0
      %2260 = vmatprep.mubr.bf16.mxu0 0
      %2261 = vmatmul.mubr.bf16.gmra.mxu0 %v2151
      %v2262 = vpop.f32.mrf.mxu0
      %v2263 = vadd.f32 0.0, %v2262
      %v2264 = vpop.f32.mrf.mxu0
      %v2265 = vpop.f32.mrf.mxu0
      %v2266 = vadd.f32 0.0, %v2265
      %v2267 = vpop.f32.mrf.mxu0
      %2268 = vmatprep.mubr.bf16.mxu0 0
      %2269 = vmatmul.mubr.bf16.gmra.mxu0 %v2153
      %v2270 = vpop.f32.mrf.mxu0
      %v2271 = vadd.f32 0.0, %v2270
      %v2272 = vpop.f32.mrf.mxu0
      %v2273 = vpop.f32.mrf.mxu0
      %v2274 = vadd.f32 0.0, %v2273
      %v2275 = vpop.f32.mrf.mxu0
      %2276 = vmatprep.mubr.bf16.mxu0 0
      %2277 = vmatmul.mubr.bf16.gmra.mxu0 %v2155
      %v2278 = vpop.f32.mrf.mxu0
      %v2279 = vadd.f32 0.0, %v2278
      %v2280 = vpop.f32.mrf.mxu0
      %v2281 = vpop.f32.mrf.mxu0
      %v2282 = vadd.f32 0.0, %v2281
      %v2283 = vpop.f32.mrf.mxu0
      %2284 = vmatprep.mubr.bf16.mxu0 0
      %2285 = vmatmul.mubr.bf16.gmra.mxu0 %v2157
      %v2286 = vpop.f32.mrf.mxu0
      %v2287 = vadd.f32 0.0, %v2286
      %v2288 = vpop.f32.mrf.mxu0
      %v2289 = vpop.f32.mrf.mxu0
      %v2290 = vadd.f32 0.0, %v2289
      %v2291 = vpop.f32.mrf.mxu0
      %2292 = vmatprep.mubr.bf16.mxu0 0
      %2293 = vmatmul.mubr.bf16.gmra.mxu0 %v2159
      %v2294 = vpop.f32.mrf.mxu0
      %v2295 = vadd.f32 0.0, %v2294
      %v2296 = vpop.f32.mrf.mxu0
      %v2297 = vpop.f32.mrf.mxu0
      %v2298 = vadd.f32 0.0, %v2297
      %v2299 = vpop.f32.mrf.mxu0
      %2300 = vmatprep.mubr.bf16.mxu0 0
      %2301 = vmatmul.mubr.bf16.gmra.mxu0 %v2161
      %v2302 = vpop.f32.mrf.mxu0
      %v2303 = vadd.f32 0.0, %v2302
      %v2304 = vpop.f32.mrf.mxu0
      %v2305 = vpop.f32.mrf.mxu0
      %v2306 = vadd.f32 0.0, %v2305
      %v2307 = vpop.f32.mrf.mxu0
      %2308 = vmatprep.mubr.bf16.mxu0 0
      %2309 = vmatmul.mubr.bf16.gmra.mxu0 %v2163
      %v2310 = vpop.f32.mrf.mxu0
      %v2311 = vadd.f32 0.0, %v2310
      %v2312 = vpop.f32.mrf.mxu0
      %v2313 = vpop.f32.mrf.mxu0
      %v2314 = vadd.f32 0.0, %v2313
      %v2315 = vpop.f32.mrf.mxu0
      %2316 = vmatprep.mubr.bf16.mxu0 0
      %2317 = vmatmul.mubr.bf16.gmra.mxu0 %v2165
      %v2318 = vpop.f32.mrf.mxu0
      %v2319 = vadd.f32 0.0, %v2318
      %v2320 = vpop.f32.mrf.mxu0
      %v2321 = vpop.f32.mrf.mxu0
      %v2322 = vadd.f32 0.0, %v2321
      %v2323 = vpop.f32.mrf.mxu0
      %2324 = vmatprep.mubr.bf16.mxu0 0
      %2325 = vmatmul.mubr.bf16.gmra.mxu0 %v2167
      %v2326 = vpop.f32.mrf.mxu0
      %v2327 = vadd.f32 0.0, %v2326
      %v2328 = vpop.f32.mrf.mxu0
      %v2329 = vpop.f32.mrf.mxu0
      %v2330 = vadd.f32 0.0, %v2329
      %v2331 = vpop.f32.mrf.mxu0
      %2332 = vdwg.mxu0
      %v2333 = vld [vmem:[#allocation2] sm:$0xff]
      %v2334 = vld [vmem:[#allocation2 + $0x8] sm:$0xff]
      %v2335 = vld [vmem:[#allocation2 + $0x10] sm:$0xff]
      %v2336 = vld [vmem:[#allocation2 + $0x18] sm:$0xff]
      %v2337 = vld [vmem:[#allocation2 + $0x20] sm:$0xff]
      %v2338 = vld [vmem:[#allocation2 + $0x28] sm:$0xff]
      %v2339 = vld [vmem:[#allocation2 + $0x30] sm:$0xff]
      %v2340 = vld [vmem:[#allocation2 + $0x38] sm:$0xff]
      %v2341 = vld [vmem:[#allocation2 + $0x40] sm:$0xff]
      %v2342 = vld [vmem:[#allocation2 + $0x48] sm:$0xff]
      %v2343 = vld [vmem:[#allocation2 + $0x50] sm:$0xff]
      %v2344 = vld [vmem:[#allocation2 + $0x58] sm:$0xff]
      %v2345 = vld [vmem:[#allocation2 + $0x60] sm:$0xff]
      %v2346 = vld [vmem:[#allocation2 + $0x68] sm:$0xff]
      %v2347 = vld [vmem:[#allocation2 + $0x70] sm:$0xff]
      %v2348 = vld [vmem:[#allocation2 + $0x78] sm:$0xff]
      %v2349 = vld [vmem:[#allocation2 + $0x80] sm:$0xff]
      %v2350 = vld [vmem:[#allocation2 + $0x88] sm:$0xff]
      %v2351 = vld [vmem:[#allocation2 + $0x90] sm:$0xff]
      %v2352 = vld [vmem:[#allocation2 + $0x98] sm:$0xff]
      %v2353 = vld [vmem:[#allocation2 + $0xa0] sm:$0xff]
      %v2354 = vld [vmem:[#allocation2 + $0xa8] sm:$0xff]
      %v2355 = vld [vmem:[#allocation2 + $0xb0] sm:$0xff]
      %v2356 = vld [vmem:[#allocation2 + $0xb8] sm:$0xff]
      %v2357 = vld [vmem:[#allocation2 + $0xc0] sm:$0xff]
      %v2358 = vld [vmem:[#allocation2 + $0xc8] sm:$0xff]
      %v2359 = vld [vmem:[#allocation2 + $0xd0] sm:$0xff]
      %v2360 = vld [vmem:[#allocation2 + $0xd8] sm:$0xff]
      %v2361 = vld [vmem:[#allocation2 + $0xe0] sm:$0xff]
      %v2362 = vld [vmem:[#allocation2 + $0xe8] sm:$0xff]
      %v2363 = vld [vmem:[#allocation2 + $0xf0] sm:$0xff]
      %v2364 = vld [vmem:[#allocation2 + $0xf8] sm:$0xff]
      %v2365 = vadd.f32 %v2333, %v2207
      %v2366 = vadd.f32 %v2334, %v2210
      %v2367 = vadd.f32 %v2335, %v2215
      %v2368 = vadd.f32 %v2336, %v2218
      %v2369 = vadd.f32 %v2337, %v2223
      %v2370 = vadd.f32 %v2338, %v2226
      %v2371 = vadd.f32 %v2339, %v2231
      %v2372 = vadd.f32 %v2340, %v2234
      %v2373 = vadd.f32 %v2341, %v2239
      %v2374 = vadd.f32 %v2342, %v2242
      %v2375 = vadd.f32 %v2343, %v2247
      %v2376 = vadd.f32 %v2344, %v2250
      %v2377 = vadd.f32 %v2345, %v2255
      %v2378 = vadd.f32 %v2346, %v2258
      %v2379 = vadd.f32 %v2347, %v2263
      %v2380 = vadd.f32 %v2348, %v2266
      %v2381 = vadd.f32 %v2349, %v2271
      %v2382 = vadd.f32 %v2350, %v2274
      %v2383 = vadd.f32 %v2351, %v2279
      %v2384 = vadd.f32 %v2352, %v2282
      %v2385 = vadd.f32 %v2353, %v2287
      %v2386 = vadd.f32 %v2354, %v2290
      %v2387 = vadd.f32 %v2355, %v2295
      %v2388 = vadd.f32 %v2356, %v2298
      %v2389 = vadd.f32 %v2357, %v2303
      %v2390 = vadd.f32 %v2358, %v2306
      %v2391 = vadd.f32 %v2359, %v2311
      %v2392 = vadd.f32 %v2360, %v2314
      %v2393 = vadd.f32 %v2361, %v2319
      %v2394 = vadd.f32 %v2362, %v2322
      %v2395 = vadd.f32 %v2363, %v2327
      %v2396 = vadd.f32 %v2364, %v2330
      %2397 = vst.msk [vmem:[#allocation2] sm:$0xff] %vm672, %v2365
      %2398 = vst.msk [vmem:[#allocation2 + $0x8] sm:$0xff] %vm672, %v2366
      %2399 = vst.msk [vmem:[#allocation2 + $0x10] sm:$0xff] %vm672, %v2367
      %2400 = vst.msk [vmem:[#allocation2 + $0x18] sm:$0xff] %vm672, %v2368
      %2401 = vst.msk [vmem:[#allocation2 + $0x20] sm:$0xff] %vm672, %v2369
      %2402 = vst.msk [vmem:[#allocation2 + $0x28] sm:$0xff] %vm672, %v2370
      %2403 = vst.msk [vmem:[#allocation2 + $0x30] sm:$0xff] %vm672, %v2371
      %2404 = vst.msk [vmem:[#allocation2 + $0x38] sm:$0xff] %vm672, %v2372
      %2405 = vst.msk [vmem:[#allocation2 + $0x40] sm:$0xff] %vm672, %v2373
      %2406 = vst.msk [vmem:[#allocation2 + $0x48] sm:$0xff] %vm672, %v2374
      %2407 = vst.msk [vmem:[#allocation2 + $0x50] sm:$0xff] %vm672, %v2375
      %2408 = vst.msk [vmem:[#allocation2 + $0x58] sm:$0xff] %vm672, %v2376
      %2409 = vst.msk [vmem:[#allocation2 + $0x60] sm:$0xff] %vm672, %v2377
      %2410 = vst.msk [vmem:[#allocation2 + $0x68] sm:$0xff] %vm672, %v2378
      %2411 = vst.msk [vmem:[#allocation2 + $0x70] sm:$0xff] %vm672, %v2379
      %2412 = vst.msk [vmem:[#allocation2 + $0x78] sm:$0xff] %vm672, %v2380
      %2413 = vst.msk [vmem:[#allocation2 + $0x80] sm:$0xff] %vm672, %v2381
      %2414 = vst.msk [vmem:[#allocation2 + $0x88] sm:$0xff] %vm672, %v2382
      %2415 = vst.msk [vmem:[#allocation2 + $0x90] sm:$0xff] %vm672, %v2383
      %2416 = vst.msk [vmem:[#allocation2 + $0x98] sm:$0xff] %vm672, %v2384
      %2417 = vst.msk [vmem:[#allocation2 + $0xa0] sm:$0xff] %vm672, %v2385
      %2418 = vst.msk [vmem:[#allocation2 + $0xa8] sm:$0xff] %vm672, %v2386
      %2419 = vst.msk [vmem:[#allocation2 + $0xb0] sm:$0xff] %vm672, %v2387
      %2420 = vst.msk [vmem:[#allocation2 + $0xb8] sm:$0xff] %vm672, %v2388
      %2421 = vst.msk [vmem:[#allocation2 + $0xc0] sm:$0xff] %vm672, %v2389
      %2422 = vst.msk [vmem:[#allocation2 + $0xc8] sm:$0xff] %vm672, %v2390
      %2423 = vst.msk [vmem:[#allocation2 + $0xd0] sm:$0xff] %vm672, %v2391
      %2424 = vst.msk [vmem:[#allocation2 + $0xd8] sm:$0xff] %vm672, %v2392
      %2425 = vst.msk [vmem:[#allocation2 + $0xe0] sm:$0xff] %vm672, %v2393
      %2426 = vst.msk [vmem:[#allocation2 + $0xe8] sm:$0xff] %vm672, %v2394
      %2427 = vst.msk [vmem:[#allocation2 + $0xf0] sm:$0xff] %vm672, %v2395
      %2428 = vst.msk [vmem:[#allocation2 + $0xf8] sm:$0xff] %vm672, %v2396
      %s2429 = scalar_lea.vmem %s165, 24
      %v2430 = vld [vmem:[%s2429] sm:$0xf]
      %v2431 = vld [vmem:[%s2429 + $0x4] sm:$0xf]
      %v2432 = vld [vmem:[%s2429 + $0x8] sm:$0x1]
      %v2433 = vld [vmem:[%s2429 + $0xc] sm:$0xf]
      %v2434 = vld [vmem:[%s2429 + $0x10] sm:$0xf]
      %v2435 = vld [vmem:[%s2429 + $0x14] sm:$0x1]
      %v2436 = vld [vmem:[%s2429 + $0x18] sm:$0xf]
      %v2437 = vld [vmem:[%s2429 + $0x1c] sm:$0xf]
      %v2438 = vld [vmem:[%s2429 + $0x20] sm:$0x1]
      %v2439 = vld [vmem:[%s2429 + $0x24] sm:$0xf]
      %v2440 = vld [vmem:[%s2429 + $0x28] sm:$0xf]
      %v2441 = vld [vmem:[%s2429 + $0x2c] sm:$0x1]
      %v2442 = vld [vmem:[%s2429 + $0x30] sm:$0xf]
      %v2443 = vld [vmem:[%s2429 + $0x34] sm:$0xf]
      %v2444 = vld [vmem:[%s2429 + $0x38] sm:$0x1]
      %v2445 = vld [vmem:[%s2429 + $0x3c] sm:$0xf]
      %v2446 = vld [vmem:[%s2429 + $0x40] sm:$0xf]
      %v2447 = vld [vmem:[%s2429 + $0x44] sm:$0x1]
      %v2448 = vld [vmem:[%s2429 + $0x48] sm:$0xf]
      %v2449 = vld [vmem:[%s2429 + $0x4c] sm:$0xf]
      %v2450 = vld [vmem:[%s2429 + $0x50] sm:$0x1]
      %v2451 = vld [vmem:[%s2429 + $0x54] sm:$0xf]
      %v2452 = vld [vmem:[%s2429 + $0x58] sm:$0xf]
      %v2453 = vld [vmem:[%s2429 + $0x5c] sm:$0x1]
      %v2454 = vld [vmem:[%s2429 + $0x60] sm:$0xf]
      %v2455 = vld [vmem:[%s2429 + $0x64] sm:$0xf]
      %v2456 = vld [vmem:[%s2429 + $0x68] sm:$0x1]
      %v2457 = vld [vmem:[%s2429 + $0x6c] sm:$0xf]
      %v2458 = vld [vmem:[%s2429 + $0x70] sm:$0xf]
      %v2459 = vld [vmem:[%s2429 + $0x74] sm:$0x1]
      %v2460 = vld [vmem:[%s2429 + $0x78] sm:$0xf]
      %v2461 = vld [vmem:[%s2429 + $0x7c] sm:$0xf]
      %v2462 = vld [vmem:[%s2429 + $0x80] sm:$0x1]
      %v2463 = vld [vmem:[%s2429 + $0x84] sm:$0xf]
      %v2464 = vld [vmem:[%s2429 + $0x88] sm:$0xf]
      %v2465 = vld [vmem:[%s2429 + $0x8c] sm:$0x1]
      %v2466 = vld [vmem:[%s2429 + $0x90] sm:$0xf]
      %v2467 = vld [vmem:[%s2429 + $0x94] sm:$0xf]
      %v2468 = vld [vmem:[%s2429 + $0x98] sm:$0x1]
      %v2469 = vld [vmem:[%s2429 + $0x9c] sm:$0xf]
      %v2470 = vld [vmem:[%s2429 + $0xa0] sm:$0xf]
      %v2471 = vld [vmem:[%s2429 + $0xa4] sm:$0x1]
      %v2472 = vld [vmem:[%s2429 + $0xa8] sm:$0xf]
      %v2473 = vld [vmem:[%s2429 + $0xac] sm:$0xf]
      %v2474 = vld [vmem:[%s2429 + $0xb0] sm:$0x1]
      %v2475 = vld [vmem:[%s2429 + $0xb4] sm:$0xf]
      %v2476 = vld [vmem:[%s2429 + $0xb8] sm:$0xf]
      %v2477 = vld [vmem:[%s2429 + $0xbc] sm:$0x1]
      %v2478 = vmax.bf16 %v2430, 0
      %v2479 = vmax.bf16 %v2431, 0
      %v2480 = vmax.bf16 %v2432, 0
      %v2481 = vmax.bf16 %v2433, 0
      %v2482 = vmax.bf16 %v2434, 0
      %v2483 = vmax.bf16 %v2435, 0
      %v2484 = vmax.bf16 %v2436, 0
      %v2485 = vmax.bf16 %v2437, 0
      %v2486 = vmax.bf16 %v2438, 0
      %v2487 = vmax.bf16 %v2439, 0
      %v2488 = vmax.bf16 %v2440, 0
      %v2489 = vmax.bf16 %v2441, 0
      %v2490 = vmax.bf16 %v2442, 0
      %v2491 = vmax.bf16 %v2443, 0
      %v2492 = vmax.bf16 %v2444, 0
      %v2493 = vmax.bf16 %v2445, 0
      %v2494 = vmax.bf16 %v2446, 0
      %v2495 = vmax.bf16 %v2447, 0
      %v2496 = vmax.bf16 %v2448, 0
      %v2497 = vmax.bf16 %v2449, 0
      %v2498 = vmax.bf16 %v2450, 0
      %v2499 = vmax.bf16 %v2451, 0
      %v2500 = vmax.bf16 %v2452, 0
      %v2501 = vmax.bf16 %v2453, 0
      %v2502 = vmax.bf16 %v2454, 0
      %v2503 = vmax.bf16 %v2455, 0
      %v2504 = vmax.bf16 %v2456, 0
      %v2505 = vmax.bf16 %v2457, 0
      %v2506 = vmax.bf16 %v2458, 0
      %v2507 = vmax.bf16 %v2459, 0
      %v2508 = vmax.bf16 %v2460, 0
      %v2509 = vmax.bf16 %v2461, 0
      %v2510 = vmax.bf16 %v2462, 0
      %v2511 = vmax.bf16 %v2463, 0
      %v2512 = vmax.bf16 %v2464, 0
      %v2513 = vmax.bf16 %v2465, 0
      %v2514 = vmax.bf16 %v2466, 0
      %v2515 = vmax.bf16 %v2467, 0
      %v2516 = vmax.bf16 %v2468, 0
      %v2517 = vmax.bf16 %v2469, 0
      %v2518 = vmax.bf16 %v2470, 0
      %v2519 = vmax.bf16 %v2471, 0
      %v2520 = vmax.bf16 %v2472, 0
      %v2521 = vmax.bf16 %v2473, 0
      %v2522 = vmax.bf16 %v2474, 0
      %v2523 = vmax.bf16 %v2475, 0
      %v2524 = vmax.bf16 %v2476, 0
      %v2525 = vmax.bf16 %v2477, 0
      %v2558 = vunpack.c.l.b16 %v2478
      %v2559 = vunpack.c.l.b16 %v2479
      %v2560 = vunpack.c.l.b16 %v2481
      %v2561 = vunpack.c.l.b16 %v2482
      %v2562 = vunpack.c.l.b16 %v2484
      %v2563 = vunpack.c.l.b16 %v2485
      %v2564 = vunpack.c.l.b16 %v2487
      %v2565 = vunpack.c.l.b16 %v2488
      %v2566 = vunpack.c.l.b16 %v2490
      %v2567 = vunpack.c.l.b16 %v2491
      %v2568 = vunpack.c.l.b16 %v2493
      %v2569 = vunpack.c.l.b16 %v2494
      %v2570 = vunpack.c.l.b16 %v2496
      %v2571 = vunpack.c.l.b16 %v2497
      %v2572 = vunpack.c.l.b16 %v2499
      %v2573 = vunpack.c.l.b16 %v2500
      %v2574 = vunpack.c.l.b16 %v2502
      %v2575 = vunpack.c.l.b16 %v2503
      %v2576 = vunpack.c.l.b16 %v2505
      %v2577 = vunpack.c.l.b16 %v2506
      %v2578 = vunpack.c.l.b16 %v2508
      %v2579 = vunpack.c.l.b16 %v2509
      %v2580 = vunpack.c.l.b16 %v2511
      %v2581 = vunpack.c.l.b16 %v2512
      %v2582 = vunpack.c.l.b16 %v2514
      %v2583 = vunpack.c.l.b16 %v2515
      %v2584 = vunpack.c.l.b16 %v2517
      %v2585 = vunpack.c.l.b16 %v2518
      %v2586 = vunpack.c.l.b16 %v2520
      %v2587 = vunpack.c.l.b16 %v2521
      %v2588 = vunpack.c.l.b16 %v2523
      %v2589 = vunpack.c.l.b16 %v2524
      %v2590 = vpack.c.b16 %v2559, %v2558
      %v2591 = vpack.c.b16 %v2561, %v2560
      %v2592 = vpack.c.b16 %v2563, %v2562
      %v2593 = vpack.c.b16 %v2565, %v2564
      %v2594 = vpack.c.b16 %v2567, %v2566
      %v2595 = vpack.c.b16 %v2569, %v2568
      %v2596 = vpack.c.b16 %v2571, %v2570
      %v2597 = vpack.c.b16 %v2573, %v2572
      %v2598 = vpack.c.b16 %v2575, %v2574
      %v2599 = vpack.c.b16 %v2577, %v2576
      %v2600 = vpack.c.b16 %v2579, %v2578
      %v2601 = vpack.c.b16 %v2581, %v2580
      %v2602 = vpack.c.b16 %v2583, %v2582
      %v2603 = vpack.c.b16 %v2585, %v2584
      %v2604 = vpack.c.b16 %v2587, %v2586
      %v2605 = vpack.c.b16 %v2589, %v2588
      %v2622 = vunpack.c.l.b16 %v2480
      %v2623 = vunpack.c.l.b16 %v2483
      %v2624 = vunpack.c.l.b16 %v2486
      %v2625 = vunpack.c.l.b16 %v2489
      %v2626 = vunpack.c.l.b16 %v2492
      %v2627 = vunpack.c.l.b16 %v2495
      %v2628 = vunpack.c.l.b16 %v2498
      %v2629 = vunpack.c.l.b16 %v2501
      %v2630 = vunpack.c.l.b16 %v2504
      %v2631 = vunpack.c.l.b16 %v2507
      %v2632 = vunpack.c.l.b16 %v2510
      %v2633 = vunpack.c.l.b16 %v2513
      %v2634 = vunpack.c.l.b16 %v2516
      %v2635 = vunpack.c.l.b16 %v2519
      %v2636 = vunpack.c.l.b16 %v2522
      %v2637 = vunpack.c.l.b16 %v2525
      %v2638 = vpack.c.b16 %v2622, %v2622
      %v2639 = vpack.c.b16 %v2623, %v2623
      %v2640 = vpack.c.b16 %v2624, %v2624
      %v2641 = vpack.c.b16 %v2625, %v2625
      %v2642 = vpack.c.b16 %v2626, %v2626
      %v2643 = vpack.c.b16 %v2627, %v2627
      %v2644 = vpack.c.b16 %v2628, %v2628
      %v2645 = vpack.c.b16 %v2629, %v2629
      %v2646 = vpack.c.b16 %v2630, %v2630
      %v2647 = vpack.c.b16 %v2631, %v2631
      %v2648 = vpack.c.b16 %v2632, %v2632
      %v2649 = vpack.c.b16 %v2633, %v2633
      %v2650 = vpack.c.b16 %v2634, %v2634
      %v2651 = vpack.c.b16 %v2635, %v2635
      %v2652 = vpack.c.b16 %v2636, %v2636
      %v2653 = vpack.c.b16 %v2637, %v2637
      %v2655 = vshrl.u32 %v2590, 16
      %v2657 = vshll.u32 %v2590, 16
      %v2659 = vrot.slane %v2657, 1
      %v2660 = vor.u32 %v2655, %v2659
      %v2662 = vshll.u32 %v2638, 16
      %v2664 = vrot.slane %v2662, 1
      %v2665 = vsel %vm929, %v2660, %v2664
      %v2667 = vshrl.u32 %v2591, 16
      %v2669 = vshll.u32 %v2591, 16
      %v2671 = vrot.slane %v2669, 1
      %v2672 = vor.u32 %v2667, %v2671
      %v2674 = vshll.u32 %v2639, 16
      %v2676 = vrot.slane %v2674, 1
      %v2677 = vsel %vm929, %v2672, %v2676
      %v2679 = vshrl.u32 %v2592, 16
      %v2681 = vshll.u32 %v2592, 16
      %v2683 = vrot.slane %v2681, 1
      %v2684 = vor.u32 %v2679, %v2683
      %v2686 = vshll.u32 %v2640, 16
      %v2688 = vrot.slane %v2686, 1
      %v2689 = vsel %vm929, %v2684, %v2688
      %v2691 = vshrl.u32 %v2593, 16
      %v2693 = vshll.u32 %v2593, 16
      %v2695 = vrot.slane %v2693, 1
      %v2696 = vor.u32 %v2691, %v2695
      %v2698 = vshll.u32 %v2641, 16
      %v2700 = vrot.slane %v2698, 1
      %v2701 = vsel %vm929, %v2696, %v2700
      %v2703 = vshrl.u32 %v2594, 16
      %v2705 = vshll.u32 %v2594, 16
      %v2707 = vrot.slane %v2705, 1
      %v2708 = vor.u32 %v2703, %v2707
      %v2710 = vshll.u32 %v2642, 16
      %v2712 = vrot.slane %v2710, 1
      %v2713 = vsel %vm929, %v2708, %v2712
      %v2715 = vshrl.u32 %v2595, 16
      %v2717 = vshll.u32 %v2595, 16
      %v2719 = vrot.slane %v2717, 1
      %v2720 = vor.u32 %v2715, %v2719
      %v2722 = vshll.u32 %v2643, 16
      %v2724 = vrot.slane %v2722, 1
      %v2725 = vsel %vm929, %v2720, %v2724
      %v2727 = vshrl.u32 %v2596, 16
      %v2729 = vshll.u32 %v2596, 16
      %v2731 = vrot.slane %v2729, 1
      %v2732 = vor.u32 %v2727, %v2731
      %v2734 = vshll.u32 %v2644, 16
      %v2736 = vrot.slane %v2734, 1
      %v2737 = vsel %vm929, %v2732, %v2736
      %v2739 = vshrl.u32 %v2597, 16
      %v2741 = vshll.u32 %v2597, 16
      %v2743 = vrot.slane %v2741, 1
      %v2744 = vor.u32 %v2739, %v2743
      %v2746 = vshll.u32 %v2645, 16
      %v2748 = vrot.slane %v2746, 1
      %v2749 = vsel %vm929, %v2744, %v2748
      %v2751 = vshrl.u32 %v2598, 16
      %v2753 = vshll.u32 %v2598, 16
      %v2755 = vrot.slane %v2753, 1
      %v2756 = vor.u32 %v2751, %v2755
      %v2758 = vshll.u32 %v2646, 16
      %v2760 = vrot.slane %v2758, 1
      %v2761 = vsel %vm929, %v2756, %v2760
      %v2763 = vshrl.u32 %v2599, 16
      %v2765 = vshll.u32 %v2599, 16
      %v2767 = vrot.slane %v2765, 1
      %v2768 = vor.u32 %v2763, %v2767
      %v2770 = vshll.u32 %v2647, 16
      %v2772 = vrot.slane %v2770, 1
      %v2773 = vsel %vm929, %v2768, %v2772
      %v2775 = vshrl.u32 %v2600, 16
      %v2777 = vshll.u32 %v2600, 16
      %v2779 = vrot.slane %v2777, 1
      %v2780 = vor.u32 %v2775, %v2779
      %v2782 = vshll.u32 %v2648, 16
      %v2784 = vrot.slane %v2782, 1
      %v2785 = vsel %vm929, %v2780, %v2784
      %v2787 = vshrl.u32 %v2601, 16
      %v2789 = vshll.u32 %v2601, 16
      %v2791 = vrot.slane %v2789, 1
      %v2792 = vor.u32 %v2787, %v2791
      %v2794 = vshll.u32 %v2649, 16
      %v2796 = vrot.slane %v2794, 1
      %v2797 = vsel %vm929, %v2792, %v2796
      %v2799 = vshrl.u32 %v2602, 16
      %v2801 = vshll.u32 %v2602, 16
      %v2803 = vrot.slane %v2801, 1
      %v2804 = vor.u32 %v2799, %v2803
      %v2806 = vshll.u32 %v2650, 16
      %v2808 = vrot.slane %v2806, 1
      %v2809 = vsel %vm929, %v2804, %v2808
      %v2811 = vshrl.u32 %v2603, 16
      %v2813 = vshll.u32 %v2603, 16
      %v2815 = vrot.slane %v2813, 1
      %v2816 = vor.u32 %v2811, %v2815
      %v2818 = vshll.u32 %v2651, 16
      %v2820 = vrot.slane %v2818, 1
      %v2821 = vsel %vm929, %v2816, %v2820
      %v2823 = vshrl.u32 %v2604, 16
      %v2825 = vshll.u32 %v2604, 16
      %v2827 = vrot.slane %v2825, 1
      %v2828 = vor.u32 %v2823, %v2827
      %v2830 = vshll.u32 %v2652, 16
      %v2832 = vrot.slane %v2830, 1
      %v2833 = vsel %vm929, %v2828, %v2832
      %v2835 = vshrl.u32 %v2605, 16
      %v2837 = vshll.u32 %v2605, 16
      %v2839 = vrot.slane %v2837, 1
      %v2840 = vor.u32 %v2835, %v2839
      %v2842 = vshll.u32 %v2653, 16
      %v2844 = vrot.slane %v2842, 1
      %v2845 = vsel %vm929, %v2840, %v2844
      %2846 = vrot.lane.b32.xlu0 %v2665, 4
      %v2847 = vpop.permute.xlu0 %2846
      %2848 = vrot.lane.b32.xlu0 %v2677, 4
      %v2849 = vpop.permute.xlu0 %2848
      %2850 = vrot.lane.b32.xlu0 %v2689, 4
      %v2851 = vpop.permute.xlu0 %2850
      %2852 = vrot.lane.b32.xlu0 %v2701, 4
      %v2853 = vpop.permute.xlu0 %2852
      %2854 = vrot.lane.b32.xlu0 %v2713, 4
      %v2855 = vpop.permute.xlu0 %2854
      %2856 = vrot.lane.b32.xlu0 %v2725, 4
      %v2857 = vpop.permute.xlu0 %2856
      %2858 = vrot.lane.b32.xlu0 %v2737, 4
      %v2859 = vpop.permute.xlu0 %2858
      %2860 = vrot.lane.b32.xlu0 %v2749, 4
      %v2861 = vpop.permute.xlu0 %2860
      %2862 = vrot.lane.b32.xlu0 %v2761, 4
      %v2863 = vpop.permute.xlu0 %2862
      %2864 = vrot.lane.b32.xlu0 %v2773, 4
      %v2865 = vpop.permute.xlu0 %2864
      %2866 = vrot.lane.b32.xlu0 %v2785, 4
      %v2867 = vpop.permute.xlu0 %2866
      %2868 = vrot.lane.b32.xlu0 %v2797, 4
      %v2869 = vpop.permute.xlu0 %2868
      %2870 = vrot.lane.b32.xlu0 %v2809, 4
      %v2871 = vpop.permute.xlu0 %2870
      %2872 = vrot.lane.b32.xlu0 %v2821, 4
      %v2873 = vpop.permute.xlu0 %2872
      %2874 = vrot.lane.b32.xlu0 %v2833, 4
      %v2875 = vpop.permute.xlu0 %2874
      %2876 = vrot.lane.b32.xlu0 %v2845, 4
      %v2877 = vpop.permute.xlu0 %2876
      %v2878 = vrot.slane %v2590, 1
      %v2879 = vrot.slane %v2638, 1
      %v2880 = vsel %vm1154, %v2878, %v2879
      %v2881 = vrot.slane %v2591, 1
      %v2882 = vrot.slane %v2639, 1
      %v2883 = vsel %vm1154, %v2881, %v2882
      %v2884 = vrot.slane %v2592, 1
      %v2885 = vrot.slane %v2640, 1
      %v2886 = vsel %vm1154, %v2884, %v2885
      %v2887 = vrot.slane %v2593, 1
      %v2888 = vrot.slane %v2641, 1
      %v2889 = vsel %vm1154, %v2887, %v2888
      %v2890 = vrot.slane %v2594, 1
      %v2891 = vrot.slane %v2642, 1
      %v2892 = vsel %vm1154, %v2890, %v2891
      %v2893 = vrot.slane %v2595, 1
      %v2894 = vrot.slane %v2643, 1
      %v2895 = vsel %vm1154, %v2893, %v2894
      %v2896 = vrot.slane %v2596, 1
      %v2897 = vrot.slane %v2644, 1
      %v2898 = vsel %vm1154, %v2896, %v2897
      %v2899 = vrot.slane %v2597, 1
      %v2900 = vrot.slane %v2645, 1
      %v2901 = vsel %vm1154, %v2899, %v2900
      %v2902 = vrot.slane %v2598, 1
      %v2903 = vrot.slane %v2646, 1
      %v2904 = vsel %vm1154, %v2902, %v2903
      %v2905 = vrot.slane %v2599, 1
      %v2906 = vrot.slane %v2647, 1
      %v2907 = vsel %vm1154, %v2905, %v2906
      %v2908 = vrot.slane %v2600, 1
      %v2909 = vrot.slane %v2648, 1
      %v2910 = vsel %vm1154, %v2908, %v2909
      %v2911 = vrot.slane %v2601, 1
      %v2912 = vrot.slane %v2649, 1
      %v2913 = vsel %vm1154, %v2911, %v2912
      %v2914 = vrot.slane %v2602, 1
      %v2915 = vrot.slane %v2650, 1
      %v2916 = vsel %vm1154, %v2914, %v2915
      %v2917 = vrot.slane %v2603, 1
      %v2918 = vrot.slane %v2651, 1
      %v2919 = vsel %vm1154, %v2917, %v2918
      %v2920 = vrot.slane %v2604, 1
      %v2921 = vrot.slane %v2652, 1
      %v2922 = vsel %vm1154, %v2920, %v2921
      %v2923 = vrot.slane %v2605, 1
      %v2924 = vrot.slane %v2653, 1
      %v2925 = vsel %vm1154, %v2923, %v2924
      %2926 = vrot.lane.b32.xlu0 %v2880, 8
      %v2927 = vpop.permute.xlu0 %2926
      %2928 = vrot.lane.b32.xlu0 %v2883, 8
      %v2929 = vpop.permute.xlu0 %2928
      %2930 = vrot.lane.b32.xlu0 %v2886, 8
      %v2931 = vpop.permute.xlu0 %2930
      %2932 = vrot.lane.b32.xlu0 %v2889, 8
      %v2933 = vpop.permute.xlu0 %2932
      %2934 = vrot.lane.b32.xlu0 %v2892, 8
      %v2935 = vpop.permute.xlu0 %2934
      %2936 = vrot.lane.b32.xlu0 %v2895, 8
      %v2937 = vpop.permute.xlu0 %2936
      %2938 = vrot.lane.b32.xlu0 %v2898, 8
      %v2939 = vpop.permute.xlu0 %2938
      %2940 = vrot.lane.b32.xlu0 %v2901, 8
      %v2941 = vpop.permute.xlu0 %2940
      %2942 = vrot.lane.b32.xlu0 %v2904, 8
      %v2943 = vpop.permute.xlu0 %2942
      %2944 = vrot.lane.b32.xlu0 %v2907, 8
      %v2945 = vpop.permute.xlu0 %2944
      %2946 = vrot.lane.b32.xlu0 %v2910, 8
      %v2947 = vpop.permute.xlu0 %2946
      %2948 = vrot.lane.b32.xlu0 %v2913, 8
      %v2949 = vpop.permute.xlu0 %2948
      %2950 = vrot.lane.b32.xlu0 %v2916, 8
      %v2951 = vpop.permute.xlu0 %2950
      %2952 = vrot.lane.b32.xlu0 %v2919, 8
      %v2953 = vpop.permute.xlu0 %2952
      %2954 = vrot.lane.b32.xlu0 %v2922, 8
      %v2955 = vpop.permute.xlu0 %2954
      %2956 = vrot.lane.b32.xlu0 %v2925, 8
      %v2957 = vpop.permute.xlu0 %2956
      %v2959 = vsel %vm672, %v2590, %v2847
      %v2961 = vsel %vm672, %v2591, %v2849
      %v2963 = vsel %vm672, %v2592, %v2851
      %v2965 = vsel %vm672, %v2593, %v2853
      %v2967 = vsel %vm672, %v2594, %v2855
      %v2969 = vsel %vm672, %v2595, %v2857
      %v2971 = vsel %vm672, %v2596, %v2859
      %v2973 = vsel %vm672, %v2597, %v2861
      %v2975 = vsel %vm672, %v2598, %v2863
      %v2977 = vsel %vm672, %v2599, %v2865
      %v2979 = vsel %vm672, %v2600, %v2867
      %v2981 = vsel %vm672, %v2601, %v2869
      %v2983 = vsel %vm672, %v2602, %v2871
      %v2985 = vsel %vm672, %v2603, %v2873
      %v2987 = vsel %vm672, %v2604, %v2875
      %v2989 = vsel %vm672, %v2605, %v2877
      %v2991 = vsel %vm1267, %v2959, %v2927
      %v2993 = vsel %vm1267, %v2961, %v2929
      %v2995 = vsel %vm1267, %v2963, %v2931
      %v2997 = vsel %vm1267, %v2965, %v2933
      %v2999 = vsel %vm1267, %v2967, %v2935
      %v3001 = vsel %vm1267, %v2969, %v2937
      %v3003 = vsel %vm1267, %v2971, %v2939
      %v3005 = vsel %vm1267, %v2973, %v2941
      %v3007 = vsel %vm1267, %v2975, %v2943
      %v3009 = vsel %vm1267, %v2977, %v2945
      %v3011 = vsel %vm1267, %v2979, %v2947
      %v3013 = vsel %vm1267, %v2981, %v2949
      %v3015 = vsel %vm1267, %v2983, %v2951
      %v3017 = vsel %vm1267, %v2985, %v2953
      %v3019 = vsel %vm1267, %v2987, %v2955
      %v3021 = vsel %vm1267, %v2989, %v2957
      %s3022 = scalar_lea.vmem %s1, 16
      %v3023 = vld [vmem:[%s3022] sm:$0xf]
      %v3024 = vld [vmem:[%s3022 + $0x4] sm:$0x3]
      %v3027 = vunpack.c.l.b16 %v3023
      %v3028 = vunpack.c.l.b16 %v3024
      %v3029 = vpack.c.b16 %v3028, %v3027
      %v3030 = vsel %vm1307, %v2991, 0
      %v3032 = vsel %vm1307, %v2993, 0
      %v3034 = vsel %vm1307, %v2995, 0
      %v3036 = vsel %vm1307, %v2997, 0
      %v3038 = vsel %vm1307, %v2999, 0
      %v3040 = vsel %vm1307, %v3001, 0
      %v3042 = vsel %vm1307, %v3003, 0
      %v3044 = vsel %vm1307, %v3005, 0
      %v3046 = vsel %vm1307, %v3007, 0
      %v3048 = vsel %vm1307, %v3009, 0
      %v3050 = vsel %vm1307, %v3011, 0
      %v3052 = vsel %vm1307, %v3013, 0
      %v3054 = vsel %vm1307, %v3015, 0
      %v3056 = vsel %vm1307, %v3017, 0
      %v3058 = vsel %vm1307, %v3019, 0
      %v3060 = vsel %vm1307, %v3021, 0
      %v3063 = vsel %vm1340, %v3029, 0
      %3065 = vmatprep.subr.bf16.mxu0 0
      %3066 = vmatpush1.bf16.msra.mxu0 0
      %3067 = vmatprep.subr.bf16.mxu0 0
      %3068 = vmatpush1.bf16.msra.mxu0 0
      %3069 = vmatprep.subr.bf16.mxu0 0
      %3070 = vmatpush1.bf16.msra.mxu0 0
      %3071 = vmatprep.subr.bf16.mxu0 0
      %3072 = vmatpush1.bf16.msra.mxu0 0
      %3073 = vmatprep.subr.bf16.mxu0 0
      %3074 = vmatpush1.bf16.msra.mxu0 0
      %3075 = vmatprep.subr.bf16.mxu0 0
      %3076 = vmatpush1.bf16.msra.mxu0 0
      %3077 = vmatprep.subr.bf16.mxu0 0
      %3078 = vmatpush1.bf16.msra.mxu0 0
      %3079 = vmatprep.subr.bf16.mxu0 0
      %3080 = vmatpush1.bf16.msra.mxu0 %v3063
      %3081 = vmatprep.subr.bf16.mxu0 0
      %3082 = vmatpush2.bf16.msra.mxu0 0
      %3083 = vmatprep.subr.bf16.mxu0 0
      %3084 = vmatpush2.bf16.msra.mxu0 0
      %3085 = vmatprep.subr.bf16.mxu0 0
      %3086 = vmatpush2.bf16.msra.mxu0 0
      %3087 = vmatprep.subr.bf16.mxu0 0
      %3088 = vmatpush2.bf16.msra.mxu0 0
      %3089 = vmatprep.subr.bf16.mxu0 0
      %3090 = vmatpush2.bf16.msra.mxu0 0
      %3091 = vmatprep.subr.bf16.mxu0 0
      %3092 = vmatpush2.bf16.msra.mxu0 0
      %3093 = vmatprep.subr.bf16.mxu0 0
      %3094 = vmatpush2.bf16.msra.mxu0 0
      %3095 = vmatprep.subr.bf16.mxu0 0
      %3096 = vmatpush2.bf16.msra.mxu0 0
      %3097 = vmatprep.mubr.bf16.mxu0 0
      %3098 = vmatmul.mubr.bf16.gmra.mxu0 %v3030
      %v3099 = vpop.f32.mrf.mxu0
      %v3100 = vadd.f32 0.0, %v3099
      %v3101 = vpop.f32.mrf.mxu0
      %v3102 = vpop.f32.mrf.mxu0
      %v3103 = vadd.f32 0.0, %v3102
      %v3104 = vpop.f32.mrf.mxu0
      %3105 = vmatprep.mubr.bf16.mxu0 0
      %3106 = vmatmul.mubr.bf16.gmra.mxu0 %v3032
      %v3107 = vpop.f32.mrf.mxu0
      %v3108 = vadd.f32 0.0, %v3107
      %v3109 = vpop.f32.mrf.mxu0
      %v3110 = vpop.f32.mrf.mxu0
      %v3111 = vadd.f32 0.0, %v3110
      %v3112 = vpop.f32.mrf.mxu0
      %3113 = vmatprep.mubr.bf16.mxu0 0
      %3114 = vmatmul.mubr.bf16.gmra.mxu0 %v3034
      %v3115 = vpop.f32.mrf.mxu0
      %v3116 = vadd.f32 0.0, %v3115
      %v3117 = vpop.f32.mrf.mxu0
      %v3118 = vpop.f32.mrf.mxu0
      %v3119 = vadd.f32 0.0, %v3118
      %v3120 = vpop.f32.mrf.mxu0
      %3121 = vmatprep.mubr.bf16.mxu0 0
      %3122 = vmatmul.mubr.bf16.gmra.mxu0 %v3036
      %v3123 = vpop.f32.mrf.mxu0
      %v3124 = vadd.f32 0.0, %v3123
      %v3125 = vpop.f32.mrf.mxu0
      %v3126 = vpop.f32.mrf.mxu0
      %v3127 = vadd.f32 0.0, %v3126
      %v3128 = vpop.f32.mrf.mxu0
      %3129 = vmatprep.mubr.bf16.mxu0 0
      %3130 = vmatmul.mubr.bf16.gmra.mxu0 %v3038
      %v3131 = vpop.f32.mrf.mxu0
      %v3132 = vadd.f32 0.0, %v3131
      %v3133 = vpop.f32.mrf.mxu0
      %v3134 = vpop.f32.mrf.mxu0
      %v3135 = vadd.f32 0.0, %v3134
      %v3136 = vpop.f32.mrf.mxu0
      %3137 = vmatprep.mubr.bf16.mxu0 0
      %3138 = vmatmul.mubr.bf16.gmra.mxu0 %v3040
      %v3139 = vpop.f32.mrf.mxu0
      %v3140 = vadd.f32 0.0, %v3139
      %v3141 = vpop.f32.mrf.mxu0
      %v3142 = vpop.f32.mrf.mxu0
      %v3143 = vadd.f32 0.0, %v3142
      %v3144 = vpop.f32.mrf.mxu0
      %3145 = vmatprep.mubr.bf16.mxu0 0
      %3146 = vmatmul.mubr.bf16.gmra.mxu0 %v3042
      %v3147 = vpop.f32.mrf.mxu0
      %v3148 = vadd.f32 0.0, %v3147
      %v3149 = vpop.f32.mrf.mxu0
      %v3150 = vpop.f32.mrf.mxu0
      %v3151 = vadd.f32 0.0, %v3150
      %v3152 = vpop.f32.mrf.mxu0
      %3153 = vmatprep.mubr.bf16.mxu0 0
      %3154 = vmatmul.mubr.bf16.gmra.mxu0 %v3044
      %v3155 = vpop.f32.mrf.mxu0
      %v3156 = vadd.f32 0.0, %v3155
      %v3157 = vpop.f32.mrf.mxu0
      %v3158 = vpop.f32.mrf.mxu0
      %v3159 = vadd.f32 0.0, %v3158
      %v3160 = vpop.f32.mrf.mxu0
      %3161 = vmatprep.mubr.bf16.mxu0 0
      %3162 = vmatmul.mubr.bf16.gmra.mxu0 %v3046
      %v3163 = vpop.f32.mrf.mxu0
      %v3164 = vadd.f32 0.0, %v3163
      %v3165 = vpop.f32.mrf.mxu0
      %v3166 = vpop.f32.mrf.mxu0
      %v3167 = vadd.f32 0.0, %v3166
      %v3168 = vpop.f32.mrf.mxu0
      %3169 = vmatprep.mubr.bf16.mxu0 0
      %3170 = vmatmul.mubr.bf16.gmra.mxu0 %v3048
      %v3171 = vpop.f32.mrf.mxu0
      %v3172 = vadd.f32 0.0, %v3171
      %v3173 = vpop.f32.mrf.mxu0
      %v3174 = vpop.f32.mrf.mxu0
      %v3175 = vadd.f32 0.0, %v3174
      %v3176 = vpop.f32.mrf.mxu0
      %3177 = vmatprep.mubr.bf16.mxu0 0
      %3178 = vmatmul.mubr.bf16.gmra.mxu0 %v3050
      %v3179 = vpop.f32.mrf.mxu0
      %v3180 = vadd.f32 0.0, %v3179
      %v3181 = vpop.f32.mrf.mxu0
      %v3182 = vpop.f32.mrf.mxu0
      %v3183 = vadd.f32 0.0, %v3182
      %v3184 = vpop.f32.mrf.mxu0
      %3185 = vmatprep.mubr.bf16.mxu0 0
      %3186 = vmatmul.mubr.bf16.gmra.mxu0 %v3052
      %v3187 = vpop.f32.mrf.mxu0
      %v3188 = vadd.f32 0.0, %v3187
      %v3189 = vpop.f32.mrf.mxu0
      %v3190 = vpop.f32.mrf.mxu0
      %v3191 = vadd.f32 0.0, %v3190
      %v3192 = vpop.f32.mrf.mxu0
      %3193 = vmatprep.mubr.bf16.mxu0 0
      %3194 = vmatmul.mubr.bf16.gmra.mxu0 %v3054
      %v3195 = vpop.f32.mrf.mxu0
      %v3196 = vadd.f32 0.0, %v3195
      %v3197 = vpop.f32.mrf.mxu0
      %v3198 = vpop.f32.mrf.mxu0
      %v3199 = vadd.f32 0.0, %v3198
      %v3200 = vpop.f32.mrf.mxu0
      %3201 = vmatprep.mubr.bf16.mxu0 0
      %3202 = vmatmul.mubr.bf16.gmra.mxu0 %v3056
      %v3203 = vpop.f32.mrf.mxu0
      %v3204 = vadd.f32 0.0, %v3203
      %v3205 = vpop.f32.mrf.mxu0
      %v3206 = vpop.f32.mrf.mxu0
      %v3207 = vadd.f32 0.0, %v3206
      %v3208 = vpop.f32.mrf.mxu0
      %3209 = vmatprep.mubr.bf16.mxu0 0
      %3210 = vmatmul.mubr.bf16.gmra.mxu0 %v3058
      %v3211 = vpop.f32.mrf.mxu0
      %v3212 = vadd.f32 0.0, %v3211
      %v3213 = vpop.f32.mrf.mxu0
      %v3214 = vpop.f32.mrf.mxu0
      %v3215 = vadd.f32 0.0, %v3214
      %v3216 = vpop.f32.mrf.mxu0
      %3217 = vmatprep.mubr.bf16.mxu0 0
      %3218 = vmatmul.mubr.bf16.gmra.mxu0 %v3060
      %v3219 = vpop.f32.mrf.mxu0
      %v3220 = vadd.f32 0.0, %v3219
      %v3221 = vpop.f32.mrf.mxu0
      %v3222 = vpop.f32.mrf.mxu0
      %v3223 = vadd.f32 0.0, %v3222
      %v3224 = vpop.f32.mrf.mxu0
      %3225 = vdwg.mxu0
      %v3226 = vld [vmem:[#allocation2] sm:$0xff]
      %v3227 = vld [vmem:[#allocation2 + $0x8] sm:$0xff]
      %v3228 = vld [vmem:[#allocation2 + $0x10] sm:$0xff]
      %v3229 = vld [vmem:[#allocation2 + $0x18] sm:$0xff]
      %v3230 = vld [vmem:[#allocation2 + $0x20] sm:$0xff]
      %v3231 = vld [vmem:[#allocation2 + $0x28] sm:$0xff]
      %v3232 = vld [vmem:[#allocation2 + $0x30] sm:$0xff]
      %v3233 = vld [vmem:[#allocation2 + $0x38] sm:$0xff]
      %v3234 = vld [vmem:[#allocation2 + $0x40] sm:$0xff]
      %v3235 = vld [vmem:[#allocation2 + $0x48] sm:$0xff]
      %v3236 = vld [vmem:[#allocation2 + $0x50] sm:$0xff]
      %v3237 = vld [vmem:[#allocation2 + $0x58] sm:$0xff]
      %v3238 = vld [vmem:[#allocation2 + $0x60] sm:$0xff]
      %v3239 = vld [vmem:[#allocation2 + $0x68] sm:$0xff]
      %v3240 = vld [vmem:[#allocation2 + $0x70] sm:$0xff]
      %v3241 = vld [vmem:[#allocation2 + $0x78] sm:$0xff]
      %v3242 = vld [vmem:[#allocation2 + $0x80] sm:$0xff]
      %v3243 = vld [vmem:[#allocation2 + $0x88] sm:$0xff]
      %v3244 = vld [vmem:[#allocation2 + $0x90] sm:$0xff]
      %v3245 = vld [vmem:[#allocation2 + $0x98] sm:$0xff]
      %v3246 = vld [vmem:[#allocation2 + $0xa0] sm:$0xff]
      %v3247 = vld [vmem:[#allocation2 + $0xa8] sm:$0xff]
      %v3248 = vld [vmem:[#allocation2 + $0xb0] sm:$0xff]
      %v3249 = vld [vmem:[#allocation2 + $0xb8] sm:$0xff]
      %v3250 = vld [vmem:[#allocation2 + $0xc0] sm:$0xff]
      %v3251 = vld [vmem:[#allocation2 + $0xc8] sm:$0xff]
      %v3252 = vld [vmem:[#allocation2 + $0xd0] sm:$0xff]
      %v3253 = vld [vmem:[#allocation2 + $0xd8] sm:$0xff]
      %v3254 = vld [vmem:[#allocation2 + $0xe0] sm:$0xff]
      %v3255 = vld [vmem:[#allocation2 + $0xe8] sm:$0xff]
      %v3256 = vld [vmem:[#allocation2 + $0xf0] sm:$0xff]
      %v3257 = vld [vmem:[#allocation2 + $0xf8] sm:$0xff]
      %v3258 = vadd.f32 %v3226, %v3100
      %v3259 = vadd.f32 %v3227, %v3103
      %v3260 = vadd.f32 %v3228, %v3108
      %v3261 = vadd.f32 %v3229, %v3111
      %v3262 = vadd.f32 %v3230, %v3116
      %v3263 = vadd.f32 %v3231, %v3119
      %v3264 = vadd.f32 %v3232, %v3124
      %v3265 = vadd.f32 %v3233, %v3127
      %v3266 = vadd.f32 %v3234, %v3132
      %v3267 = vadd.f32 %v3235, %v3135
      %v3268 = vadd.f32 %v3236, %v3140
      %v3269 = vadd.f32 %v3237, %v3143
      %v3270 = vadd.f32 %v3238, %v3148
      %v3271 = vadd.f32 %v3239, %v3151
      %v3272 = vadd.f32 %v3240, %v3156
      %v3273 = vadd.f32 %v3241, %v3159
      %v3274 = vadd.f32 %v3242, %v3164
      %v3275 = vadd.f32 %v3243, %v3167
      %v3276 = vadd.f32 %v3244, %v3172
      %v3277 = vadd.f32 %v3245, %v3175
      %v3278 = vadd.f32 %v3246, %v3180
      %v3279 = vadd.f32 %v3247, %v3183
      %v3280 = vadd.f32 %v3248, %v3188
      %v3281 = vadd.f32 %v3249, %v3191
      %v3282 = vadd.f32 %v3250, %v3196
      %v3283 = vadd.f32 %v3251, %v3199
      %v3284 = vadd.f32 %v3252, %v3204
      %v3285 = vadd.f32 %v3253, %v3207
      %v3286 = vadd.f32 %v3254, %v3212
      %v3287 = vadd.f32 %v3255, %v3215
      %v3288 = vadd.f32 %v3256, %v3220
      %v3289 = vadd.f32 %v3257, %v3223
      %3290 = vst.msk [vmem:[#allocation2] sm:$0xff] %vm672, %v3258
      %3291 = vst.msk [vmem:[#allocation2 + $0x8] sm:$0xff] %vm672, %v3259
      %3292 = vst.msk [vmem:[#allocation2 + $0x10] sm:$0xff] %vm672, %v3260
      %3293 = vst.msk [vmem:[#allocation2 + $0x18] sm:$0xff] %vm672, %v3261
      %3294 = vst.msk [vmem:[#allocation2 + $0x20] sm:$0xff] %vm672, %v3262
      %3295 = vst.msk [vmem:[#allocation2 + $0x28] sm:$0xff] %vm672, %v3263
      %3296 = vst.msk [vmem:[#allocation2 + $0x30] sm:$0xff] %vm672, %v3264
      %3297 = vst.msk [vmem:[#allocation2 + $0x38] sm:$0xff] %vm672, %v3265
      %3298 = vst.msk [vmem:[#allocation2 + $0x40] sm:$0xff] %vm672, %v3266
      %3299 = vst.msk [vmem:[#allocation2 + $0x48] sm:$0xff] %vm672, %v3267
      %3300 = vst.msk [vmem:[#allocation2 + $0x50] sm:$0xff] %vm672, %v3268
      %3301 = vst.msk [vmem:[#allocation2 + $0x58] sm:$0xff] %vm672, %v3269
      %3302 = vst.msk [vmem:[#allocation2 + $0x60] sm:$0xff] %vm672, %v3270
      %3303 = vst.msk [vmem:[#allocation2 + $0x68] sm:$0xff] %vm672, %v3271
      %3304 = vst.msk [vmem:[#allocation2 + $0x70] sm:$0xff] %vm672, %v3272
      %3305 = vst.msk [vmem:[#allocation2 + $0x78] sm:$0xff] %vm672, %v3273
      %3306 = vst.msk [vmem:[#allocation2 + $0x80] sm:$0xff] %vm672, %v3274
      %3307 = vst.msk [vmem:[#allocation2 + $0x88] sm:$0xff] %vm672, %v3275
      %3308 = vst.msk [vmem:[#allocation2 + $0x90] sm:$0xff] %vm672, %v3276
      %3309 = vst.msk [vmem:[#allocation2 + $0x98] sm:$0xff] %vm672, %v3277
      %3310 = vst.msk [vmem:[#allocation2 + $0xa0] sm:$0xff] %vm672, %v3278
      %3311 = vst.msk [vmem:[#allocation2 + $0xa8] sm:$0xff] %vm672, %v3279
      %3312 = vst.msk [vmem:[#allocation2 + $0xb0] sm:$0xff] %vm672, %v3280
      %3313 = vst.msk [vmem:[#allocation2 + $0xb8] sm:$0xff] %vm672, %v3281
      %3314 = vst.msk [vmem:[#allocation2 + $0xc0] sm:$0xff] %vm672, %v3282
      %3315 = vst.msk [vmem:[#allocation2 + $0xc8] sm:$0xff] %vm672, %v3283
      %3316 = vst.msk [vmem:[#allocation2 + $0xd0] sm:$0xff] %vm672, %v3284
      %3317 = vst.msk [vmem:[#allocation2 + $0xd8] sm:$0xff] %vm672, %v3285
      %3318 = vst.msk [vmem:[#allocation2 + $0xe0] sm:$0xff] %vm672, %v3286
      %3319 = vst.msk [vmem:[#allocation2 + $0xe8] sm:$0xff] %vm672, %v3287
      %3320 = vst.msk [vmem:[#allocation2 + $0xf0] sm:$0xff] %vm672, %v3288
      %3321 = vst.msk [vmem:[#allocation2 + $0xf8] sm:$0xff] %vm672, %v3289
      %vm3322 = vcmask 27648
      %3323 = vst.msk [vmem:[#allocation3] sm:$0xf] %vm3322, 0
      %3324 = vst.msk [vmem:[#allocation3 + $0x4] sm:$0xf] %vm3322, 0
      %vm3325 = vcmask 24576
      %3326 = vst.msk [vmem:[#allocation3 + $0x8] sm:$0x1] %vm3325, 0
      %s3327 = scalar_lea.vmem [#allocation3], 204
      %3328 = vst.msk [vmem:[%s3327] sm:$0xf] %vm3322, 0
      %3329 = vst.msk [vmem:[%s3327 + $0x4] sm:$0xf] %vm3322, 0
      %3330 = vst.msk [vmem:[%s3327 + $0x8] sm:$0x1] %vm3325, 0
      %vm3331 = vcmask 24576
      %vm3332 = vsmask.f32 256
      %vm3333 = vmand %vm3331, %vm3332
      %v3334 = vld [vmem:[#allocation3] sm:$0x1]
      %v3335 = vsel %vm3333, 0, %v3334
      %3336 = vst [vmem:[#allocation3] sm:$0x1] %v3335
      %v3337 = vld [vmem:[#allocation3 + $0xc] sm:$0x1]
      %v3338 = vsel %vm3333, 0, %v3337
      %3339 = vst [vmem:[#allocation3 + $0xc] sm:$0x1] %v3338
      %v3340 = vld [vmem:[#allocation3 + $0x18] sm:$0x1]
      %v3341 = vsel %vm3333, 0, %v3340
      %3342 = vst [vmem:[#allocation3 + $0x18] sm:$0x1] %v3341
      %v3343 = vld [vmem:[#allocation3 + $0x24] sm:$0x1]
      %v3344 = vsel %vm3333, 0, %v3343
      %3345 = vst [vmem:[#allocation3 + $0x24] sm:$0x1] %v3344
      %v3346 = vld [vmem:[#allocation3 + $0x30] sm:$0x1]
      %v3347 = vsel %vm3333, 0, %v3346
      %3348 = vst [vmem:[#allocation3 + $0x30] sm:$0x1] %v3347
      %v3349 = vld [vmem:[#allocation3 + $0x3c] sm:$0x1]
      %v3350 = vsel %vm3333, 0, %v3349
      %3351 = vst [vmem:[#allocation3 + $0x3c] sm:$0x1] %v3350
      %v3352 = vld [vmem:[#allocation3 + $0x48] sm:$0x1]
      %v3353 = vsel %vm3333, 0, %v3352
      %3354 = vst [vmem:[#allocation3 + $0x48] sm:$0x1] %v3353
      %v3355 = vld [vmem:[#allocation3 + $0x54] sm:$0x1]
      %v3356 = vsel %vm3333, 0, %v3355
      %3357 = vst [vmem:[#allocation3 + $0x54] sm:$0x1] %v3356
      %v3358 = vld [vmem:[#allocation3 + $0x60] sm:$0x1]
      %v3359 = vsel %vm3333, 0, %v3358
      %3360 = vst [vmem:[#allocation3 + $0x60] sm:$0x1] %v3359
      %v3361 = vld [vmem:[#allocation3 + $0x6c] sm:$0x1]
      %v3362 = vsel %vm3333, 0, %v3361
      %3363 = vst [vmem:[#allocation3 + $0x6c] sm:$0x1] %v3362
      %v3364 = vld [vmem:[#allocation3 + $0x78] sm:$0x1]
      %v3365 = vsel %vm3333, 0, %v3364
      %3366 = vst [vmem:[#allocation3 + $0x78] sm:$0x1] %v3365
      %v3367 = vld [vmem:[#allocation3 + $0x84] sm:$0x1]
      %v3368 = vsel %vm3333, 0, %v3367
      %3369 = vst [vmem:[#allocation3 + $0x84] sm:$0x1] %v3368
      %v3370 = vld [vmem:[#allocation3 + $0x90] sm:$0x1]
      %v3371 = vsel %vm3333, 0, %v3370
      %3372 = vst [vmem:[#allocation3 + $0x90] sm:$0x1] %v3371
      %v3373 = vld [vmem:[#allocation3 + $0x9c] sm:$0x1]
      %v3374 = vsel %vm3333, 0, %v3373
      %3375 = vst [vmem:[#allocation3 + $0x9c] sm:$0x1] %v3374
      %v3376 = vld [vmem:[#allocation3 + $0xa8] sm:$0x1]
      %v3377 = vsel %vm3333, 0, %v3376
      %3378 = vst [vmem:[#allocation3 + $0xa8] sm:$0x1] %v3377
      %v3379 = vld [vmem:[#allocation3 + $0xb4] sm:$0x1]
      %v3380 = vsel %vm3333, 0, %v3379
      %3381 = vst [vmem:[#allocation3 + $0xb4] sm:$0x1] %v3380
      %v3382 = vld [vmem:[#allocation3 + $0xc0] sm:$0x1]
      %v3383 = vsel %vm3333, 0, %v3382
      %3384 = vst [vmem:[#allocation3 + $0xc0] sm:$0x1] %v3383
      %v3385 = vld [vmem:[#allocation3 + $0xcc] sm:$0x1]
      %v3386 = vsel %vm3333, 0, %v3385
      %3387 = vst [vmem:[#allocation3 + $0xcc] sm:$0x1] %v3386
      %vm3388 = vsmask.f32 7938
      %vm3389 = vmand %vm3331, %vm3388
      %v3390 = vld [vmem:[#allocation3 + $0x8] sm:$0x1]
      %v3391 = vsel %vm3389, 0, %v3390
      %3392 = vst [vmem:[#allocation3 + $0x8] sm:$0x1] %v3391
      %v3393 = vld [vmem:[#allocation3 + $0x14] sm:$0x1]
      %v3394 = vsel %vm3389, 0, %v3393
      %3395 = vst [vmem:[#allocation3 + $0x14] sm:$0x1] %v3394
      %v3396 = vld [vmem:[#allocation3 + $0x20] sm:$0x1]
      %v3397 = vsel %vm3389, 0, %v3396
      %3398 = vst [vmem:[#allocation3 + $0x20] sm:$0x1] %v3397
      %v3399 = vld [vmem:[#allocation3 + $0x2c] sm:$0x1]
      %v3400 = vsel %vm3389, 0, %v3399
      %3401 = vst [vmem:[#allocation3 + $0x2c] sm:$0x1] %v3400
      %v3402 = vld [vmem:[#allocation3 + $0x38] sm:$0x1]
      %v3403 = vsel %vm3389, 0, %v3402
      %3404 = vst [vmem:[#allocation3 + $0x38] sm:$0x1] %v3403
      %v3405 = vld [vmem:[#allocation3 + $0x44] sm:$0x1]
      %v3406 = vsel %vm3389, 0, %v3405
      %3407 = vst [vmem:[#allocation3 + $0x44] sm:$0x1] %v3406
      %v3408 = vld [vmem:[#allocation3 + $0x50] sm:$0x1]
      %v3409 = vsel %vm3389, 0, %v3408
      %3410 = vst [vmem:[#allocation3 + $0x50] sm:$0x1] %v3409
      %v3411 = vld [vmem:[#allocation3 + $0x5c] sm:$0x1]
      %v3412 = vsel %vm3389, 0, %v3411
      %3413 = vst [vmem:[#allocation3 + $0x5c] sm:$0x1] %v3412
      %v3414 = vld [vmem:[#allocation3 + $0x68] sm:$0x1]
      %v3415 = vsel %vm3389, 0, %v3414
      %3416 = vst [vmem:[#allocation3 + $0x68] sm:$0x1] %v3415
      %v3417 = vld [vmem:[#allocation3 + $0x74] sm:$0x1]
      %v3418 = vsel %vm3389, 0, %v3417
      %3419 = vst [vmem:[#allocation3 + $0x74] sm:$0x1] %v3418
      %v3420 = vld [vmem:[#allocation3 + $0x80] sm:$0x1]
      %v3421 = vsel %vm3389, 0, %v3420
      %3422 = vst [vmem:[#allocation3 + $0x80] sm:$0x1] %v3421
      %v3423 = vld [vmem:[#allocation3 + $0x8c] sm:$0x1]
      %v3424 = vsel %vm3389, 0, %v3423
      %3425 = vst [vmem:[#allocation3 + $0x8c] sm:$0x1] %v3424
      %v3426 = vld [vmem:[#allocation3 + $0x98] sm:$0x1]
      %v3427 = vsel %vm3389, 0, %v3426
      %3428 = vst [vmem:[#allocation3 + $0x98] sm:$0x1] %v3427
      %v3429 = vld [vmem:[#allocation3 + $0xa4] sm:$0x1]
      %v3430 = vsel %vm3389, 0, %v3429
      %3431 = vst [vmem:[#allocation3 + $0xa4] sm:$0x1] %v3430
      %v3432 = vld [vmem:[#allocation3 + $0xb0] sm:$0x1]
      %v3433 = vsel %vm3389, 0, %v3432
      %3434 = vst [vmem:[#allocation3 + $0xb0] sm:$0x1] %v3433
      %v3435 = vld [vmem:[#allocation3 + $0xbc] sm:$0x1]
      %v3436 = vsel %vm3389, 0, %v3435
      %3437 = vst [vmem:[#allocation3 + $0xbc] sm:$0x1] %v3436
      %v3438 = vld [vmem:[#allocation3 + $0xc8] sm:$0x1]
      %v3439 = vsel %vm3389, 0, %v3438
      %3440 = vst [vmem:[#allocation3 + $0xc8] sm:$0x1] %v3439
      %v3441 = vld [vmem:[#allocation3 + $0xd4] sm:$0x1]
      %v3442 = vsel %vm3389, 0, %v3441
      %3443 = vst [vmem:[#allocation3 + $0xd4] sm:$0x1] %v3442
      %v3444 = vld [vmem:[#allocation2] sm:$0xff]
      %v3445 = vld [vmem:[#allocation2 + $0x8] sm:$0xff]
      %v3446 = vld [vmem:[#allocation2 + $0x10] sm:$0xff]
      %v3447 = vld [vmem:[#allocation2 + $0x18] sm:$0xff]
      %v3448 = vld [vmem:[#allocation2 + $0x20] sm:$0xff]
      %v3449 = vld [vmem:[#allocation2 + $0x28] sm:$0xff]
      %v3450 = vld [vmem:[#allocation2 + $0x30] sm:$0xff]
      %v3451 = vld [vmem:[#allocation2 + $0x38] sm:$0xff]
      %v3452 = vld [vmem:[#allocation2 + $0x40] sm:$0xff]
      %v3453 = vld [vmem:[#allocation2 + $0x48] sm:$0xff]
      %v3454 = vld [vmem:[#allocation2 + $0x50] sm:$0xff]
      %v3455 = vld [vmem:[#allocation2 + $0x58] sm:$0xff]
      %v3456 = vld [vmem:[#allocation2 + $0x60] sm:$0xff]
      %v3457 = vld [vmem:[#allocation2 + $0x68] sm:$0xff]
      %v3458 = vld [vmem:[#allocation2 + $0x70] sm:$0xff]
      %v3459 = vld [vmem:[#allocation2 + $0x78] sm:$0xff]
      %v3460 = vld [vmem:[#allocation2 + $0x80] sm:$0xff]
      %v3461 = vld [vmem:[#allocation2 + $0x88] sm:$0xff]
      %v3462 = vld [vmem:[#allocation2 + $0x90] sm:$0xff]
      %v3463 = vld [vmem:[#allocation2 + $0x98] sm:$0xff]
      %v3464 = vld [vmem:[#allocation2 + $0xa0] sm:$0xff]
      %v3465 = vld [vmem:[#allocation2 + $0xa8] sm:$0xff]
      %v3466 = vld [vmem:[#allocation2 + $0xb0] sm:$0xff]
      %v3467 = vld [vmem:[#allocation2 + $0xb8] sm:$0xff]
      %v3468 = vld [vmem:[#allocation2 + $0xc0] sm:$0xff]
      %v3469 = vld [vmem:[#allocation2 + $0xc8] sm:$0xff]
      %v3470 = vld [vmem:[#allocation2 + $0xd0] sm:$0xff]
      %v3471 = vld [vmem:[#allocation2 + $0xd8] sm:$0xff]
      %v3472 = vld [vmem:[#allocation2 + $0xe0] sm:$0xff]
      %v3473 = vld [vmem:[#allocation2 + $0xe8] sm:$0xff]
      %v3474 = vld [vmem:[#allocation2 + $0xf0] sm:$0xff]
      %v3475 = vld [vmem:[#allocation2 + $0xf8] sm:$0xff]
      %v3476 = vmax.f32 %v3444, 0.0
      %v3477 = vmax.f32 %v3445, 0.0
      %v3478 = vmax.f32 %v3446, 0.0
      %v3479 = vmax.f32 %v3447, 0.0
      %v3480 = vmax.f32 %v3448, 0.0
      %v3481 = vmax.f32 %v3449, 0.0
      %v3482 = vmax.f32 %v3450, 0.0
      %v3483 = vmax.f32 %v3451, 0.0
      %v3484 = vmax.f32 %v3452, 0.0
      %v3485 = vmax.f32 %v3453, 0.0
      %v3486 = vmax.f32 %v3454, 0.0
      %v3487 = vmax.f32 %v3455, 0.0
      %v3488 = vmax.f32 %v3456, 0.0
      %v3489 = vmax.f32 %v3457, 0.0
      %v3490 = vmax.f32 %v3458, 0.0
      %v3491 = vmax.f32 %v3459, 0.0
      %v3492 = vmax.f32 %v3460, 0.0
      %v3493 = vmax.f32 %v3461, 0.0
      %v3494 = vmax.f32 %v3462, 0.0
      %v3495 = vmax.f32 %v3463, 0.0
      %v3496 = vmax.f32 %v3464, 0.0
      %v3497 = vmax.f32 %v3465, 0.0
      %v3498 = vmax.f32 %v3466, 0.0
      %v3499 = vmax.f32 %v3467, 0.0
      %v3500 = vmax.f32 %v3468, 0.0
      %v3501 = vmax.f32 %v3469, 0.0
      %v3502 = vmax.f32 %v3470, 0.0
      %v3503 = vmax.f32 %v3471, 0.0
      %v3504 = vmax.f32 %v3472, 0.0
      %v3505 = vmax.f32 %v3473, 0.0
      %v3506 = vmax.f32 %v3474, 0.0
      %v3507 = vmax.f32 %v3475, 0.0
      %v3508 = vpack.c.bf16 %v3477, %v3476
      %v3509 = vpack.c.bf16 %v3479, %v3478
      %v3510 = vpack.c.bf16 %v3481, %v3480
      %v3511 = vpack.c.bf16 %v3483, %v3482
      %v3512 = vpack.c.bf16 %v3485, %v3484
      %v3513 = vpack.c.bf16 %v3487, %v3486
      %v3514 = vpack.c.bf16 %v3489, %v3488
      %v3515 = vpack.c.bf16 %v3491, %v3490
      %v3516 = vpack.c.bf16 %v3493, %v3492
      %v3517 = vpack.c.bf16 %v3495, %v3494
      %v3518 = vpack.c.bf16 %v3497, %v3496
      %v3519 = vpack.c.bf16 %v3499, %v3498
      %v3520 = vpack.c.bf16 %v3501, %v3500
      %v3521 = vpack.c.bf16 %v3503, %v3502
      %v3522 = vpack.c.bf16 %v3505, %v3504
      %v3523 = vpack.c.bf16 %v3507, %v3506
      %v3540 = vunpack.c.l.b16 %v3508
      %v3541 = vunpack.c.h.b16 %v3508
      %v3542 = vunpack.c.l.b16 %v3509
      %v3543 = vunpack.c.h.b16 %v3509
      %v3544 = vunpack.c.l.b16 %v3510
      %v3545 = vunpack.c.h.b16 %v3510
      %v3546 = vunpack.c.l.b16 %v3511
      %v3547 = vunpack.c.h.b16 %v3511
      %v3548 = vunpack.c.l.b16 %v3512
      %v3549 = vunpack.c.h.b16 %v3512
      %v3550 = vunpack.c.l.b16 %v3513
      %v3551 = vunpack.c.h.b16 %v3513
      %v3552 = vunpack.c.l.b16 %v3514
      %v3553 = vunpack.c.h.b16 %v3514
      %v3554 = vunpack.c.l.b16 %v3515
      %v3555 = vunpack.c.h.b16 %v3515
      %v3556 = vunpack.c.l.b16 %v3516
      %v3557 = vunpack.c.h.b16 %v3516
      %v3558 = vunpack.c.l.b16 %v3517
      %v3559 = vunpack.c.h.b16 %v3517
      %v3560 = vunpack.c.l.b16 %v3518
      %v3561 = vunpack.c.h.b16 %v3518
      %v3562 = vunpack.c.l.b16 %v3519
      %v3563 = vunpack.c.h.b16 %v3519
      %v3564 = vunpack.c.l.b16 %v3520
      %v3565 = vunpack.c.h.b16 %v3520
      %v3566 = vunpack.c.l.b16 %v3521
      %v3567 = vunpack.c.h.b16 %v3521
      %v3568 = vunpack.c.l.b16 %v3522
      %v3569 = vunpack.c.h.b16 %v3522
      %v3570 = vunpack.c.l.b16 %v3523
      %v3571 = vunpack.c.h.b16 %v3523
      %v3572 = vpack.c.b16 %v3540, %v3540
      %v3573 = vpack.c.b16 %v3541, %v3541
      %v3574 = vpack.c.b16 %v3542, %v3542
      %v3575 = vpack.c.b16 %v3543, %v3543
      %v3576 = vpack.c.b16 %v3544, %v3544
      %v3577 = vpack.c.b16 %v3545, %v3545
      %v3578 = vpack.c.b16 %v3546, %v3546
      %v3579 = vpack.c.b16 %v3547, %v3547
      %v3580 = vpack.c.b16 %v3548, %v3548
      %v3581 = vpack.c.b16 %v3549, %v3549
      %v3582 = vpack.c.b16 %v3550, %v3550
      %v3583 = vpack.c.b16 %v3551, %v3551
      %v3584 = vpack.c.b16 %v3552, %v3552
      %v3585 = vpack.c.b16 %v3553, %v3553
      %v3586 = vpack.c.b16 %v3554, %v3554
      %v3587 = vpack.c.b16 %v3555, %v3555
      %v3588 = vpack.c.b16 %v3556, %v3556
      %v3589 = vpack.c.b16 %v3557, %v3557
      %v3590 = vpack.c.b16 %v3558, %v3558
      %v3591 = vpack.c.b16 %v3559, %v3559
      %v3592 = vpack.c.b16 %v3560, %v3560
      %v3593 = vpack.c.b16 %v3561, %v3561
      %v3594 = vpack.c.b16 %v3562, %v3562
      %v3595 = vpack.c.b16 %v3563, %v3563
      %v3596 = vpack.c.b16 %v3564, %v3564
      %v3597 = vpack.c.b16 %v3565, %v3565
      %v3598 = vpack.c.b16 %v3566, %v3566
      %v3599 = vpack.c.b16 %v3567, %v3567
      %v3600 = vpack.c.b16 %v3568, %v3568
      %v3601 = vpack.c.b16 %v3569, %v3569
      %v3602 = vpack.c.b16 %v3570, %v3570
      %v3603 = vpack.c.b16 %v3571, %v3571
      %vm3604 = vsmask.f32 4368
      %vm3605 = vmor %vm3332, %vm3604
      %v3607 = vshrl.u32 %v3572, 16
      %v3609 = vrot.slane %v3607, 7
      %v3610 = vshll.u32 %v3572, 16
      %v3612 = vor.u32 %v3609, %v3610
      %v3613 = vrot.slane %v3609, 4
      %v3615 = vshrl.u32 %v3573, 16
      %v3617 = vrot.slane %v3615, 7
      %v3618 = vshll.u32 %v3573, 16
      %v3620 = vor.u32 %v3617, %v3618
      %v3621 = vsel %vm3605, %v3613, %v3620
      %v3622 = vrot.slane %v3617, 4
      %v3624 = vshrl.u32 %v3574, 16
      %v3626 = vrot.slane %v3624, 7
      %v3627 = vshll.u32 %v3574, 16
      %v3629 = vor.u32 %v3626, %v3627
      %v3630 = vrot.slane %v3626, 4
      %v3632 = vshrl.u32 %v3575, 16
      %v3634 = vrot.slane %v3632, 7
      %v3635 = vshll.u32 %v3575, 16
      %v3637 = vor.u32 %v3634, %v3635
      %v3638 = vsel %vm3605, %v3630, %v3637
      %v3639 = vrot.slane %v3634, 4
      %v3641 = vshrl.u32 %v3576, 16
      %v3643 = vrot.slane %v3641, 7
      %v3644 = vshll.u32 %v3576, 16
      %v3646 = vor.u32 %v3643, %v3644
      %v3647 = vrot.slane %v3643, 4
      %v3649 = vshrl.u32 %v3577, 16
      %v3651 = vrot.slane %v3649, 7
      %v3652 = vshll.u32 %v3577, 16
      %v3654 = vor.u32 %v3651, %v3652
      %v3655 = vsel %vm3605, %v3647, %v3654
      %v3656 = vrot.slane %v3651, 4
      %v3658 = vshrl.u32 %v3578, 16
      %v3660 = vrot.slane %v3658, 7
      %v3661 = vshll.u32 %v3578, 16
      %v3663 = vor.u32 %v3660, %v3661
      %v3664 = vrot.slane %v3660, 4
      %v3666 = vshrl.u32 %v3579, 16
      %v3668 = vrot.slane %v3666, 7
      %v3669 = vshll.u32 %v3579, 16
      %v3671 = vor.u32 %v3668, %v3669
      %v3672 = vsel %vm3605, %v3664, %v3671
      %v3673 = vrot.slane %v3668, 4
      %v3675 = vshrl.u32 %v3580, 16
      %v3677 = vrot.slane %v3675, 7
      %v3678 = vshll.u32 %v3580, 16
      %v3680 = vor.u32 %v3677, %v3678
      %v3681 = vrot.slane %v3677, 4
      %v3683 = vshrl.u32 %v3581, 16
      %v3685 = vrot.slane %v3683, 7
      %v3686 = vshll.u32 %v3581, 16
      %v3688 = vor.u32 %v3685, %v3686
      %v3689 = vsel %vm3605, %v3681, %v3688
      %v3690 = vrot.slane %v3685, 4
      %v3692 = vshrl.u32 %v3582, 16
      %v3694 = vrot.slane %v3692, 7
      %v3695 = vshll.u32 %v3582, 16
      %v3697 = vor.u32 %v3694, %v3695
      %v3698 = vrot.slane %v3694, 4
      %v3700 = vshrl.u32 %v3583, 16
      %v3702 = vrot.slane %v3700, 7
      %v3703 = vshll.u32 %v3583, 16
      %v3705 = vor.u32 %v3702, %v3703
      %v3706 = vsel %vm3605, %v3698, %v3705
      %v3707 = vrot.slane %v3702, 4
      %v3709 = vshrl.u32 %v3584, 16
      %v3711 = vrot.slane %v3709, 7
      %v3712 = vshll.u32 %v3584, 16
      %v3714 = vor.u32 %v3711, %v3712
      %v3715 = vrot.slane %v3711, 4
      %v3717 = vshrl.u32 %v3585, 16
      %v3719 = vrot.slane %v3717, 7
      %v3720 = vshll.u32 %v3585, 16
      %v3722 = vor.u32 %v3719, %v3720
      %v3723 = vsel %vm3605, %v3715, %v3722
      %v3724 = vrot.slane %v3719, 4
      %v3726 = vshrl.u32 %v3586, 16
      %v3728 = vrot.slane %v3726, 7
      %v3729 = vshll.u32 %v3586, 16
      %v3731 = vor.u32 %v3728, %v3729
      %v3732 = vrot.slane %v3728, 4
      %v3734 = vshrl.u32 %v3587, 16
      %v3736 = vrot.slane %v3734, 7
      %v3737 = vshll.u32 %v3587, 16
      %v3739 = vor.u32 %v3736, %v3737
      %v3740 = vsel %vm3605, %v3732, %v3739
      %v3741 = vrot.slane %v3736, 4
      %v3743 = vshrl.u32 %v3588, 16
      %v3745 = vrot.slane %v3743, 7
      %v3746 = vshll.u32 %v3588, 16
      %v3748 = vor.u32 %v3745, %v3746
      %v3749 = vrot.slane %v3745, 4
      %v3751 = vshrl.u32 %v3589, 16
      %v3753 = vrot.slane %v3751, 7
      %v3754 = vshll.u32 %v3589, 16
      %v3756 = vor.u32 %v3753, %v3754
      %v3757 = vsel %vm3605, %v3749, %v3756
      %v3758 = vrot.slane %v3753, 4
      %v3760 = vshrl.u32 %v3590, 16
      %v3762 = vrot.slane %v3760, 7
      %v3763 = vshll.u32 %v3590, 16
      %v3765 = vor.u32 %v3762, %v3763
      %v3766 = vrot.slane %v3762, 4
      %v3768 = vshrl.u32 %v3591, 16
      %v3770 = vrot.slane %v3768, 7
      %v3771 = vshll.u32 %v3591, 16
      %v3773 = vor.u32 %v3770, %v3771
      %v3774 = vsel %vm3605, %v3766, %v3773
      %v3775 = vrot.slane %v3770, 4
      %v3777 = vshrl.u32 %v3592, 16
      %v3779 = vrot.slane %v3777, 7
      %v3780 = vshll.u32 %v3592, 16
      %v3782 = vor.u32 %v3779, %v3780
      %v3783 = vrot.slane %v3779, 4
      %v3785 = vshrl.u32 %v3593, 16
      %v3787 = vrot.slane %v3785, 7
      %v3788 = vshll.u32 %v3593, 16
      %v3790 = vor.u32 %v3787, %v3788
      %v3791 = vsel %vm3605, %v3783, %v3790
      %v3792 = vrot.slane %v3787, 4
      %v3794 = vshrl.u32 %v3594, 16
      %v3796 = vrot.slane %v3794, 7
      %v3797 = vshll.u32 %v3594, 16
      %v3799 = vor.u32 %v3796, %v3797
      %v3800 = vrot.slane %v3796, 4
      %v3802 = vshrl.u32 %v3595, 16
      %v3804 = vrot.slane %v3802, 7
      %v3805 = vshll.u32 %v3595, 16
      %v3807 = vor.u32 %v3804, %v3805
      %v3808 = vsel %vm3605, %v3800, %v3807
      %v3809 = vrot.slane %v3804, 4
      %v3811 = vshrl.u32 %v3596, 16
      %v3813 = vrot.slane %v3811, 7
      %v3814 = vshll.u32 %v3596, 16
      %v3816 = vor.u32 %v3813, %v3814
      %v3817 = vrot.slane %v3813, 4
      %v3819 = vshrl.u32 %v3597, 16
      %v3821 = vrot.slane %v3819, 7
      %v3822 = vshll.u32 %v3597, 16
      %v3824 = vor.u32 %v3821, %v3822
      %v3825 = vsel %vm3605, %v3817, %v3824
      %v3826 = vrot.slane %v3821, 4
      %v3828 = vshrl.u32 %v3598, 16
      %v3830 = vrot.slane %v3828, 7
      %v3831 = vshll.u32 %v3598, 16
      %v3833 = vor.u32 %v3830, %v3831
      %v3834 = vrot.slane %v3830, 4
      %v3836 = vshrl.u32 %v3599, 16
      %v3838 = vrot.slane %v3836, 7
      %v3839 = vshll.u32 %v3599, 16
      %v3841 = vor.u32 %v3838, %v3839
      %v3842 = vsel %vm3605, %v3834, %v3841
      %v3843 = vrot.slane %v3838, 4
      %v3845 = vshrl.u32 %v3600, 16
      %v3847 = vrot.slane %v3845, 7
      %v3848 = vshll.u32 %v3600, 16
      %v3850 = vor.u32 %v3847, %v3848
      %v3851 = vrot.slane %v3847, 4
      %v3853 = vshrl.u32 %v3601, 16
      %v3855 = vrot.slane %v3853, 7
      %v3856 = vshll.u32 %v3601, 16
      %v3858 = vor.u32 %v3855, %v3856
      %v3859 = vsel %vm3605, %v3851, %v3858
      %v3860 = vrot.slane %v3855, 4
      %v3862 = vshrl.u32 %v3602, 16
      %v3864 = vrot.slane %v3862, 7
      %v3865 = vshll.u32 %v3602, 16
      %v3867 = vor.u32 %v3864, %v3865
      %v3868 = vrot.slane %v3864, 4
      %v3870 = vshrl.u32 %v3603, 16
      %v3872 = vrot.slane %v3870, 7
      %v3873 = vshll.u32 %v3603, 16
      %v3875 = vor.u32 %v3872, %v3873
      %v3876 = vsel %vm3605, %v3868, %v3875
      %v3877 = vrot.slane %v3872, 4
      %s3926 = scalar_lea.vmem [#allocation3], 12
      %vm3927 = vcmask 27648
      %vm3928 = vmand %vm3927, %vm3388
      %v3929 = vld [vmem:[%s3926] sm:$0xf]
      %v3930 = vsel %vm3928, %v3612, %v3929
      %3931 = vst [vmem:[%s3926] sm:$0xf] %v3930
      %3932 = vst.msk [vmem:[%s3926 + $0x4] sm:$0xf] %vm3322, %v3621
      %v3933 = vld [vmem:[%s3926 + $0x8] sm:$0x1]
      %v3934 = vsel %vm3333, %v3622, %v3933
      %3935 = vst [vmem:[%s3926 + $0x8] sm:$0x1] %v3934
      %v3936 = vld [vmem:[%s3926 + $0xc] sm:$0xf]
      %v3937 = vsel %vm3928, %v3629, %v3936
      %3938 = vst [vmem:[%s3926 + $0xc] sm:$0xf] %v3937
      %3939 = vst.msk [vmem:[%s3926 + $0x10] sm:$0xf] %vm3322, %v3638
      %v3940 = vld [vmem:[%s3926 + $0x14] sm:$0x1]
      %v3941 = vsel %vm3333, %v3639, %v3940
      %3942 = vst [vmem:[%s3926 + $0x14] sm:$0x1] %v3941
      %v3943 = vld [vmem:[%s3926 + $0x18] sm:$0xf]
      %v3944 = vsel %vm3928, %v3646, %v3943
      %3945 = vst [vmem:[%s3926 + $0x18] sm:$0xf] %v3944
      %3946 = vst.msk [vmem:[%s3926 + $0x1c] sm:$0xf] %vm3322, %v3655
      %v3947 = vld [vmem:[%s3926 + $0x20] sm:$0x1]
      %v3948 = vsel %vm3333, %v3656, %v3947
      %3949 = vst [vmem:[%s3926 + $0x20] sm:$0x1] %v3948
      %v3950 = vld [vmem:[%s3926 + $0x24] sm:$0xf]
      %v3951 = vsel %vm3928, %v3663, %v3950
      %3952 = vst [vmem:[%s3926 + $0x24] sm:$0xf] %v3951
      %3953 = vst.msk [vmem:[%s3926 + $0x28] sm:$0xf] %vm3322, %v3672
      %v3954 = vld [vmem:[%s3926 + $0x2c] sm:$0x1]
      %v3955 = vsel %vm3333, %v3673, %v3954
      %3956 = vst [vmem:[%s3926 + $0x2c] sm:$0x1] %v3955
      %v3957 = vld [vmem:[%s3926 + $0x30] sm:$0xf]
      %v3958 = vsel %vm3928, %v3680, %v3957
      %3959 = vst [vmem:[%s3926 + $0x30] sm:$0xf] %v3958
      %3960 = vst.msk [vmem:[%s3926 + $0x34] sm:$0xf] %vm3322, %v3689
      %v3961 = vld [vmem:[%s3926 + $0x38] sm:$0x1]
      %v3962 = vsel %vm3333, %v3690, %v3961
      %3963 = vst [vmem:[%s3926 + $0x38] sm:$0x1] %v3962
      %v3964 = vld [vmem:[%s3926 + $0x3c] sm:$0xf]
      %v3965 = vsel %vm3928, %v3697, %v3964
      %3966 = vst [vmem:[%s3926 + $0x3c] sm:$0xf] %v3965
      %3967 = vst.msk [vmem:[%s3926 + $0x40] sm:$0xf] %vm3322, %v3706
      %v3968 = vld [vmem:[%s3926 + $0x44] sm:$0x1]
      %v3969 = vsel %vm3333, %v3707, %v3968
      %3970 = vst [vmem:[%s3926 + $0x44] sm:$0x1] %v3969
      %v3971 = vld [vmem:[%s3926 + $0x48] sm:$0xf]
      %v3972 = vsel %vm3928, %v3714, %v3971
      %3973 = vst [vmem:[%s3926 + $0x48] sm:$0xf] %v3972
      %3974 = vst.msk [vmem:[%s3926 + $0x4c] sm:$0xf] %vm3322, %v3723
      %v3975 = vld [vmem:[%s3926 + $0x50] sm:$0x1]
      %v3976 = vsel %vm3333, %v3724, %v3975
      %3977 = vst [vmem:[%s3926 + $0x50] sm:$0x1] %v3976
      %v3978 = vld [vmem:[%s3926 + $0x54] sm:$0xf]
      %v3979 = vsel %vm3928, %v3731, %v3978
      %3980 = vst [vmem:[%s3926 + $0x54] sm:$0xf] %v3979
      %3981 = vst.msk [vmem:[%s3926 + $0x58] sm:$0xf] %vm3322, %v3740
      %v3982 = vld [vmem:[%s3926 + $0x5c] sm:$0x1]
      %v3983 = vsel %vm3333, %v3741, %v3982
      %3984 = vst [vmem:[%s3926 + $0x5c] sm:$0x1] %v3983
      %v3985 = vld [vmem:[%s3926 + $0x60] sm:$0xf]
      %v3986 = vsel %vm3928, %v3748, %v3985
      %3987 = vst [vmem:[%s3926 + $0x60] sm:$0xf] %v3986
      %3988 = vst.msk [vmem:[%s3926 + $0x64] sm:$0xf] %vm3322, %v3757
      %v3989 = vld [vmem:[%s3926 + $0x68] sm:$0x1]
      %v3990 = vsel %vm3333, %v3758, %v3989
      %3991 = vst [vmem:[%s3926 + $0x68] sm:$0x1] %v3990
      %v3992 = vld [vmem:[%s3926 + $0x6c] sm:$0xf]
      %v3993 = vsel %vm3928, %v3765, %v3992
      %3994 = vst [vmem:[%s3926 + $0x6c] sm:$0xf] %v3993
      %3995 = vst.msk [vmem:[%s3926 + $0x70] sm:$0xf] %vm3322, %v3774
      %v3996 = vld [vmem:[%s3926 + $0x74] sm:$0x1]
      %v3997 = vsel %vm3333, %v3775, %v3996
      %3998 = vst [vmem:[%s3926 + $0x74] sm:$0x1] %v3997
      %v3999 = vld [vmem:[%s3926 + $0x78] sm:$0xf]
      %v4000 = vsel %vm3928, %v3782, %v3999
      %4001 = vst [vmem:[%s3926 + $0x78] sm:$0xf] %v4000
      %4002 = vst.msk [vmem:[%s3926 + $0x7c] sm:$0xf] %vm3322, %v3791
      %v4003 = vld [vmem:[%s3926 + $0x80] sm:$0x1]
      %v4004 = vsel %vm3333, %v3792, %v4003
      %4005 = vst [vmem:[%s3926 + $0x80] sm:$0x1] %v4004
      %v4006 = vld [vmem:[%s3926 + $0x84] sm:$0xf]
      %v4007 = vsel %vm3928, %v3799, %v4006
      %4008 = vst [vmem:[%s3926 + $0x84] sm:$0xf] %v4007
      %4009 = vst.msk [vmem:[%s3926 + $0x88] sm:$0xf] %vm3322, %v3808
      %v4010 = vld [vmem:[%s3926 + $0x8c] sm:$0x1]
      %v4011 = vsel %vm3333, %v3809, %v4010
      %4012 = vst [vmem:[%s3926 + $0x8c] sm:$0x1] %v4011
      %v4013 = vld [vmem:[%s3926 + $0x90] sm:$0xf]
      %v4014 = vsel %vm3928, %v3816, %v4013
      %4015 = vst [vmem:[%s3926 + $0x90] sm:$0xf] %v4014
      %4016 = vst.msk [vmem:[%s3926 + $0x94] sm:$0xf] %vm3322, %v3825
      %v4017 = vld [vmem:[%s3926 + $0x98] sm:$0x1]
      %v4018 = vsel %vm3333, %v3826, %v4017
      %4019 = vst [vmem:[%s3926 + $0x98] sm:$0x1] %v4018
      %v4020 = vld [vmem:[%s3926 + $0x9c] sm:$0xf]
      %v4021 = vsel %vm3928, %v3833, %v4020
      %4022 = vst [vmem:[%s3926 + $0x9c] sm:$0xf] %v4021
      %4023 = vst.msk [vmem:[%s3926 + $0xa0] sm:$0xf] %vm3322, %v3842
      %v4024 = vld [vmem:[%s3926 + $0xa4] sm:$0x1]
      %v4025 = vsel %vm3333, %v3843, %v4024
      %4026 = vst [vmem:[%s3926 + $0xa4] sm:$0x1] %v4025
      %v4027 = vld [vmem:[%s3926 + $0xa8] sm:$0xf]
      %v4028 = vsel %vm3928, %v3850, %v4027
      %4029 = vst [vmem:[%s3926 + $0xa8] sm:$0xf] %v4028
      %4030 = vst.msk [vmem:[%s3926 + $0xac] sm:$0xf] %vm3322, %v3859
      %v4031 = vld [vmem:[%s3926 + $0xb0] sm:$0x1]
      %v4032 = vsel %vm3333, %v3860, %v4031
      %4033 = vst [vmem:[%s3926 + $0xb0] sm:$0x1] %v4032
      %v4034 = vld [vmem:[%s3926 + $0xb4] sm:$0xf]
      %v4035 = vsel %vm3928, %v3867, %v4034
      %4036 = vst [vmem:[%s3926 + $0xb4] sm:$0xf] %v4035
      %4037 = vst.msk [vmem:[%s3926 + $0xb8] sm:$0xf] %vm3322, %v3876
      %v4038 = vld [vmem:[%s3926 + $0xbc] sm:$0x1]
      %v4039 = vsel %vm3333, %v3877, %v4038
      %4040 = vst [vmem:[%s3926 + $0xbc] sm:$0x1] %v4039
      %v4041 = vld [vmem:[#allocation3] sm:$0xf]
      %v4042 = vld [vmem:[#allocation3 + $0x4] sm:$0xf]
      %v4043 = vld [vmem:[#allocation3 + $0x8] sm:$0x1]
      %v4044 = vld [vmem:[#allocation3 + $0xc] sm:$0xf]
      %v4045 = vld [vmem:[#allocation3 + $0x10] sm:$0xf]
      %v4046 = vld [vmem:[#allocation3 + $0x14] sm:$0x1]
      %v4047 = vld [vmem:[#allocation3 + $0x18] sm:$0xf]
      %v4048 = vld [vmem:[#allocation3 + $0x1c] sm:$0xf]
      %v4049 = vld [vmem:[#allocation3 + $0x20] sm:$0x1]
      %v4050 = vld [vmem:[#allocation3 + $0x24] sm:$0xf]
      %v4051 = vld [vmem:[#allocation3 + $0x28] sm:$0xf]
      %v4052 = vld [vmem:[#allocation3 + $0x2c] sm:$0x1]
      %v4053 = vld [vmem:[#allocation3 + $0x30] sm:$0xf]
      %v4054 = vld [vmem:[#allocation3 + $0x34] sm:$0xf]
      %v4055 = vld [vmem:[#allocation3 + $0x38] sm:$0x1]
      %v4056 = vld [vmem:[#allocation3 + $0x3c] sm:$0xf]
      %v4057 = vld [vmem:[#allocation3 + $0x40] sm:$0xf]
      %v4058 = vld [vmem:[#allocation3 + $0x44] sm:$0x1]
      %v4059 = vld [vmem:[#allocation3 + $0x48] sm:$0xf]
      %v4060 = vld [vmem:[#allocation3 + $0x4c] sm:$0xf]
      %v4061 = vld [vmem:[#allocation3 + $0x50] sm:$0x1]
      %v4062 = vld [vmem:[#allocation3 + $0x54] sm:$0xf]
      %v4063 = vld [vmem:[#allocation3 + $0x58] sm:$0xf]
      %v4064 = vld [vmem:[#allocation3 + $0x5c] sm:$0x1]
      %v4065 = vld [vmem:[#allocation3 + $0x60] sm:$0xf]
      %v4066 = vld [vmem:[#allocation3 + $0x64] sm:$0xf]
      %v4067 = vld [vmem:[#allocation3 + $0x68] sm:$0x1]
      %v4068 = vld [vmem:[#allocation3 + $0x6c] sm:$0xf]
      %v4069 = vld [vmem:[#allocation3 + $0x70] sm:$0xf]
      %v4070 = vld [vmem:[#allocation3 + $0x74] sm:$0x1]
      %v4071 = vld [vmem:[#allocation3 + $0x78] sm:$0xf]
      %v4072 = vld [vmem:[#allocation3 + $0x7c] sm:$0xf]
      %v4073 = vld [vmem:[#allocation3 + $0x80] sm:$0x1]
      %v4074 = vld [vmem:[#allocation3 + $0x84] sm:$0xf]
      %v4075 = vld [vmem:[#allocation3 + $0x88] sm:$0xf]
      %v4076 = vld [vmem:[#allocation3 + $0x8c] sm:$0x1]
      %v4077 = vld [vmem:[#allocation3 + $0x90] sm:$0xf]
      %v4078 = vld [vmem:[#allocation3 + $0x94] sm:$0xf]
      %v4079 = vld [vmem:[#allocation3 + $0x98] sm:$0x1]
      %v4080 = vld [vmem:[#allocation3 + $0x9c] sm:$0xf]
      %v4081 = vld [vmem:[#allocation3 + $0xa0] sm:$0xf]
      %v4082 = vld [vmem:[#allocation3 + $0xa4] sm:$0x1]
      %v4083 = vld [vmem:[#allocation3 + $0xa8] sm:$0xf]
      %v4084 = vld [vmem:[#allocation3 + $0xac] sm:$0xf]
      %v4085 = vld [vmem:[#allocation3 + $0xb0] sm:$0x1]
      %v4086 = vld [vmem:[#allocation3 + $0xb4] sm:$0xf]
      %v4087 = vld [vmem:[#allocation3 + $0xb8] sm:$0xf]
      %v4088 = vld [vmem:[#allocation3 + $0xbc] sm:$0x1]
      %v4121 = vunpack.c.l.b16 %v4041
      %v4122 = vunpack.c.l.b16 %v4042
      %v4123 = vunpack.c.l.b16 %v4044
      %v4124 = vunpack.c.l.b16 %v4045
      %v4125 = vunpack.c.l.b16 %v4047
      %v4126 = vunpack.c.l.b16 %v4048
      %v4127 = vunpack.c.l.b16 %v4050
      %v4128 = vunpack.c.l.b16 %v4051
      %v4129 = vunpack.c.l.b16 %v4053
      %v4130 = vunpack.c.l.b16 %v4054
      %v4131 = vunpack.c.l.b16 %v4056
      %v4132 = vunpack.c.l.b16 %v4057
      %v4133 = vunpack.c.l.b16 %v4059
      %v4134 = vunpack.c.l.b16 %v4060
      %v4135 = vunpack.c.l.b16 %v4062
      %v4136 = vunpack.c.l.b16 %v4063
      %v4137 = vunpack.c.l.b16 %v4065
      %v4138 = vunpack.c.l.b16 %v4066
      %v4139 = vunpack.c.l.b16 %v4068
      %v4140 = vunpack.c.l.b16 %v4069
      %v4141 = vunpack.c.l.b16 %v4071
      %v4142 = vunpack.c.l.b16 %v4072
      %v4143 = vunpack.c.l.b16 %v4074
      %v4144 = vunpack.c.l.b16 %v4075
      %v4145 = vunpack.c.l.b16 %v4077
      %v4146 = vunpack.c.l.b16 %v4078
      %v4147 = vunpack.c.l.b16 %v4080
      %v4148 = vunpack.c.l.b16 %v4081
      %v4149 = vunpack.c.l.b16 %v4083
      %v4150 = vunpack.c.l.b16 %v4084
      %v4151 = vunpack.c.l.b16 %v4086
      %v4152 = vunpack.c.l.b16 %v4087
      %v4153 = vpack.c.b16 %v4122, %v4121
      %v4154 = vpack.c.b16 %v4124, %v4123
      %v4155 = vpack.c.b16 %v4126, %v4125
      %v4156 = vpack.c.b16 %v4128, %v4127
      %v4157 = vpack.c.b16 %v4130, %v4129
      %v4158 = vpack.c.b16 %v4132, %v4131
      %v4159 = vpack.c.b16 %v4134, %v4133
      %v4160 = vpack.c.b16 %v4136, %v4135
      %v4161 = vpack.c.b16 %v4138, %v4137
      %v4162 = vpack.c.b16 %v4140, %v4139
      %v4163 = vpack.c.b16 %v4142, %v4141
      %v4164 = vpack.c.b16 %v4144, %v4143
      %v4165 = vpack.c.b16 %v4146, %v4145
      %v4166 = vpack.c.b16 %v4148, %v4147
      %v4167 = vpack.c.b16 %v4150, %v4149
      %v4168 = vpack.c.b16 %v4152, %v4151
      %v4185 = vunpack.c.l.b16 %v4043
      %v4186 = vunpack.c.l.b16 %v4046
      %v4187 = vunpack.c.l.b16 %v4049
      %v4188 = vunpack.c.l.b16 %v4052
      %v4189 = vunpack.c.l.b16 %v4055
      %v4190 = vunpack.c.l.b16 %v4058
      %v4191 = vunpack.c.l.b16 %v4061
      %v4192 = vunpack.c.l.b16 %v4064
      %v4193 = vunpack.c.l.b16 %v4067
      %v4194 = vunpack.c.l.b16 %v4070
      %v4195 = vunpack.c.l.b16 %v4073
      %v4196 = vunpack.c.l.b16 %v4076
      %v4197 = vunpack.c.l.b16 %v4079
      %v4198 = vunpack.c.l.b16 %v4082
      %v4199 = vunpack.c.l.b16 %v4085
      %v4200 = vunpack.c.l.b16 %v4088
      %v4201 = vpack.c.b16 %v4185, %v4185
      %v4202 = vpack.c.b16 %v4186, %v4186
      %v4203 = vpack.c.b16 %v4187, %v4187
      %v4204 = vpack.c.b16 %v4188, %v4188
      %v4205 = vpack.c.b16 %v4189, %v4189
      %v4206 = vpack.c.b16 %v4190, %v4190
      %v4207 = vpack.c.b16 %v4191, %v4191
      %v4208 = vpack.c.b16 %v4192, %v4192
      %v4209 = vpack.c.b16 %v4193, %v4193
      %v4210 = vpack.c.b16 %v4194, %v4194
      %v4211 = vpack.c.b16 %v4195, %v4195
      %v4212 = vpack.c.b16 %v4196, %v4196
      %v4213 = vpack.c.b16 %v4197, %v4197
      %v4214 = vpack.c.b16 %v4198, %v4198
      %v4215 = vpack.c.b16 %v4199, %v4199
      %v4216 = vpack.c.b16 %v4200, %v4200
      %v4218 = vshrl.u32 %v4153, 16
      %v4220 = vshll.u32 %v4153, 16
      %v4222 = vrot.slane %v4220, 1
      %v4223 = vor.u32 %v4218, %v4222
      %v4225 = vshll.u32 %v4201, 16
      %v4227 = vrot.slane %v4225, 1
      %v4228 = vsel %vm929, %v4223, %v4227
      %v4230 = vshrl.u32 %v4154, 16
      %v4232 = vshll.u32 %v4154, 16
      %v4234 = vrot.slane %v4232, 1
      %v4235 = vor.u32 %v4230, %v4234
      %v4237 = vshll.u32 %v4202, 16
      %v4239 = vrot.slane %v4237, 1
      %v4240 = vsel %vm929, %v4235, %v4239
      %v4242 = vshrl.u32 %v4155, 16
      %v4244 = vshll.u32 %v4155, 16
      %v4246 = vrot.slane %v4244, 1
      %v4247 = vor.u32 %v4242, %v4246
      %v4249 = vshll.u32 %v4203, 16
      %v4251 = vrot.slane %v4249, 1
      %v4252 = vsel %vm929, %v4247, %v4251
      %v4254 = vshrl.u32 %v4156, 16
      %v4256 = vshll.u32 %v4156, 16
      %v4258 = vrot.slane %v4256, 1
      %v4259 = vor.u32 %v4254, %v4258
      %v4261 = vshll.u32 %v4204, 16
      %v4263 = vrot.slane %v4261, 1
      %v4264 = vsel %vm929, %v4259, %v4263
      %v4266 = vshrl.u32 %v4157, 16
      %v4268 = vshll.u32 %v4157, 16
      %v4270 = vrot.slane %v4268, 1
      %v4271 = vor.u32 %v4266, %v4270
      %v4273 = vshll.u32 %v4205, 16
      %v4275 = vrot.slane %v4273, 1
      %v4276 = vsel %vm929, %v4271, %v4275
      %v4278 = vshrl.u32 %v4158, 16
      %v4280 = vshll.u32 %v4158, 16
      %v4282 = vrot.slane %v4280, 1
      %v4283 = vor.u32 %v4278, %v4282
      %v4285 = vshll.u32 %v4206, 16
      %v4287 = vrot.slane %v4285, 1
      %v4288 = vsel %vm929, %v4283, %v4287
      %v4290 = vshrl.u32 %v4159, 16
      %v4292 = vshll.u32 %v4159, 16
      %v4294 = vrot.slane %v4292, 1
      %v4295 = vor.u32 %v4290, %v4294
      %v4297 = vshll.u32 %v4207, 16
      %v4299 = vrot.slane %v4297, 1
      %v4300 = vsel %vm929, %v4295, %v4299
      %v4302 = vshrl.u32 %v4160, 16
      %v4304 = vshll.u32 %v4160, 16
      %v4306 = vrot.slane %v4304, 1
      %v4307 = vor.u32 %v4302, %v4306
      %v4309 = vshll.u32 %v4208, 16
      %v4311 = vrot.slane %v4309, 1
      %v4312 = vsel %vm929, %v4307, %v4311
      %v4314 = vshrl.u32 %v4161, 16
      %v4316 = vshll.u32 %v4161, 16
      %v4318 = vrot.slane %v4316, 1
      %v4319 = vor.u32 %v4314, %v4318
      %v4321 = vshll.u32 %v4209, 16
      %v4323 = vrot.slane %v4321, 1
      %v4324 = vsel %vm929, %v4319, %v4323
      %v4326 = vshrl.u32 %v4162, 16
      %v4328 = vshll.u32 %v4162, 16
      %v4330 = vrot.slane %v4328, 1
      %v4331 = vor.u32 %v4326, %v4330
      %v4333 = vshll.u32 %v4210, 16
      %v4335 = vrot.slane %v4333, 1
      %v4336 = vsel %vm929, %v4331, %v4335
      %v4338 = vshrl.u32 %v4163, 16
      %v4340 = vshll.u32 %v4163, 16
      %v4342 = vrot.slane %v4340, 1
      %v4343 = vor.u32 %v4338, %v4342
      %v4345 = vshll.u32 %v4211, 16
      %v4347 = vrot.slane %v4345, 1
      %v4348 = vsel %vm929, %v4343, %v4347
      %v4350 = vshrl.u32 %v4164, 16
      %v4352 = vshll.u32 %v4164, 16
      %v4354 = vrot.slane %v4352, 1
      %v4355 = vor.u32 %v4350, %v4354
      %v4357 = vshll.u32 %v4212, 16
      %v4359 = vrot.slane %v4357, 1
      %v4360 = vsel %vm929, %v4355, %v4359
      %v4362 = vshrl.u32 %v4165, 16
      %v4364 = vshll.u32 %v4165, 16
      %v4366 = vrot.slane %v4364, 1
      %v4367 = vor.u32 %v4362, %v4366
      %v4369 = vshll.u32 %v4213, 16
      %v4371 = vrot.slane %v4369, 1
      %v4372 = vsel %vm929, %v4367, %v4371
      %v4374 = vshrl.u32 %v4166, 16
      %v4376 = vshll.u32 %v4166, 16
      %v4378 = vrot.slane %v4376, 1
      %v4379 = vor.u32 %v4374, %v4378
      %v4381 = vshll.u32 %v4214, 16
      %v4383 = vrot.slane %v4381, 1
      %v4384 = vsel %vm929, %v4379, %v4383
      %v4386 = vshrl.u32 %v4167, 16
      %v4388 = vshll.u32 %v4167, 16
      %v4390 = vrot.slane %v4388, 1
      %v4391 = vor.u32 %v4386, %v4390
      %v4393 = vshll.u32 %v4215, 16
      %v4395 = vrot.slane %v4393, 1
      %v4396 = vsel %vm929, %v4391, %v4395
      %v4398 = vshrl.u32 %v4168, 16
      %v4400 = vshll.u32 %v4168, 16
      %v4402 = vrot.slane %v4400, 1
      %v4403 = vor.u32 %v4398, %v4402
      %v4405 = vshll.u32 %v4216, 16
      %v4407 = vrot.slane %v4405, 1
      %v4408 = vsel %vm929, %v4403, %v4407
      %4409 = vrot.lane.b32.xlu0 %v4228, 4
      %v4410 = vpop.permute.xlu0 %4409
      %4411 = vrot.lane.b32.xlu0 %v4240, 4
      %v4412 = vpop.permute.xlu0 %4411
      %4413 = vrot.lane.b32.xlu0 %v4252, 4
      %v4414 = vpop.permute.xlu0 %4413
      %4415 = vrot.lane.b32.xlu0 %v4264, 4
      %v4416 = vpop.permute.xlu0 %4415
      %4417 = vrot.lane.b32.xlu0 %v4276, 4
      %v4418 = vpop.permute.xlu0 %4417
      %4419 = vrot.lane.b32.xlu0 %v4288, 4
      %v4420 = vpop.permute.xlu0 %4419
      %4421 = vrot.lane.b32.xlu0 %v4300, 4
      %v4422 = vpop.permute.xlu0 %4421
      %4423 = vrot.lane.b32.xlu0 %v4312, 4
      %v4424 = vpop.permute.xlu0 %4423
      %4425 = vrot.lane.b32.xlu0 %v4324, 4
      %v4426 = vpop.permute.xlu0 %4425
      %4427 = vrot.lane.b32.xlu0 %v4336, 4
      %v4428 = vpop.permute.xlu0 %4427
      %4429 = vrot.lane.b32.xlu0 %v4348, 4
      %v4430 = vpop.permute.xlu0 %4429
      %4431 = vrot.lane.b32.xlu0 %v4360, 4
      %v4432 = vpop.permute.xlu0 %4431
      %4433 = vrot.lane.b32.xlu0 %v4372, 4
      %v4434 = vpop.permute.xlu0 %4433
      %4435 = vrot.lane.b32.xlu0 %v4384, 4
      %v4436 = vpop.permute.xlu0 %4435
      %4437 = vrot.lane.b32.xlu0 %v4396, 4
      %v4438 = vpop.permute.xlu0 %4437
      %4439 = vrot.lane.b32.xlu0 %v4408, 4
      %v4440 = vpop.permute.xlu0 %4439
      %v4441 = vrot.slane %v4153, 1
      %v4442 = vrot.slane %v4201, 1
      %v4443 = vsel %vm1154, %v4441, %v4442
      %v4444 = vrot.slane %v4154, 1
      %v4445 = vrot.slane %v4202, 1
      %v4446 = vsel %vm1154, %v4444, %v4445
      %v4447 = vrot.slane %v4155, 1
      %v4448 = vrot.slane %v4203, 1
      %v4449 = vsel %vm1154, %v4447, %v4448
      %v4450 = vrot.slane %v4156, 1
      %v4451 = vrot.slane %v4204, 1
      %v4452 = vsel %vm1154, %v4450, %v4451
      %v4453 = vrot.slane %v4157, 1
      %v4454 = vrot.slane %v4205, 1
      %v4455 = vsel %vm1154, %v4453, %v4454
      %v4456 = vrot.slane %v4158, 1
      %v4457 = vrot.slane %v4206, 1
      %v4458 = vsel %vm1154, %v4456, %v4457
      %v4459 = vrot.slane %v4159, 1
      %v4460 = vrot.slane %v4207, 1
      %v4461 = vsel %vm1154, %v4459, %v4460
      %v4462 = vrot.slane %v4160, 1
      %v4463 = vrot.slane %v4208, 1
      %v4464 = vsel %vm1154, %v4462, %v4463
      %v4465 = vrot.slane %v4161, 1
      %v4466 = vrot.slane %v4209, 1
      %v4467 = vsel %vm1154, %v4465, %v4466
      %v4468 = vrot.slane %v4162, 1
      %v4469 = vrot.slane %v4210, 1
      %v4470 = vsel %vm1154, %v4468, %v4469
      %v4471 = vrot.slane %v4163, 1
      %v4472 = vrot.slane %v4211, 1
      %v4473 = vsel %vm1154, %v4471, %v4472
      %v4474 = vrot.slane %v4164, 1
      %v4475 = vrot.slane %v4212, 1
      %v4476 = vsel %vm1154, %v4474, %v4475
      %v4477 = vrot.slane %v4165, 1
      %v4478 = vrot.slane %v4213, 1
      %v4479 = vsel %vm1154, %v4477, %v4478
      %v4480 = vrot.slane %v4166, 1
      %v4481 = vrot.slane %v4214, 1
      %v4482 = vsel %vm1154, %v4480, %v4481
      %v4483 = vrot.slane %v4167, 1
      %v4484 = vrot.slane %v4215, 1
      %v4485 = vsel %vm1154, %v4483, %v4484
      %v4486 = vrot.slane %v4168, 1
      %v4487 = vrot.slane %v4216, 1
      %v4488 = vsel %vm1154, %v4486, %v4487
      %4489 = vrot.lane.b32.xlu0 %v4443, 8
      %v4490 = vpop.permute.xlu0 %4489
      %4491 = vrot.lane.b32.xlu0 %v4446, 8
      %v4492 = vpop.permute.xlu0 %4491
      %4493 = vrot.lane.b32.xlu0 %v4449, 8
      %v4494 = vpop.permute.xlu0 %4493
      %4495 = vrot.lane.b32.xlu0 %v4452, 8
      %v4496 = vpop.permute.xlu0 %4495
      %4497 = vrot.lane.b32.xlu0 %v4455, 8
      %v4498 = vpop.permute.xlu0 %4497
      %4499 = vrot.lane.b32.xlu0 %v4458, 8
      %v4500 = vpop.permute.xlu0 %4499
      %4501 = vrot.lane.b32.xlu0 %v4461, 8
      %v4502 = vpop.permute.xlu0 %4501
      %4503 = vrot.lane.b32.xlu0 %v4464, 8
      %v4504 = vpop.permute.xlu0 %4503
      %4505 = vrot.lane.b32.xlu0 %v4467, 8
      %v4506 = vpop.permute.xlu0 %4505
      %4507 = vrot.lane.b32.xlu0 %v4470, 8
      %v4508 = vpop.permute.xlu0 %4507
      %4509 = vrot.lane.b32.xlu0 %v4473, 8
      %v4510 = vpop.permute.xlu0 %4509
      %4511 = vrot.lane.b32.xlu0 %v4476, 8
      %v4512 = vpop.permute.xlu0 %4511
      %4513 = vrot.lane.b32.xlu0 %v4479, 8
      %v4514 = vpop.permute.xlu0 %4513
      %4515 = vrot.lane.b32.xlu0 %v4482, 8
      %v4516 = vpop.permute.xlu0 %4515
      %4517 = vrot.lane.b32.xlu0 %v4485, 8
      %v4518 = vpop.permute.xlu0 %4517
      %4519 = vrot.lane.b32.xlu0 %v4488, 8
      %v4520 = vpop.permute.xlu0 %4519
      %v4522 = vsel %vm672, %v4153, %v4410
      %v4524 = vsel %vm672, %v4154, %v4412
      %v4526 = vsel %vm672, %v4155, %v4414
      %v4528 = vsel %vm672, %v4156, %v4416
      %v4530 = vsel %vm672, %v4157, %v4418
      %v4532 = vsel %vm672, %v4158, %v4420
      %v4534 = vsel %vm672, %v4159, %v4422
      %v4536 = vsel %vm672, %v4160, %v4424
      %v4538 = vsel %vm672, %v4161, %v4426
      %v4540 = vsel %vm672, %v4162, %v4428
      %v4542 = vsel %vm672, %v4163, %v4430
      %v4544 = vsel %vm672, %v4164, %v4432
      %v4546 = vsel %vm672, %v4165, %v4434
      %v4548 = vsel %vm672, %v4166, %v4436
      %v4550 = vsel %vm672, %v4167, %v4438
      %v4552 = vsel %vm672, %v4168, %v4440
      %v4554 = vsel %vm1267, %v4522, %v4490
      %v4556 = vsel %vm1267, %v4524, %v4492
      %v4558 = vsel %vm1267, %v4526, %v4494
      %v4560 = vsel %vm1267, %v4528, %v4496
      %v4562 = vsel %vm1267, %v4530, %v4498
      %v4564 = vsel %vm1267, %v4532, %v4500
      %v4566 = vsel %vm1267, %v4534, %v4502
      %v4568 = vsel %vm1267, %v4536, %v4504
      %v4570 = vsel %vm1267, %v4538, %v4506
      %v4572 = vsel %vm1267, %v4540, %v4508
      %v4574 = vsel %vm1267, %v4542, %v4510
      %v4576 = vsel %vm1267, %v4544, %v4512
      %v4578 = vsel %vm1267, %v4546, %v4514
      %v4580 = vsel %vm1267, %v4548, %v4516
      %v4582 = vsel %vm1267, %v4550, %v4518
      %v4584 = vsel %vm1267, %v4552, %v4520
      %v4585 = vld [vmem:[%s170] sm:$0xff]
      %v4586 = vld [vmem:[%s170 + $0x8] sm:$0xff]
      %v4587 = vld [vmem:[%s170 + $0x10] sm:$0xff]
      %v4588 = vld [vmem:[%s170 + $0x18] sm:$0xff]
      %v4589 = vld [vmem:[%s170 + $0x20] sm:$0xff]
      %v4590 = vld [vmem:[%s170 + $0x28] sm:$0xff]
      %v4591 = vld [vmem:[%s170 + $0x30] sm:$0xff]
      %v4592 = vld [vmem:[%s170 + $0x38] sm:$0xff]
      %v4593 = vld [vmem:[%s170 + $0x40] sm:$0xff]
      %v4594 = vld [vmem:[%s170 + $0x48] sm:$0xff]
      %v4595 = vld [vmem:[%s170 + $0x50] sm:$0xff]
      %v4596 = vld [vmem:[%s170 + $0x58] sm:$0xff]
      %v4597 = vld [vmem:[%s170 + $0x60] sm:$0xff]
      %v4598 = vld [vmem:[%s170 + $0x68] sm:$0xff]
      %v4599 = vld [vmem:[%s170 + $0x70] sm:$0xff]
      %v4600 = vld [vmem:[%s170 + $0x78] sm:$0xff]
      %v4601 = vld [vmem:[%s170 + $0x80] sm:$0xff]
      %v4602 = vld [vmem:[%s170 + $0x88] sm:$0xff]
      %v4603 = vld [vmem:[%s170 + $0x90] sm:$0xff]
      %v4604 = vld [vmem:[%s170 + $0x98] sm:$0xff]
      %v4605 = vld [vmem:[%s170 + $0xa0] sm:$0xff]
      %v4606 = vld [vmem:[%s170 + $0xa8] sm:$0xff]
      %v4607 = vld [vmem:[%s170 + $0xb0] sm:$0xff]
      %v4608 = vld [vmem:[%s170 + $0xb8] sm:$0xff]
      %v4609 = vld [vmem:[%s170 + $0xc0] sm:$0xff]
      %v4610 = vld [vmem:[%s170 + $0xc8] sm:$0xff]
      %v4611 = vld [vmem:[%s170 + $0xd0] sm:$0xff]
      %v4612 = vld [vmem:[%s170 + $0xd8] sm:$0xff]
      %v4613 = vld [vmem:[%s170 + $0xe0] sm:$0xff]
      %v4614 = vld [vmem:[%s170 + $0xe8] sm:$0xff]
      %v4615 = vld [vmem:[%s170 + $0xf0] sm:$0xff]
      %v4616 = vld [vmem:[%s170 + $0xf8] sm:$0xff]
      %v4617 = vld [vmem:[%s2] sm:$0xf]
      %v4618 = vld [vmem:[%s2 + $0x4] sm:$0x3]
      %v4621 = vunpack.c.l.b16 %v4617
      %v4622 = vunpack.c.l.b16 %v4618
      %v4623 = vpack.c.b16 %v4622, %v4621
      %v4624 = vsel %vm1307, %v4554, 0
      %v4626 = vsel %vm1307, %v4556, 0
      %v4628 = vsel %vm1307, %v4558, 0
      %v4630 = vsel %vm1307, %v4560, 0
      %v4632 = vsel %vm1307, %v4562, 0
      %v4634 = vsel %vm1307, %v4564, 0
      %v4636 = vsel %vm1307, %v4566, 0
      %v4638 = vsel %vm1307, %v4568, 0
      %v4640 = vsel %vm1307, %v4570, 0
      %v4642 = vsel %vm1307, %v4572, 0
      %v4644 = vsel %vm1307, %v4574, 0
      %v4646 = vsel %vm1307, %v4576, 0
      %v4648 = vsel %vm1307, %v4578, 0
      %v4650 = vsel %vm1307, %v4580, 0
      %v4652 = vsel %vm1307, %v4582, 0
      %v4654 = vsel %vm1307, %v4584, 0
      %v4657 = vsel %vm1340, %v4623, 0
      %4659 = vmatprep.subr.bf16.mxu0 0
      %4660 = vmatpush1.bf16.msra.mxu0 0
      %4661 = vmatprep.subr.bf16.mxu0 0
      %4662 = vmatpush1.bf16.msra.mxu0 0
      %4663 = vmatprep.subr.bf16.mxu0 0
      %4664 = vmatpush1.bf16.msra.mxu0 0
      %4665 = vmatprep.subr.bf16.mxu0 0
      %4666 = vmatpush1.bf16.msra.mxu0 0
      %4667 = vmatprep.subr.bf16.mxu0 0
      %4668 = vmatpush1.bf16.msra.mxu0 0
      %4669 = vmatprep.subr.bf16.mxu0 0
      %4670 = vmatpush1.bf16.msra.mxu0 0
      %4671 = vmatprep.subr.bf16.mxu0 0
      %4672 = vmatpush1.bf16.msra.mxu0 0
      %4673 = vmatprep.subr.bf16.mxu0 0
      %4674 = vmatpush1.bf16.msra.mxu0 %v4657
      %4675 = vmatprep.subr.bf16.mxu0 0
      %4676 = vmatpush2.bf16.msra.mxu0 0
      %4677 = vmatprep.subr.bf16.mxu0 0
      %4678 = vmatpush2.bf16.msra.mxu0 0
      %4679 = vmatprep.subr.bf16.mxu0 0
      %4680 = vmatpush2.bf16.msra.mxu0 0
      %4681 = vmatprep.subr.bf16.mxu0 0
      %4682 = vmatpush2.bf16.msra.mxu0 0
      %4683 = vmatprep.subr.bf16.mxu0 0
      %4684 = vmatpush2.bf16.msra.mxu0 0
      %4685 = vmatprep.subr.bf16.mxu0 0
      %4686 = vmatpush2.bf16.msra.mxu0 0
      %4687 = vmatprep.subr.bf16.mxu0 0
      %4688 = vmatpush2.bf16.msra.mxu0 0
      %4689 = vmatprep.subr.bf16.mxu0 0
      %4690 = vmatpush2.bf16.msra.mxu0 0
      %4691 = vmatprep.mubr.bf16.mxu0 0
      %4692 = vmatmul.mubr.bf16.gmra.mxu0 %v4624
      %v4693 = vpop.f32.mrf.mxu0
      %v4694 = vadd.f32 0.0, %v4693
      %v4695 = vpop.f32.mrf.mxu0
      %v4696 = vpop.f32.mrf.mxu0
      %v4697 = vadd.f32 0.0, %v4696
      %v4698 = vpop.f32.mrf.mxu0
      %4699 = vmatprep.mubr.bf16.mxu0 0
      %4700 = vmatmul.mubr.bf16.gmra.mxu0 %v4626
      %v4701 = vpop.f32.mrf.mxu0
      %v4702 = vadd.f32 0.0, %v4701
      %v4703 = vpop.f32.mrf.mxu0
      %v4704 = vpop.f32.mrf.mxu0
      %v4705 = vadd.f32 0.0, %v4704
      %v4706 = vpop.f32.mrf.mxu0
      %4707 = vmatprep.mubr.bf16.mxu0 0
      %4708 = vmatmul.mubr.bf16.gmra.mxu0 %v4628
      %v4709 = vpop.f32.mrf.mxu0
      %v4710 = vadd.f32 0.0, %v4709
      %v4711 = vpop.f32.mrf.mxu0
      %v4712 = vpop.f32.mrf.mxu0
      %v4713 = vadd.f32 0.0, %v4712
      %v4714 = vpop.f32.mrf.mxu0
      %4715 = vmatprep.mubr.bf16.mxu0 0
      %4716 = vmatmul.mubr.bf16.gmra.mxu0 %v4630
      %v4717 = vpop.f32.mrf.mxu0
      %v4718 = vadd.f32 0.0, %v4717
      %v4719 = vpop.f32.mrf.mxu0
      %v4720 = vpop.f32.mrf.mxu0
      %v4721 = vadd.f32 0.0, %v4720
      %v4722 = vpop.f32.mrf.mxu0
      %4723 = vmatprep.mubr.bf16.mxu0 0
      %4724 = vmatmul.mubr.bf16.gmra.mxu0 %v4632
      %v4725 = vpop.f32.mrf.mxu0
      %v4726 = vadd.f32 0.0, %v4725
      %v4727 = vpop.f32.mrf.mxu0
      %v4728 = vpop.f32.mrf.mxu0
      %v4729 = vadd.f32 0.0, %v4728
      %v4730 = vpop.f32.mrf.mxu0
      %4731 = vmatprep.mubr.bf16.mxu0 0
      %4732 = vmatmul.mubr.bf16.gmra.mxu0 %v4634
      %v4733 = vpop.f32.mrf.mxu0
      %v4734 = vadd.f32 0.0, %v4733
      %v4735 = vpop.f32.mrf.mxu0
      %v4736 = vpop.f32.mrf.mxu0
      %v4737 = vadd.f32 0.0, %v4736
      %v4738 = vpop.f32.mrf.mxu0
      %4739 = vmatprep.mubr.bf16.mxu0 0
      %4740 = vmatmul.mubr.bf16.gmra.mxu0 %v4636
      %v4741 = vpop.f32.mrf.mxu0
      %v4742 = vadd.f32 0.0, %v4741
      %v4743 = vpop.f32.mrf.mxu0
      %v4744 = vpop.f32.mrf.mxu0
      %v4745 = vadd.f32 0.0, %v4744
      %v4746 = vpop.f32.mrf.mxu0
      %4747 = vmatprep.mubr.bf16.mxu0 0
      %4748 = vmatmul.mubr.bf16.gmra.mxu0 %v4638
      %v4749 = vpop.f32.mrf.mxu0
      %v4750 = vadd.f32 0.0, %v4749
      %v4751 = vpop.f32.mrf.mxu0
      %v4752 = vpop.f32.mrf.mxu0
      %v4753 = vadd.f32 0.0, %v4752
      %v4754 = vpop.f32.mrf.mxu0
      %4755 = vmatprep.mubr.bf16.mxu0 0
      %4756 = vmatmul.mubr.bf16.gmra.mxu0 %v4640
      %v4757 = vpop.f32.mrf.mxu0
      %v4758 = vadd.f32 0.0, %v4757
      %v4759 = vpop.f32.mrf.mxu0
      %v4760 = vpop.f32.mrf.mxu0
      %v4761 = vadd.f32 0.0, %v4760
      %v4762 = vpop.f32.mrf.mxu0
      %4763 = vmatprep.mubr.bf16.mxu0 0
      %4764 = vmatmul.mubr.bf16.gmra.mxu0 %v4642
      %v4765 = vpop.f32.mrf.mxu0
      %v4766 = vadd.f32 0.0, %v4765
      %v4767 = vpop.f32.mrf.mxu0
      %v4768 = vpop.f32.mrf.mxu0
      %v4769 = vadd.f32 0.0, %v4768
      %v4770 = vpop.f32.mrf.mxu0
      %4771 = vmatprep.mubr.bf16.mxu0 0
      %4772 = vmatmul.mubr.bf16.gmra.mxu0 %v4644
      %v4773 = vpop.f32.mrf.mxu0
      %v4774 = vadd.f32 0.0, %v4773
      %v4775 = vpop.f32.mrf.mxu0
      %v4776 = vpop.f32.mrf.mxu0
      %v4777 = vadd.f32 0.0, %v4776
      %v4778 = vpop.f32.mrf.mxu0
      %4779 = vmatprep.mubr.bf16.mxu0 0
      %4780 = vmatmul.mubr.bf16.gmra.mxu0 %v4646
      %v4781 = vpop.f32.mrf.mxu0
      %v4782 = vadd.f32 0.0, %v4781
      %v4783 = vpop.f32.mrf.mxu0
      %v4784 = vpop.f32.mrf.mxu0
      %v4785 = vadd.f32 0.0, %v4784
      %v4786 = vpop.f32.mrf.mxu0
      %4787 = vmatprep.mubr.bf16.mxu0 0
      %4788 = vmatmul.mubr.bf16.gmra.mxu0 %v4648
      %v4789 = vpop.f32.mrf.mxu0
      %v4790 = vadd.f32 0.0, %v4789
      %v4791 = vpop.f32.mrf.mxu0
      %v4792 = vpop.f32.mrf.mxu0
      %v4793 = vadd.f32 0.0, %v4792
      %v4794 = vpop.f32.mrf.mxu0
      %4795 = vmatprep.mubr.bf16.mxu0 0
      %4796 = vmatmul.mubr.bf16.gmra.mxu0 %v4650
      %v4797 = vpop.f32.mrf.mxu0
      %v4798 = vadd.f32 0.0, %v4797
      %v4799 = vpop.f32.mrf.mxu0
      %v4800 = vpop.f32.mrf.mxu0
      %v4801 = vadd.f32 0.0, %v4800
      %v4802 = vpop.f32.mrf.mxu0
      %4803 = vmatprep.mubr.bf16.mxu0 0
      %4804 = vmatmul.mubr.bf16.gmra.mxu0 %v4652
      %v4805 = vpop.f32.mrf.mxu0
      %v4806 = vadd.f32 0.0, %v4805
      %v4807 = vpop.f32.mrf.mxu0
      %v4808 = vpop.f32.mrf.mxu0
      %v4809 = vadd.f32 0.0, %v4808
      %v4810 = vpop.f32.mrf.mxu0
      %4811 = vmatprep.mubr.bf16.mxu0 0
      %4812 = vmatmul.mubr.bf16.gmra.mxu0 %v4654
      %v4813 = vpop.f32.mrf.mxu0
      %v4814 = vadd.f32 0.0, %v4813
      %v4815 = vpop.f32.mrf.mxu0
      %v4816 = vpop.f32.mrf.mxu0
      %v4817 = vadd.f32 0.0, %v4816
      %v4818 = vpop.f32.mrf.mxu0
      %4819 = vdwg.mxu0
      %v4820 = vadd.f32 %v4585, %v4694
      %v4821 = vadd.f32 %v4586, %v4697
      %v4822 = vadd.f32 %v4587, %v4702
      %v4823 = vadd.f32 %v4588, %v4705
      %v4824 = vadd.f32 %v4589, %v4710
      %v4825 = vadd.f32 %v4590, %v4713
      %v4826 = vadd.f32 %v4591, %v4718
      %v4827 = vadd.f32 %v4592, %v4721
      %v4828 = vadd.f32 %v4593, %v4726
      %v4829 = vadd.f32 %v4594, %v4729
      %v4830 = vadd.f32 %v4595, %v4734
      %v4831 = vadd.f32 %v4596, %v4737
      %v4832 = vadd.f32 %v4597, %v4742
      %v4833 = vadd.f32 %v4598, %v4745
      %v4834 = vadd.f32 %v4599, %v4750
      %v4835 = vadd.f32 %v4600, %v4753
      %v4836 = vadd.f32 %v4601, %v4758
      %v4837 = vadd.f32 %v4602, %v4761
      %v4838 = vadd.f32 %v4603, %v4766
      %v4839 = vadd.f32 %v4604, %v4769
      %v4840 = vadd.f32 %v4605, %v4774
      %v4841 = vadd.f32 %v4606, %v4777
      %v4842 = vadd.f32 %v4607, %v4782
      %v4843 = vadd.f32 %v4608, %v4785
      %v4844 = vadd.f32 %v4609, %v4790
      %v4845 = vadd.f32 %v4610, %v4793
      %v4846 = vadd.f32 %v4611, %v4798
      %v4847 = vadd.f32 %v4612, %v4801
      %v4848 = vadd.f32 %v4613, %v4806
      %v4849 = vadd.f32 %v4614, %v4809
      %v4850 = vadd.f32 %v4615, %v4814
      %v4851 = vadd.f32 %v4616, %v4817
      %4852 = vst.msk [vmem:[%s170] sm:$0xff] %vm672, %v4820
      %4853 = vst.msk [vmem:[%s170 + $0x8] sm:$0xff] %vm672, %v4821
      %4854 = vst.msk [vmem:[%s170 + $0x10] sm:$0xff] %vm672, %v4822
      %4855 = vst.msk [vmem:[%s170 + $0x18] sm:$0xff] %vm672, %v4823
      %4856 = vst.msk [vmem:[%s170 + $0x20] sm:$0xff] %vm672, %v4824
      %4857 = vst.msk [vmem:[%s170 + $0x28] sm:$0xff] %vm672, %v4825
      %4858 = vst.msk [vmem:[%s170 + $0x30] sm:$0xff] %vm672, %v4826
      %4859 = vst.msk [vmem:[%s170 + $0x38] sm:$0xff] %vm672, %v4827
      %4860 = vst.msk [vmem:[%s170 + $0x40] sm:$0xff] %vm672, %v4828
      %4861 = vst.msk [vmem:[%s170 + $0x48] sm:$0xff] %vm672, %v4829
      %4862 = vst.msk [vmem:[%s170 + $0x50] sm:$0xff] %vm672, %v4830
      %4863 = vst.msk [vmem:[%s170 + $0x58] sm:$0xff] %vm672, %v4831
      %4864 = vst.msk [vmem:[%s170 + $0x60] sm:$0xff] %vm672, %v4832
      %4865 = vst.msk [vmem:[%s170 + $0x68] sm:$0xff] %vm672, %v4833
      %4866 = vst.msk [vmem:[%s170 + $0x70] sm:$0xff] %vm672, %v4834
      %4867 = vst.msk [vmem:[%s170 + $0x78] sm:$0xff] %vm672, %v4835
      %4868 = vst.msk [vmem:[%s170 + $0x80] sm:$0xff] %vm672, %v4836
      %4869 = vst.msk [vmem:[%s170 + $0x88] sm:$0xff] %vm672, %v4837
      %4870 = vst.msk [vmem:[%s170 + $0x90] sm:$0xff] %vm672, %v4838
      %4871 = vst.msk [vmem:[%s170 + $0x98] sm:$0xff] %vm672, %v4839
      %4872 = vst.msk [vmem:[%s170 + $0xa0] sm:$0xff] %vm672, %v4840
      %4873 = vst.msk [vmem:[%s170 + $0xa8] sm:$0xff] %vm672, %v4841
      %4874 = vst.msk [vmem:[%s170 + $0xb0] sm:$0xff] %vm672, %v4842
      %4875 = vst.msk [vmem:[%s170 + $0xb8] sm:$0xff] %vm672, %v4843
      %4876 = vst.msk [vmem:[%s170 + $0xc0] sm:$0xff] %vm672, %v4844
      %4877 = vst.msk [vmem:[%s170 + $0xc8] sm:$0xff] %vm672, %v4845
      %4878 = vst.msk [vmem:[%s170 + $0xd0] sm:$0xff] %vm672, %v4846
      %4879 = vst.msk [vmem:[%s170 + $0xd8] sm:$0xff] %vm672, %v4847
      %4880 = vst.msk [vmem:[%s170 + $0xe0] sm:$0xff] %vm672, %v4848
      %4881 = vst.msk [vmem:[%s170 + $0xe8] sm:$0xff] %vm672, %v4849
      %4882 = vst.msk [vmem:[%s170 + $0xf0] sm:$0xff] %vm672, %v4850
      %4883 = vst.msk [vmem:[%s170 + $0xf8] sm:$0xff] %vm672, %v4851
      %v4884 = vld [vmem:[%s3926] sm:$0xf]
      %v4885 = vld [vmem:[%s3926 + $0x4] sm:$0xf]
      %v4886 = vld [vmem:[%s3926 + $0x8] sm:$0x1]
      %v4887 = vld [vmem:[%s3926 + $0xc] sm:$0xf]
      %v4888 = vld [vmem:[%s3926 + $0x10] sm:$0xf]
      %v4889 = vld [vmem:[%s3926 + $0x14] sm:$0x1]
      %v4890 = vld [vmem:[%s3926 + $0x18] sm:$0xf]
      %v4891 = vld [vmem:[%s3926 + $0x1c] sm:$0xf]
      %v4892 = vld [vmem:[%s3926 + $0x20] sm:$0x1]
      %v4893 = vld [vmem:[%s3926 + $0x24] sm:$0xf]
      %v4894 = vld [vmem:[%s3926 + $0x28] sm:$0xf]
      %v4895 = vld [vmem:[%s3926 + $0x2c] sm:$0x1]
      %v4896 = vld [vmem:[%s3926 + $0x30] sm:$0xf]
      %v4897 = vld [vmem:[%s3926 + $0x34] sm:$0xf]
      %v4898 = vld [vmem:[%s3926 + $0x38] sm:$0x1]
      %v4899 = vld [vmem:[%s3926 + $0x3c] sm:$0xf]
      %v4900 = vld [vmem:[%s3926 + $0x40] sm:$0xf]
      %v4901 = vld [vmem:[%s3926 + $0x44] sm:$0x1]
      %v4902 = vld [vmem:[%s3926 + $0x48] sm:$0xf]
      %v4903 = vld [vmem:[%s3926 + $0x4c] sm:$0xf]
      %v4904 = vld [vmem:[%s3926 + $0x50] sm:$0x1]
      %v4905 = vld [vmem:[%s3926 + $0x54] sm:$0xf]
      %v4906 = vld [vmem:[%s3926 + $0x58] sm:$0xf]
      %v4907 = vld [vmem:[%s3926 + $0x5c] sm:$0x1]
      %v4908 = vld [vmem:[%s3926 + $0x60] sm:$0xf]
      %v4909 = vld [vmem:[%s3926 + $0x64] sm:$0xf]
      %v4910 = vld [vmem:[%s3926 + $0x68] sm:$0x1]
      %v4911 = vld [vmem:[%s3926 + $0x6c] sm:$0xf]
      %v4912 = vld [vmem:[%s3926 + $0x70] sm:$0xf]
      %v4913 = vld [vmem:[%s3926 + $0x74] sm:$0x1]
      %v4914 = vld [vmem:[%s3926 + $0x78] sm:$0xf]
      %v4915 = vld [vmem:[%s3926 + $0x7c] sm:$0xf]
      %v4916 = vld [vmem:[%s3926 + $0x80] sm:$0x1]
      %v4917 = vld [vmem:[%s3926 + $0x84] sm:$0xf]
      %v4918 = vld [vmem:[%s3926 + $0x88] sm:$0xf]
      %v4919 = vld [vmem:[%s3926 + $0x8c] sm:$0x1]
      %v4920 = vld [vmem:[%s3926 + $0x90] sm:$0xf]
      %v4921 = vld [vmem:[%s3926 + $0x94] sm:$0xf]
      %v4922 = vld [vmem:[%s3926 + $0x98] sm:$0x1]
      %v4923 = vld [vmem:[%s3926 + $0x9c] sm:$0xf]
      %v4924 = vld [vmem:[%s3926 + $0xa0] sm:$0xf]
      %v4925 = vld [vmem:[%s3926 + $0xa4] sm:$0x1]
      %v4926 = vld [vmem:[%s3926 + $0xa8] sm:$0xf]
      %v4927 = vld [vmem:[%s3926 + $0xac] sm:$0xf]
      %v4928 = vld [vmem:[%s3926 + $0xb0] sm:$0x1]
      %v4929 = vld [vmem:[%s3926 + $0xb4] sm:$0xf]
      %v4930 = vld [vmem:[%s3926 + $0xb8] sm:$0xf]
      %v4931 = vld [vmem:[%s3926 + $0xbc] sm:$0x1]
      %v4964 = vunpack.c.l.b16 %v4884
      %v4965 = vunpack.c.l.b16 %v4885
      %v4966 = vunpack.c.l.b16 %v4887
      %v4967 = vunpack.c.l.b16 %v4888
      %v4968 = vunpack.c.l.b16 %v4890
      %v4969 = vunpack.c.l.b16 %v4891
      %v4970 = vunpack.c.l.b16 %v4893
      %v4971 = vunpack.c.l.b16 %v4894
      %v4972 = vunpack.c.l.b16 %v4896
      %v4973 = vunpack.c.l.b16 %v4897
      %v4974 = vunpack.c.l.b16 %v4899
      %v4975 = vunpack.c.l.b16 %v4900
      %v4976 = vunpack.c.l.b16 %v4902
      %v4977 = vunpack.c.l.b16 %v4903
      %v4978 = vunpack.c.l.b16 %v4905
      %v4979 = vunpack.c.l.b16 %v4906
      %v4980 = vunpack.c.l.b16 %v4908
      %v4981 = vunpack.c.l.b16 %v4909
      %v4982 = vunpack.c.l.b16 %v4911
      %v4983 = vunpack.c.l.b16 %v4912
      %v4984 = vunpack.c.l.b16 %v4914
      %v4985 = vunpack.c.l.b16 %v4915
      %v4986 = vunpack.c.l.b16 %v4917
      %v4987 = vunpack.c.l.b16 %v4918
      %v4988 = vunpack.c.l.b16 %v4920
      %v4989 = vunpack.c.l.b16 %v4921
      %v4990 = vunpack.c.l.b16 %v4923
      %v4991 = vunpack.c.l.b16 %v4924
      %v4992 = vunpack.c.l.b16 %v4926
      %v4993 = vunpack.c.l.b16 %v4927
      %v4994 = vunpack.c.l.b16 %v4929
      %v4995 = vunpack.c.l.b16 %v4930
      %v4996 = vpack.c.b16 %v4965, %v4964
      %v4997 = vpack.c.b16 %v4967, %v4966
      %v4998 = vpack.c.b16 %v4969, %v4968
      %v4999 = vpack.c.b16 %v4971, %v4970
      %v5000 = vpack.c.b16 %v4973, %v4972
      %v5001 = vpack.c.b16 %v4975, %v4974
      %v5002 = vpack.c.b16 %v4977, %v4976
      %v5003 = vpack.c.b16 %v4979, %v4978
      %v5004 = vpack.c.b16 %v4981, %v4980
      %v5005 = vpack.c.b16 %v4983, %v4982
      %v5006 = vpack.c.b16 %v4985, %v4984
      %v5007 = vpack.c.b16 %v4987, %v4986
      %v5008 = vpack.c.b16 %v4989, %v4988
      %v5009 = vpack.c.b16 %v4991, %v4990
      %v5010 = vpack.c.b16 %v4993, %v4992
      %v5011 = vpack.c.b16 %v4995, %v4994
      %v5028 = vunpack.c.l.b16 %v4886
      %v5029 = vunpack.c.l.b16 %v4889
      %v5030 = vunpack.c.l.b16 %v4892
      %v5031 = vunpack.c.l.b16 %v4895
      %v5032 = vunpack.c.l.b16 %v4898
      %v5033 = vunpack.c.l.b16 %v4901
      %v5034 = vunpack.c.l.b16 %v4904
      %v5035 = vunpack.c.l.b16 %v4907
      %v5036 = vunpack.c.l.b16 %v4910
      %v5037 = vunpack.c.l.b16 %v4913
      %v5038 = vunpack.c.l.b16 %v4916
      %v5039 = vunpack.c.l.b16 %v4919
      %v5040 = vunpack.c.l.b16 %v4922
      %v5041 = vunpack.c.l.b16 %v4925
      %v5042 = vunpack.c.l.b16 %v4928
      %v5043 = vunpack.c.l.b16 %v4931
      %v5044 = vpack.c.b16 %v5028, %v5028
      %v5045 = vpack.c.b16 %v5029, %v5029
      %v5046 = vpack.c.b16 %v5030, %v5030
      %v5047 = vpack.c.b16 %v5031, %v5031
      %v5048 = vpack.c.b16 %v5032, %v5032
      %v5049 = vpack.c.b16 %v5033, %v5033
      %v5050 = vpack.c.b16 %v5034, %v5034
      %v5051 = vpack.c.b16 %v5035, %v5035
      %v5052 = vpack.c.b16 %v5036, %v5036
      %v5053 = vpack.c.b16 %v5037, %v5037
      %v5054 = vpack.c.b16 %v5038, %v5038
      %v5055 = vpack.c.b16 %v5039, %v5039
      %v5056 = vpack.c.b16 %v5040, %v5040
      %v5057 = vpack.c.b16 %v5041, %v5041
      %v5058 = vpack.c.b16 %v5042, %v5042
      %v5059 = vpack.c.b16 %v5043, %v5043
      %v5061 = vshrl.u32 %v4996, 16
      %v5063 = vshll.u32 %v4996, 16
      %v5065 = vrot.slane %v5063, 1
      %v5066 = vor.u32 %v5061, %v5065
      %v5068 = vshll.u32 %v5044, 16
      %v5070 = vrot.slane %v5068, 1
      %v5071 = vsel %vm929, %v5066, %v5070
      %v5073 = vshrl.u32 %v4997, 16
      %v5075 = vshll.u32 %v4997, 16
      %v5077 = vrot.slane %v5075, 1
      %v5078 = vor.u32 %v5073, %v5077
      %v5080 = vshll.u32 %v5045, 16
      %v5082 = vrot.slane %v5080, 1
      %v5083 = vsel %vm929, %v5078, %v5082
      %v5085 = vshrl.u32 %v4998, 16
      %v5087 = vshll.u32 %v4998, 16
      %v5089 = vrot.slane %v5087, 1
      %v5090 = vor.u32 %v5085, %v5089
      %v5092 = vshll.u32 %v5046, 16
      %v5094 = vrot.slane %v5092, 1
      %v5095 = vsel %vm929, %v5090, %v5094
      %v5097 = vshrl.u32 %v4999, 16
      %v5099 = vshll.u32 %v4999, 16
      %v5101 = vrot.slane %v5099, 1
      %v5102 = vor.u32 %v5097, %v5101
      %v5104 = vshll.u32 %v5047, 16
      %v5106 = vrot.slane %v5104, 1
      %v5107 = vsel %vm929, %v5102, %v5106
      %v5109 = vshrl.u32 %v5000, 16
      %v5111 = vshll.u32 %v5000, 16
      %v5113 = vrot.slane %v5111, 1
      %v5114 = vor.u32 %v5109, %v5113
      %v5116 = vshll.u32 %v5048, 16
      %v5118 = vrot.slane %v5116, 1
      %v5119 = vsel %vm929, %v5114, %v5118
      %v5121 = vshrl.u32 %v5001, 16
      %v5123 = vshll.u32 %v5001, 16
      %v5125 = vrot.slane %v5123, 1
      %v5126 = vor.u32 %v5121, %v5125
      %v5128 = vshll.u32 %v5049, 16
      %v5130 = vrot.slane %v5128, 1
      %v5131 = vsel %vm929, %v5126, %v5130
      %v5133 = vshrl.u32 %v5002, 16
      %v5135 = vshll.u32 %v5002, 16
      %v5137 = vrot.slane %v5135, 1
      %v5138 = vor.u32 %v5133, %v5137
      %v5140 = vshll.u32 %v5050, 16
      %v5142 = vrot.slane %v5140, 1
      %v5143 = vsel %vm929, %v5138, %v5142
      %v5145 = vshrl.u32 %v5003, 16
      %v5147 = vshll.u32 %v5003, 16
      %v5149 = vrot.slane %v5147, 1
      %v5150 = vor.u32 %v5145, %v5149
      %v5152 = vshll.u32 %v5051, 16
      %v5154 = vrot.slane %v5152, 1
      %v5155 = vsel %vm929, %v5150, %v5154
      %v5157 = vshrl.u32 %v5004, 16
      %v5159 = vshll.u32 %v5004, 16
      %v5161 = vrot.slane %v5159, 1
      %v5162 = vor.u32 %v5157, %v5161
      %v5164 = vshll.u32 %v5052, 16
      %v5166 = vrot.slane %v5164, 1
      %v5167 = vsel %vm929, %v5162, %v5166
      %v5169 = vshrl.u32 %v5005, 16
      %v5171 = vshll.u32 %v5005, 16
      %v5173 = vrot.slane %v5171, 1
      %v5174 = vor.u32 %v5169, %v5173
      %v5176 = vshll.u32 %v5053, 16
      %v5178 = vrot.slane %v5176, 1
      %v5179 = vsel %vm929, %v5174, %v5178
      %v5181 = vshrl.u32 %v5006, 16
      %v5183 = vshll.u32 %v5006, 16
      %v5185 = vrot.slane %v5183, 1
      %v5186 = vor.u32 %v5181, %v5185
      %v5188 = vshll.u32 %v5054, 16
      %v5190 = vrot.slane %v5188, 1
      %v5191 = vsel %vm929, %v5186, %v5190
      %v5193 = vshrl.u32 %v5007, 16
      %v5195 = vshll.u32 %v5007, 16
      %v5197 = vrot.slane %v5195, 1
      %v5198 = vor.u32 %v5193, %v5197
      %v5200 = vshll.u32 %v5055, 16
      %v5202 = vrot.slane %v5200, 1
      %v5203 = vsel %vm929, %v5198, %v5202
      %v5205 = vshrl.u32 %v5008, 16
      %v5207 = vshll.u32 %v5008, 16
      %v5209 = vrot.slane %v5207, 1
      %v5210 = vor.u32 %v5205, %v5209
      %v5212 = vshll.u32 %v5056, 16
      %v5214 = vrot.slane %v5212, 1
      %v5215 = vsel %vm929, %v5210, %v5214
      %v5217 = vshrl.u32 %v5009, 16
      %v5219 = vshll.u32 %v5009, 16
      %v5221 = vrot.slane %v5219, 1
      %v5222 = vor.u32 %v5217, %v5221
      %v5224 = vshll.u32 %v5057, 16
      %v5226 = vrot.slane %v5224, 1
      %v5227 = vsel %vm929, %v5222, %v5226
      %v5229 = vshrl.u32 %v5010, 16
      %v5231 = vshll.u32 %v5010, 16
      %v5233 = vrot.slane %v5231, 1
      %v5234 = vor.u32 %v5229, %v5233
      %v5236 = vshll.u32 %v5058, 16
      %v5238 = vrot.slane %v5236, 1
      %v5239 = vsel %vm929, %v5234, %v5238
      %v5241 = vshrl.u32 %v5011, 16
      %v5243 = vshll.u32 %v5011, 16
      %v5245 = vrot.slane %v5243, 1
      %v5246 = vor.u32 %v5241, %v5245
      %v5248 = vshll.u32 %v5059, 16
      %v5250 = vrot.slane %v5248, 1
      %v5251 = vsel %vm929, %v5246, %v5250
      %5252 = vrot.lane.b32.xlu0 %v5071, 4
      %v5253 = vpop.permute.xlu0 %5252
      %5254 = vrot.lane.b32.xlu0 %v5083, 4
      %v5255 = vpop.permute.xlu0 %5254
      %5256 = vrot.lane.b32.xlu0 %v5095, 4
      %v5257 = vpop.permute.xlu0 %5256
      %5258 = vrot.lane.b32.xlu0 %v5107, 4
      %v5259 = vpop.permute.xlu0 %5258
      %5260 = vrot.lane.b32.xlu0 %v5119, 4
      %v5261 = vpop.permute.xlu0 %5260
      %5262 = vrot.lane.b32.xlu0 %v5131, 4
      %v5263 = vpop.permute.xlu0 %5262
      %5264 = vrot.lane.b32.xlu0 %v5143, 4
      %v5265 = vpop.permute.xlu0 %5264
      %5266 = vrot.lane.b32.xlu0 %v5155, 4
      %v5267 = vpop.permute.xlu0 %5266
      %5268 = vrot.lane.b32.xlu0 %v5167, 4
      %v5269 = vpop.permute.xlu0 %5268
      %5270 = vrot.lane.b32.xlu0 %v5179, 4
      %v5271 = vpop.permute.xlu0 %5270
      %5272 = vrot.lane.b32.xlu0 %v5191, 4
      %v5273 = vpop.permute.xlu0 %5272
      %5274 = vrot.lane.b32.xlu0 %v5203, 4
      %v5275 = vpop.permute.xlu0 %5274
      %5276 = vrot.lane.b32.xlu0 %v5215, 4
      %v5277 = vpop.permute.xlu0 %5276
      %5278 = vrot.lane.b32.xlu0 %v5227, 4
      %v5279 = vpop.permute.xlu0 %5278
      %5280 = vrot.lane.b32.xlu0 %v5239, 4
      %v5281 = vpop.permute.xlu0 %5280
      %5282 = vrot.lane.b32.xlu0 %v5251, 4
      %v5283 = vpop.permute.xlu0 %5282
      %v5284 = vrot.slane %v4996, 1
      %v5285 = vrot.slane %v5044, 1
      %v5286 = vsel %vm1154, %v5284, %v5285
      %v5287 = vrot.slane %v4997, 1
      %v5288 = vrot.slane %v5045, 1
      %v5289 = vsel %vm1154, %v5287, %v5288
      %v5290 = vrot.slane %v4998, 1
      %v5291 = vrot.slane %v5046, 1
      %v5292 = vsel %vm1154, %v5290, %v5291
      %v5293 = vrot.slane %v4999, 1
      %v5294 = vrot.slane %v5047, 1
      %v5295 = vsel %vm1154, %v5293, %v5294
      %v5296 = vrot.slane %v5000, 1
      %v5297 = vrot.slane %v5048, 1
      %v5298 = vsel %vm1154, %v5296, %v5297
      %v5299 = vrot.slane %v5001, 1
      %v5300 = vrot.slane %v5049, 1
      %v5301 = vsel %vm1154, %v5299, %v5300
      %v5302 = vrot.slane %v5002, 1
      %v5303 = vrot.slane %v5050, 1
      %v5304 = vsel %vm1154, %v5302, %v5303
      %v5305 = vrot.slane %v5003, 1
      %v5306 = vrot.slane %v5051, 1
      %v5307 = vsel %vm1154, %v5305, %v5306
      %v5308 = vrot.slane %v5004, 1
      %v5309 = vrot.slane %v5052, 1
      %v5310 = vsel %vm1154, %v5308, %v5309
      %v5311 = vrot.slane %v5005, 1
      %v5312 = vrot.slane %v5053, 1
      %v5313 = vsel %vm1154, %v5311, %v5312
      %v5314 = vrot.slane %v5006, 1
      %v5315 = vrot.slane %v5054, 1
      %v5316 = vsel %vm1154, %v5314, %v5315
      %v5317 = vrot.slane %v5007, 1
      %v5318 = vrot.slane %v5055, 1
      %v5319 = vsel %vm1154, %v5317, %v5318
      %v5320 = vrot.slane %v5008, 1
      %v5321 = vrot.slane %v5056, 1
      %v5322 = vsel %vm1154, %v5320, %v5321
      %v5323 = vrot.slane %v5009, 1
      %v5324 = vrot.slane %v5057, 1
      %v5325 = vsel %vm1154, %v5323, %v5324
      %v5326 = vrot.slane %v5010, 1
      %v5327 = vrot.slane %v5058, 1
      %v5328 = vsel %vm1154, %v5326, %v5327
      %v5329 = vrot.slane %v5011, 1
      %v5330 = vrot.slane %v5059, 1
      %v5331 = vsel %vm1154, %v5329, %v5330
      %5332 = vrot.lane.b32.xlu0 %v5286, 8
      %v5333 = vpop.permute.xlu0 %5332
      %5334 = vrot.lane.b32.xlu0 %v5289, 8
      %v5335 = vpop.permute.xlu0 %5334
      %5336 = vrot.lane.b32.xlu0 %v5292, 8
      %v5337 = vpop.permute.xlu0 %5336
      %5338 = vrot.lane.b32.xlu0 %v5295, 8
      %v5339 = vpop.permute.xlu0 %5338
      %5340 = vrot.lane.b32.xlu0 %v5298, 8
      %v5341 = vpop.permute.xlu0 %5340
      %5342 = vrot.lane.b32.xlu0 %v5301, 8
      %v5343 = vpop.permute.xlu0 %5342
      %5344 = vrot.lane.b32.xlu0 %v5304, 8
      %v5345 = vpop.permute.xlu0 %5344
      %5346 = vrot.lane.b32.xlu0 %v5307, 8
      %v5347 = vpop.permute.xlu0 %5346
      %5348 = vrot.lane.b32.xlu0 %v5310, 8
      %v5349 = vpop.permute.xlu0 %5348
      %5350 = vrot.lane.b32.xlu0 %v5313, 8
      %v5351 = vpop.permute.xlu0 %5350
      %5352 = vrot.lane.b32.xlu0 %v5316, 8
      %v5353 = vpop.permute.xlu0 %5352
      %5354 = vrot.lane.b32.xlu0 %v5319, 8
      %v5355 = vpop.permute.xlu0 %5354
      %5356 = vrot.lane.b32.xlu0 %v5322, 8
      %v5357 = vpop.permute.xlu0 %5356
      %5358 = vrot.lane.b32.xlu0 %v5325, 8
      %v5359 = vpop.permute.xlu0 %5358
      %5360 = vrot.lane.b32.xlu0 %v5328, 8
      %v5361 = vpop.permute.xlu0 %5360
      %5362 = vrot.lane.b32.xlu0 %v5331, 8
      %v5363 = vpop.permute.xlu0 %5362
      %v5365 = vsel %vm672, %v4996, %v5253
      %v5367 = vsel %vm672, %v4997, %v5255
      %v5369 = vsel %vm672, %v4998, %v5257
      %v5371 = vsel %vm672, %v4999, %v5259
      %v5373 = vsel %vm672, %v5000, %v5261
      %v5375 = vsel %vm672, %v5001, %v5263
      %v5377 = vsel %vm672, %v5002, %v5265
      %v5379 = vsel %vm672, %v5003, %v5267
      %v5381 = vsel %vm672, %v5004, %v5269
      %v5383 = vsel %vm672, %v5005, %v5271
      %v5385 = vsel %vm672, %v5006, %v5273
      %v5387 = vsel %vm672, %v5007, %v5275
      %v5389 = vsel %vm672, %v5008, %v5277
      %v5391 = vsel %vm672, %v5009, %v5279
      %v5393 = vsel %vm672, %v5010, %v5281
      %v5395 = vsel %vm672, %v5011, %v5283
      %v5397 = vsel %vm1267, %v5365, %v5333
      %v5399 = vsel %vm1267, %v5367, %v5335
      %v5401 = vsel %vm1267, %v5369, %v5337
      %v5403 = vsel %vm1267, %v5371, %v5339
      %v5405 = vsel %vm1267, %v5373, %v5341
      %v5407 = vsel %vm1267, %v5375, %v5343
      %v5409 = vsel %vm1267, %v5377, %v5345
      %v5411 = vsel %vm1267, %v5379, %v5347
      %v5413 = vsel %vm1267, %v5381, %v5349
      %v5415 = vsel %vm1267, %v5383, %v5351
      %v5417 = vsel %vm1267, %v5385, %v5353
      %v5419 = vsel %vm1267, %v5387, %v5355
      %v5421 = vsel %vm1267, %v5389, %v5357
      %v5423 = vsel %vm1267, %v5391, %v5359
      %v5425 = vsel %vm1267, %v5393, %v5361
      %v5427 = vsel %vm1267, %v5395, %v5363
      %v5428 = vld [vmem:[%s170] sm:$0xff]
      %v5429 = vld [vmem:[%s170 + $0x8] sm:$0xff]
      %v5430 = vld [vmem:[%s170 + $0x10] sm:$0xff]
      %v5431 = vld [vmem:[%s170 + $0x18] sm:$0xff]
      %v5432 = vld [vmem:[%s170 + $0x20] sm:$0xff]
      %v5433 = vld [vmem:[%s170 + $0x28] sm:$0xff]
      %v5434 = vld [vmem:[%s170 + $0x30] sm:$0xff]
      %v5435 = vld [vmem:[%s170 + $0x38] sm:$0xff]
      %v5436 = vld [vmem:[%s170 + $0x40] sm:$0xff]
      %v5437 = vld [vmem:[%s170 + $0x48] sm:$0xff]
      %v5438 = vld [vmem:[%s170 + $0x50] sm:$0xff]
      %v5439 = vld [vmem:[%s170 + $0x58] sm:$0xff]
      %v5440 = vld [vmem:[%s170 + $0x60] sm:$0xff]
      %v5441 = vld [vmem:[%s170 + $0x68] sm:$0xff]
      %v5442 = vld [vmem:[%s170 + $0x70] sm:$0xff]
      %v5443 = vld [vmem:[%s170 + $0x78] sm:$0xff]
      %v5444 = vld [vmem:[%s170 + $0x80] sm:$0xff]
      %v5445 = vld [vmem:[%s170 + $0x88] sm:$0xff]
      %v5446 = vld [vmem:[%s170 + $0x90] sm:$0xff]
      %v5447 = vld [vmem:[%s170 + $0x98] sm:$0xff]
      %v5448 = vld [vmem:[%s170 + $0xa0] sm:$0xff]
      %v5449 = vld [vmem:[%s170 + $0xa8] sm:$0xff]
      %v5450 = vld [vmem:[%s170 + $0xb0] sm:$0xff]
      %v5451 = vld [vmem:[%s170 + $0xb8] sm:$0xff]
      %v5452 = vld [vmem:[%s170 + $0xc0] sm:$0xff]
      %v5453 = vld [vmem:[%s170 + $0xc8] sm:$0xff]
      %v5454 = vld [vmem:[%s170 + $0xd0] sm:$0xff]
      %v5455 = vld [vmem:[%s170 + $0xd8] sm:$0xff]
      %v5456 = vld [vmem:[%s170 + $0xe0] sm:$0xff]
      %v5457 = vld [vmem:[%s170 + $0xe8] sm:$0xff]
      %v5458 = vld [vmem:[%s170 + $0xf0] sm:$0xff]
      %v5459 = vld [vmem:[%s170 + $0xf8] sm:$0xff]
      %s5460 = scalar_lea.vmem %s2, 8
      %v5461 = vld [vmem:[%s5460] sm:$0xf]
      %v5462 = vld [vmem:[%s5460 + $0x4] sm:$0x3]
      %v5465 = vunpack.c.l.b16 %v5461
      %v5466 = vunpack.c.l.b16 %v5462
      %v5467 = vpack.c.b16 %v5466, %v5465
      %v5468 = vsel %vm1307, %v5397, 0
      %v5470 = vsel %vm1307, %v5399, 0
      %v5472 = vsel %vm1307, %v5401, 0
      %v5474 = vsel %vm1307, %v5403, 0
      %v5476 = vsel %vm1307, %v5405, 0
      %v5478 = vsel %vm1307, %v5407, 0
      %v5480 = vsel %vm1307, %v5409, 0
      %v5482 = vsel %vm1307, %v5411, 0
      %v5484 = vsel %vm1307, %v5413, 0
      %v5486 = vsel %vm1307, %v5415, 0
      %v5488 = vsel %vm1307, %v5417, 0
      %v5490 = vsel %vm1307, %v5419, 0
      %v5492 = vsel %vm1307, %v5421, 0
      %v5494 = vsel %vm1307, %v5423, 0
      %v5496 = vsel %vm1307, %v5425, 0
      %v5498 = vsel %vm1307, %v5427, 0
      %v5501 = vsel %vm1340, %v5467, 0
      %5503 = vmatprep.subr.bf16.mxu0 0
      %5504 = vmatpush1.bf16.msra.mxu0 0
      %5505 = vmatprep.subr.bf16.mxu0 0
      %5506 = vmatpush1.bf16.msra.mxu0 0
      %5507 = vmatprep.subr.bf16.mxu0 0
      %5508 = vmatpush1.bf16.msra.mxu0 0
      %5509 = vmatprep.subr.bf16.mxu0 0
      %5510 = vmatpush1.bf16.msra.mxu0 0
      %5511 = vmatprep.subr.bf16.mxu0 0
      %5512 = vmatpush1.bf16.msra.mxu0 0
      %5513 = vmatprep.subr.bf16.mxu0 0
      %5514 = vmatpush1.bf16.msra.mxu0 0
      %5515 = vmatprep.subr.bf16.mxu0 0
      %5516 = vmatpush1.bf16.msra.mxu0 0
      %5517 = vmatprep.subr.bf16.mxu0 0
      %5518 = vmatpush1.bf16.msra.mxu0 %v5501
      %5519 = vmatprep.subr.bf16.mxu0 0
      %5520 = vmatpush2.bf16.msra.mxu0 0
      %5521 = vmatprep.subr.bf16.mxu0 0
      %5522 = vmatpush2.bf16.msra.mxu0 0
      %5523 = vmatprep.subr.bf16.mxu0 0
      %5524 = vmatpush2.bf16.msra.mxu0 0
      %5525 = vmatprep.subr.bf16.mxu0 0
      %5526 = vmatpush2.bf16.msra.mxu0 0
      %5527 = vmatprep.subr.bf16.mxu0 0
      %5528 = vmatpush2.bf16.msra.mxu0 0
      %5529 = vmatprep.subr.bf16.mxu0 0
      %5530 = vmatpush2.bf16.msra.mxu0 0
      %5531 = vmatprep.subr.bf16.mxu0 0
      %5532 = vmatpush2.bf16.msra.mxu0 0
      %5533 = vmatprep.subr.bf16.mxu0 0
      %5534 = vmatpush2.bf16.msra.mxu0 0
      %5535 = vmatprep.mubr.bf16.mxu0 0
      %5536 = vmatmul.mubr.bf16.gmra.mxu0 %v5468
      %v5537 = vpop.f32.mrf.mxu0
      %v5538 = vadd.f32 0.0, %v5537
      %v5539 = vpop.f32.mrf.mxu0
      %v5540 = vpop.f32.mrf.mxu0
      %v5541 = vadd.f32 0.0, %v5540
      %v5542 = vpop.f32.mrf.mxu0
      %5543 = vmatprep.mubr.bf16.mxu0 0
      %5544 = vmatmul.mubr.bf16.gmra.mxu0 %v5470
      %v5545 = vpop.f32.mrf.mxu0
      %v5546 = vadd.f32 0.0, %v5545
      %v5547 = vpop.f32.mrf.mxu0
      %v5548 = vpop.f32.mrf.mxu0
      %v5549 = vadd.f32 0.0, %v5548
      %v5550 = vpop.f32.mrf.mxu0
      %5551 = vmatprep.mubr.bf16.mxu0 0
      %5552 = vmatmul.mubr.bf16.gmra.mxu0 %v5472
      %v5553 = vpop.f32.mrf.mxu0
      %v5554 = vadd.f32 0.0, %v5553
      %v5555 = vpop.f32.mrf.mxu0
      %v5556 = vpop.f32.mrf.mxu0
      %v5557 = vadd.f32 0.0, %v5556
      %v5558 = vpop.f32.mrf.mxu0
      %5559 = vmatprep.mubr.bf16.mxu0 0
      %5560 = vmatmul.mubr.bf16.gmra.mxu0 %v5474
      %v5561 = vpop.f32.mrf.mxu0
      %v5562 = vadd.f32 0.0, %v5561
      %v5563 = vpop.f32.mrf.mxu0
      %v5564 = vpop.f32.mrf.mxu0
      %v5565 = vadd.f32 0.0, %v5564
      %v5566 = vpop.f32.mrf.mxu0
      %5567 = vmatprep.mubr.bf16.mxu0 0
      %5568 = vmatmul.mubr.bf16.gmra.mxu0 %v5476
      %v5569 = vpop.f32.mrf.mxu0
      %v5570 = vadd.f32 0.0, %v5569
      %v5571 = vpop.f32.mrf.mxu0
      %v5572 = vpop.f32.mrf.mxu0
      %v5573 = vadd.f32 0.0, %v5572
      %v5574 = vpop.f32.mrf.mxu0
      %5575 = vmatprep.mubr.bf16.mxu0 0
      %5576 = vmatmul.mubr.bf16.gmra.mxu0 %v5478
      %v5577 = vpop.f32.mrf.mxu0
      %v5578 = vadd.f32 0.0, %v5577
      %v5579 = vpop.f32.mrf.mxu0
      %v5580 = vpop.f32.mrf.mxu0
      %v5581 = vadd.f32 0.0, %v5580
      %v5582 = vpop.f32.mrf.mxu0
      %5583 = vmatprep.mubr.bf16.mxu0 0
      %5584 = vmatmul.mubr.bf16.gmra.mxu0 %v5480
      %v5585 = vpop.f32.mrf.mxu0
      %v5586 = vadd.f32 0.0, %v5585
      %v5587 = vpop.f32.mrf.mxu0
      %v5588 = vpop.f32.mrf.mxu0
      %v5589 = vadd.f32 0.0, %v5588
      %v5590 = vpop.f32.mrf.mxu0
      %5591 = vmatprep.mubr.bf16.mxu0 0
      %5592 = vmatmul.mubr.bf16.gmra.mxu0 %v5482
      %v5593 = vpop.f32.mrf.mxu0
      %v5594 = vadd.f32 0.0, %v5593
      %v5595 = vpop.f32.mrf.mxu0
      %v5596 = vpop.f32.mrf.mxu0
      %v5597 = vadd.f32 0.0, %v5596
      %v5598 = vpop.f32.mrf.mxu0
      %5599 = vmatprep.mubr.bf16.mxu0 0
      %5600 = vmatmul.mubr.bf16.gmra.mxu0 %v5484
      %v5601 = vpop.f32.mrf.mxu0
      %v5602 = vadd.f32 0.0, %v5601
      %v5603 = vpop.f32.mrf.mxu0
      %v5604 = vpop.f32.mrf.mxu0
      %v5605 = vadd.f32 0.0, %v5604
      %v5606 = vpop.f32.mrf.mxu0
      %5607 = vmatprep.mubr.bf16.mxu0 0
      %5608 = vmatmul.mubr.bf16.gmra.mxu0 %v5486
      %v5609 = vpop.f32.mrf.mxu0
      %v5610 = vadd.f32 0.0, %v5609
      %v5611 = vpop.f32.mrf.mxu0
      %v5612 = vpop.f32.mrf.mxu0
      %v5613 = vadd.f32 0.0, %v5612
      %v5614 = vpop.f32.mrf.mxu0
      %5615 = vmatprep.mubr.bf16.mxu0 0
      %5616 = vmatmul.mubr.bf16.gmra.mxu0 %v5488
      %v5617 = vpop.f32.mrf.mxu0
      %v5618 = vadd.f32 0.0, %v5617
      %v5619 = vpop.f32.mrf.mxu0
      %v5620 = vpop.f32.mrf.mxu0
      %v5621 = vadd.f32 0.0, %v5620
      %v5622 = vpop.f32.mrf.mxu0
      %5623 = vmatprep.mubr.bf16.mxu0 0
      %5624 = vmatmul.mubr.bf16.gmra.mxu0 %v5490
      %v5625 = vpop.f32.mrf.mxu0
      %v5626 = vadd.f32 0.0, %v5625
      %v5627 = vpop.f32.mrf.mxu0
      %v5628 = vpop.f32.mrf.mxu0
      %v5629 = vadd.f32 0.0, %v5628
      %v5630 = vpop.f32.mrf.mxu0
      %5631 = vmatprep.mubr.bf16.mxu0 0
      %5632 = vmatmul.mubr.bf16.gmra.mxu0 %v5492
      %v5633 = vpop.f32.mrf.mxu0
      %v5634 = vadd.f32 0.0, %v5633
      %v5635 = vpop.f32.mrf.mxu0
      %v5636 = vpop.f32.mrf.mxu0
      %v5637 = vadd.f32 0.0, %v5636
      %v5638 = vpop.f32.mrf.mxu0
      %5639 = vmatprep.mubr.bf16.mxu0 0
      %5640 = vmatmul.mubr.bf16.gmra.mxu0 %v5494
      %v5641 = vpop.f32.mrf.mxu0
      %v5642 = vadd.f32 0.0, %v5641
      %v5643 = vpop.f32.mrf.mxu0
      %v5644 = vpop.f32.mrf.mxu0
      %v5645 = vadd.f32 0.0, %v5644
      %v5646 = vpop.f32.mrf.mxu0
      %5647 = vmatprep.mubr.bf16.mxu0 0
      %5648 = vmatmul.mubr.bf16.gmra.mxu0 %v5496
      %v5649 = vpop.f32.mrf.mxu0
      %v5650 = vadd.f32 0.0, %v5649
      %v5651 = vpop.f32.mrf.mxu0
      %v5652 = vpop.f32.mrf.mxu0
      %v5653 = vadd.f32 0.0, %v5652
      %v5654 = vpop.f32.mrf.mxu0
      %5655 = vmatprep.mubr.bf16.mxu0 0
      %5656 = vmatmul.mubr.bf16.gmra.mxu0 %v5498
      %v5657 = vpop.f32.mrf.mxu0
      %v5658 = vadd.f32 0.0, %v5657
      %v5659 = vpop.f32.mrf.mxu0
      %v5660 = vpop.f32.mrf.mxu0
      %v5661 = vadd.f32 0.0, %v5660
      %v5662 = vpop.f32.mrf.mxu0
      %5663 = vdwg.mxu0
      %v5664 = vadd.f32 %v5428, %v5538
      %v5665 = vadd.f32 %v5429, %v5541
      %v5666 = vadd.f32 %v5430, %v5546
      %v5667 = vadd.f32 %v5431, %v5549
      %v5668 = vadd.f32 %v5432, %v5554
      %v5669 = vadd.f32 %v5433, %v5557
      %v5670 = vadd.f32 %v5434, %v5562
      %v5671 = vadd.f32 %v5435, %v5565
      %v5672 = vadd.f32 %v5436, %v5570
      %v5673 = vadd.f32 %v5437, %v5573
      %v5674 = vadd.f32 %v5438, %v5578
      %v5675 = vadd.f32 %v5439, %v5581
      %v5676 = vadd.f32 %v5440, %v5586
      %v5677 = vadd.f32 %v5441, %v5589
      %v5678 = vadd.f32 %v5442, %v5594
      %v5679 = vadd.f32 %v5443, %v5597
      %v5680 = vadd.f32 %v5444, %v5602
      %v5681 = vadd.f32 %v5445, %v5605
      %v5682 = vadd.f32 %v5446, %v5610
      %v5683 = vadd.f32 %v5447, %v5613
      %v5684 = vadd.f32 %v5448, %v5618
      %v5685 = vadd.f32 %v5449, %v5621
      %v5686 = vadd.f32 %v5450, %v5626
      %v5687 = vadd.f32 %v5451, %v5629
      %v5688 = vadd.f32 %v5452, %v5634
      %v5689 = vadd.f32 %v5453, %v5637
      %v5690 = vadd.f32 %v5454, %v5642
      %v5691 = vadd.f32 %v5455, %v5645
      %v5692 = vadd.f32 %v5456, %v5650
      %v5693 = vadd.f32 %v5457, %v5653
      %v5694 = vadd.f32 %v5458, %v5658
      %v5695 = vadd.f32 %v5459, %v5661
      %5696 = vst.msk [vmem:[%s170] sm:$0xff] %vm672, %v5664
      %5697 = vst.msk [vmem:[%s170 + $0x8] sm:$0xff] %vm672, %v5665
      %5698 = vst.msk [vmem:[%s170 + $0x10] sm:$0xff] %vm672, %v5666
      %5699 = vst.msk [vmem:[%s170 + $0x18] sm:$0xff] %vm672, %v5667
      %5700 = vst.msk [vmem:[%s170 + $0x20] sm:$0xff] %vm672, %v5668
      %5701 = vst.msk [vmem:[%s170 + $0x28] sm:$0xff] %vm672, %v5669
      %5702 = vst.msk [vmem:[%s170 + $0x30] sm:$0xff] %vm672, %v5670
      %5703 = vst.msk [vmem:[%s170 + $0x38] sm:$0xff] %vm672, %v5671
      %5704 = vst.msk [vmem:[%s170 + $0x40] sm:$0xff] %vm672, %v5672
      %5705 = vst.msk [vmem:[%s170 + $0x48] sm:$0xff] %vm672, %v5673
      %5706 = vst.msk [vmem:[%s170 + $0x50] sm:$0xff] %vm672, %v5674
      %5707 = vst.msk [vmem:[%s170 + $0x58] sm:$0xff] %vm672, %v5675
      %5708 = vst.msk [vmem:[%s170 + $0x60] sm:$0xff] %vm672, %v5676
      %5709 = vst.msk [vmem:[%s170 + $0x68] sm:$0xff] %vm672, %v5677
      %5710 = vst.msk [vmem:[%s170 + $0x70] sm:$0xff] %vm672, %v5678
      %5711 = vst.msk [vmem:[%s170 + $0x78] sm:$0xff] %vm672, %v5679
      %5712 = vst.msk [vmem:[%s170 + $0x80] sm:$0xff] %vm672, %v5680
      %5713 = vst.msk [vmem:[%s170 + $0x88] sm:$0xff] %vm672, %v5681
      %5714 = vst.msk [vmem:[%s170 + $0x90] sm:$0xff] %vm672, %v5682
      %5715 = vst.msk [vmem:[%s170 + $0x98] sm:$0xff] %vm672, %v5683
      %5716 = vst.msk [vmem:[%s170 + $0xa0] sm:$0xff] %vm672, %v5684
      %5717 = vst.msk [vmem:[%s170 + $0xa8] sm:$0xff] %vm672, %v5685
      %5718 = vst.msk [vmem:[%s170 + $0xb0] sm:$0xff] %vm672, %v5686
      %5719 = vst.msk [vmem:[%s170 + $0xb8] sm:$0xff] %vm672, %v5687
      %5720 = vst.msk [vmem:[%s170 + $0xc0] sm:$0xff] %vm672, %v5688
      %5721 = vst.msk [vmem:[%s170 + $0xc8] sm:$0xff] %vm672, %v5689
      %5722 = vst.msk [vmem:[%s170 + $0xd0] sm:$0xff] %vm672, %v5690
      %5723 = vst.msk [vmem:[%s170 + $0xd8] sm:$0xff] %vm672, %v5691
      %5724 = vst.msk [vmem:[%s170 + $0xe0] sm:$0xff] %vm672, %v5692
      %5725 = vst.msk [vmem:[%s170 + $0xe8] sm:$0xff] %vm672, %v5693
      %5726 = vst.msk [vmem:[%s170 + $0xf0] sm:$0xff] %vm672, %v5694
      %5727 = vst.msk [vmem:[%s170 + $0xf8] sm:$0xff] %vm672, %v5695
      %s5728 = scalar_lea.vmem [#allocation3], 24
      %v5729 = vld [vmem:[%s5728] sm:$0xf]
      %v5730 = vld [vmem:[%s5728 + $0x4] sm:$0xf]
      %v5731 = vld [vmem:[%s5728 + $0x8] sm:$0x1]
      %v5732 = vld [vmem:[%s5728 + $0xc] sm:$0xf]
      %v5733 = vld [vmem:[%s5728 + $0x10] sm:$0xf]
      %v5734 = vld [vmem:[%s5728 + $0x14] sm:$0x1]
      %v5735 = vld [vmem:[%s5728 + $0x18] sm:$0xf]
      %v5736 = vld [vmem:[%s5728 + $0x1c] sm:$0xf]
      %v5737 = vld [vmem:[%s5728 + $0x20] sm:$0x1]
      %v5738 = vld [vmem:[%s5728 + $0x24] sm:$0xf]
      %v5739 = vld [vmem:[%s5728 + $0x28] sm:$0xf]
      %v5740 = vld [vmem:[%s5728 + $0x2c] sm:$0x1]
      %v5741 = vld [vmem:[%s5728 + $0x30] sm:$0xf]
      %v5742 = vld [vmem:[%s5728 + $0x34] sm:$0xf]
      %v5743 = vld [vmem:[%s5728 + $0x38] sm:$0x1]
      %v5744 = vld [vmem:[%s5728 + $0x3c] sm:$0xf]
      %v5745 = vld [vmem:[%s5728 + $0x40] sm:$0xf]
      %v5746 = vld [vmem:[%s5728 + $0x44] sm:$0x1]
      %v5747 = vld [vmem:[%s5728 + $0x48] sm:$0xf]
      %v5748 = vld [vmem:[%s5728 + $0x4c] sm:$0xf]
      %v5749 = vld [vmem:[%s5728 + $0x50] sm:$0x1]
      %v5750 = vld [vmem:[%s5728 + $0x54] sm:$0xf]
      %v5751 = vld [vmem:[%s5728 + $0x58] sm:$0xf]
      %v5752 = vld [vmem:[%s5728 + $0x5c] sm:$0x1]
      %v5753 = vld [vmem:[%s5728 + $0x60] sm:$0xf]
      %v5754 = vld [vmem:[%s5728 + $0x64] sm:$0xf]
      %v5755 = vld [vmem:[%s5728 + $0x68] sm:$0x1]
      %v5756 = vld [vmem:[%s5728 + $0x6c] sm:$0xf]
      %v5757 = vld [vmem:[%s5728 + $0x70] sm:$0xf]
      %v5758 = vld [vmem:[%s5728 + $0x74] sm:$0x1]
      %v5759 = vld [vmem:[%s5728 + $0x78] sm:$0xf]
      %v5760 = vld [vmem:[%s5728 + $0x7c] sm:$0xf]
      %v5761 = vld [vmem:[%s5728 + $0x80] sm:$0x1]
      %v5762 = vld [vmem:[%s5728 + $0x84] sm:$0xf]
      %v5763 = vld [vmem:[%s5728 + $0x88] sm:$0xf]
      %v5764 = vld [vmem:[%s5728 + $0x8c] sm:$0x1]
      %v5765 = vld [vmem:[%s5728 + $0x90] sm:$0xf]
      %v5766 = vld [vmem:[%s5728 + $0x94] sm:$0xf]
      %v5767 = vld [vmem:[%s5728 + $0x98] sm:$0x1]
      %v5768 = vld [vmem:[%s5728 + $0x9c] sm:$0xf]
      %v5769 = vld [vmem:[%s5728 + $0xa0] sm:$0xf]
      %v5770 = vld [vmem:[%s5728 + $0xa4] sm:$0x1]
      %v5771 = vld [vmem:[%s5728 + $0xa8] sm:$0xf]
      %v5772 = vld [vmem:[%s5728 + $0xac] sm:$0xf]
      %v5773 = vld [vmem:[%s5728 + $0xb0] sm:$0x1]
      %v5774 = vld [vmem:[%s5728 + $0xb4] sm:$0xf]
      %v5775 = vld [vmem:[%s5728 + $0xb8] sm:$0xf]
      %v5776 = vld [vmem:[%s5728 + $0xbc] sm:$0x1]
      %v5809 = vunpack.c.l.b16 %v5729
      %v5810 = vunpack.c.l.b16 %v5730
      %v5811 = vunpack.c.l.b16 %v5732
      %v5812 = vunpack.c.l.b16 %v5733
      %v5813 = vunpack.c.l.b16 %v5735
      %v5814 = vunpack.c.l.b16 %v5736
      %v5815 = vunpack.c.l.b16 %v5738
      %v5816 = vunpack.c.l.b16 %v5739
      %v5817 = vunpack.c.l.b16 %v5741
      %v5818 = vunpack.c.l.b16 %v5742
      %v5819 = vunpack.c.l.b16 %v5744
      %v5820 = vunpack.c.l.b16 %v5745
      %v5821 = vunpack.c.l.b16 %v5747
      %v5822 = vunpack.c.l.b16 %v5748
      %v5823 = vunpack.c.l.b16 %v5750
      %v5824 = vunpack.c.l.b16 %v5751
      %v5825 = vunpack.c.l.b16 %v5753
      %v5826 = vunpack.c.l.b16 %v5754
      %v5827 = vunpack.c.l.b16 %v5756
      %v5828 = vunpack.c.l.b16 %v5757
      %v5829 = vunpack.c.l.b16 %v5759
      %v5830 = vunpack.c.l.b16 %v5760
      %v5831 = vunpack.c.l.b16 %v5762
      %v5832 = vunpack.c.l.b16 %v5763
      %v5833 = vunpack.c.l.b16 %v5765
      %v5834 = vunpack.c.l.b16 %v5766
      %v5835 = vunpack.c.l.b16 %v5768
      %v5836 = vunpack.c.l.b16 %v5769
      %v5837 = vunpack.c.l.b16 %v5771
      %v5838 = vunpack.c.l.b16 %v5772
      %v5839 = vunpack.c.l.b16 %v5774
      %v5840 = vunpack.c.l.b16 %v5775
      %v5841 = vpack.c.b16 %v5810, %v5809
      %v5842 = vpack.c.b16 %v5812, %v5811
      %v5843 = vpack.c.b16 %v5814, %v5813
      %v5844 = vpack.c.b16 %v5816, %v5815
      %v5845 = vpack.c.b16 %v5818, %v5817
      %v5846 = vpack.c.b16 %v5820, %v5819
      %v5847 = vpack.c.b16 %v5822, %v5821
      %v5848 = vpack.c.b16 %v5824, %v5823
      %v5849 = vpack.c.b16 %v5826, %v5825
      %v5850 = vpack.c.b16 %v5828, %v5827
      %v5851 = vpack.c.b16 %v5830, %v5829
      %v5852 = vpack.c.b16 %v5832, %v5831
      %v5853 = vpack.c.b16 %v5834, %v5833
      %v5854 = vpack.c.b16 %v5836, %v5835
      %v5855 = vpack.c.b16 %v5838, %v5837
      %v5856 = vpack.c.b16 %v5840, %v5839
      %v5873 = vunpack.c.l.b16 %v5731
      %v5874 = vunpack.c.l.b16 %v5734
      %v5875 = vunpack.c.l.b16 %v5737
      %v5876 = vunpack.c.l.b16 %v5740
      %v5877 = vunpack.c.l.b16 %v5743
      %v5878 = vunpack.c.l.b16 %v5746
      %v5879 = vunpack.c.l.b16 %v5749
      %v5880 = vunpack.c.l.b16 %v5752
      %v5881 = vunpack.c.l.b16 %v5755
      %v5882 = vunpack.c.l.b16 %v5758
      %v5883 = vunpack.c.l.b16 %v5761
      %v5884 = vunpack.c.l.b16 %v5764
      %v5885 = vunpack.c.l.b16 %v5767
      %v5886 = vunpack.c.l.b16 %v5770
      %v5887 = vunpack.c.l.b16 %v5773
      %v5888 = vunpack.c.l.b16 %v5776
      %v5889 = vpack.c.b16 %v5873, %v5873
      %v5890 = vpack.c.b16 %v5874, %v5874
      %v5891 = vpack.c.b16 %v5875, %v5875
      %v5892 = vpack.c.b16 %v5876, %v5876
      %v5893 = vpack.c.b16 %v5877, %v5877
      %v5894 = vpack.c.b16 %v5878, %v5878
      %v5895 = vpack.c.b16 %v5879, %v5879
      %v5896 = vpack.c.b16 %v5880, %v5880
      %v5897 = vpack.c.b16 %v5881, %v5881
      %v5898 = vpack.c.b16 %v5882, %v5882
      %v5899 = vpack.c.b16 %v5883, %v5883
      %v5900 = vpack.c.b16 %v5884, %v5884
      %v5901 = vpack.c.b16 %v5885, %v5885
      %v5902 = vpack.c.b16 %v5886, %v5886
      %v5903 = vpack.c.b16 %v5887, %v5887
      %v5904 = vpack.c.b16 %v5888, %v5888
      %v5906 = vshrl.u32 %v5841, 16
      %v5908 = vshll.u32 %v5841, 16
      %v5910 = vrot.slane %v5908, 1
      %v5911 = vor.u32 %v5906, %v5910
      %v5913 = vshll.u32 %v5889, 16
      %v5915 = vrot.slane %v5913, 1
      %v5916 = vsel %vm929, %v5911, %v5915
      %v5918 = vshrl.u32 %v5842, 16
      %v5920 = vshll.u32 %v5842, 16
      %v5922 = vrot.slane %v5920, 1
      %v5923 = vor.u32 %v5918, %v5922
      %v5925 = vshll.u32 %v5890, 16
      %v5927 = vrot.slane %v5925, 1
      %v5928 = vsel %vm929, %v5923, %v5927
      %v5930 = vshrl.u32 %v5843, 16
      %v5932 = vshll.u32 %v5843, 16
      %v5934 = vrot.slane %v5932, 1
      %v5935 = vor.u32 %v5930, %v5934
      %v5937 = vshll.u32 %v5891, 16
      %v5939 = vrot.slane %v5937, 1
      %v5940 = vsel %vm929, %v5935, %v5939
      %v5942 = vshrl.u32 %v5844, 16
      %v5944 = vshll.u32 %v5844, 16
      %v5946 = vrot.slane %v5944, 1
      %v5947 = vor.u32 %v5942, %v5946
      %v5949 = vshll.u32 %v5892, 16
      %v5951 = vrot.slane %v5949, 1
      %v5952 = vsel %vm929, %v5947, %v5951
      %v5954 = vshrl.u32 %v5845, 16
      %v5956 = vshll.u32 %v5845, 16
      %v5958 = vrot.slane %v5956, 1
      %v5959 = vor.u32 %v5954, %v5958
      %v5961 = vshll.u32 %v5893, 16
      %v5963 = vrot.slane %v5961, 1
      %v5964 = vsel %vm929, %v5959, %v5963
      %v5966 = vshrl.u32 %v5846, 16
      %v5968 = vshll.u32 %v5846, 16
      %v5970 = vrot.slane %v5968, 1
      %v5971 = vor.u32 %v5966, %v5970
      %v5973 = vshll.u32 %v5894, 16
      %v5975 = vrot.slane %v5973, 1
      %v5976 = vsel %vm929, %v5971, %v5975
      %v5978 = vshrl.u32 %v5847, 16
      %v5980 = vshll.u32 %v5847, 16
      %v5982 = vrot.slane %v5980, 1
      %v5983 = vor.u32 %v5978, %v5982
      %v5985 = vshll.u32 %v5895, 16
      %v5987 = vrot.slane %v5985, 1
      %v5988 = vsel %vm929, %v5983, %v5987
      %v5990 = vshrl.u32 %v5848, 16
      %v5992 = vshll.u32 %v5848, 16
      %v5994 = vrot.slane %v5992, 1
      %v5995 = vor.u32 %v5990, %v5994
      %v5997 = vshll.u32 %v5896, 16
      %v5999 = vrot.slane %v5997, 1
      %v6000 = vsel %vm929, %v5995, %v5999
      %v6002 = vshrl.u32 %v5849, 16
      %v6004 = vshll.u32 %v5849, 16
      %v6006 = vrot.slane %v6004, 1
      %v6007 = vor.u32 %v6002, %v6006
      %v6009 = vshll.u32 %v5897, 16
      %v6011 = vrot.slane %v6009, 1
      %v6012 = vsel %vm929, %v6007, %v6011
      %v6014 = vshrl.u32 %v5850, 16
      %v6016 = vshll.u32 %v5850, 16
      %v6018 = vrot.slane %v6016, 1
      %v6019 = vor.u32 %v6014, %v6018
      %v6021 = vshll.u32 %v5898, 16
      %v6023 = vrot.slane %v6021, 1
      %v6024 = vsel %vm929, %v6019, %v6023
      %v6026 = vshrl.u32 %v5851, 16
      %v6028 = vshll.u32 %v5851, 16
      %v6030 = vrot.slane %v6028, 1
      %v6031 = vor.u32 %v6026, %v6030
      %v6033 = vshll.u32 %v5899, 16
      %v6035 = vrot.slane %v6033, 1
      %v6036 = vsel %vm929, %v6031, %v6035
      %v6038 = vshrl.u32 %v5852, 16
      %v6040 = vshll.u32 %v5852, 16
      %v6042 = vrot.slane %v6040, 1
      %v6043 = vor.u32 %v6038, %v6042
      %v6045 = vshll.u32 %v5900, 16
      %v6047 = vrot.slane %v6045, 1
      %v6048 = vsel %vm929, %v6043, %v6047
      %v6050 = vshrl.u32 %v5853, 16
      %v6052 = vshll.u32 %v5853, 16
      %v6054 = vrot.slane %v6052, 1
      %v6055 = vor.u32 %v6050, %v6054
      %v6057 = vshll.u32 %v5901, 16
      %v6059 = vrot.slane %v6057, 1
      %v6060 = vsel %vm929, %v6055, %v6059
      %v6062 = vshrl.u32 %v5854, 16
      %v6064 = vshll.u32 %v5854, 16
      %v6066 = vrot.slane %v6064, 1
      %v6067 = vor.u32 %v6062, %v6066
      %v6069 = vshll.u32 %v5902, 16
      %v6071 = vrot.slane %v6069, 1
      %v6072 = vsel %vm929, %v6067, %v6071
      %v6074 = vshrl.u32 %v5855, 16
      %v6076 = vshll.u32 %v5855, 16
      %v6078 = vrot.slane %v6076, 1
      %v6079 = vor.u32 %v6074, %v6078
      %v6081 = vshll.u32 %v5903, 16
      %v6083 = vrot.slane %v6081, 1
      %v6084 = vsel %vm929, %v6079, %v6083
      %v6086 = vshrl.u32 %v5856, 16
      %v6088 = vshll.u32 %v5856, 16
      %v6090 = vrot.slane %v6088, 1
      %v6091 = vor.u32 %v6086, %v6090
      %v6093 = vshll.u32 %v5904, 16
      %v6095 = vrot.slane %v6093, 1
      %v6096 = vsel %vm929, %v6091, %v6095
      %6097 = vrot.lane.b32.xlu0 %v5916, 4
      %v6098 = vpop.permute.xlu0 %6097
      %6099 = vrot.lane.b32.xlu0 %v5928, 4
      %v6100 = vpop.permute.xlu0 %6099
      %6101 = vrot.lane.b32.xlu0 %v5940, 4
      %v6102 = vpop.permute.xlu0 %6101
      %6103 = vrot.lane.b32.xlu0 %v5952, 4
      %v6104 = vpop.permute.xlu0 %6103
      %6105 = vrot.lane.b32.xlu0 %v5964, 4
      %v6106 = vpop.permute.xlu0 %6105
      %6107 = vrot.lane.b32.xlu0 %v5976, 4
      %v6108 = vpop.permute.xlu0 %6107
      %6109 = vrot.lane.b32.xlu0 %v5988, 4
      %v6110 = vpop.permute.xlu0 %6109
      %6111 = vrot.lane.b32.xlu0 %v6000, 4
      %v6112 = vpop.permute.xlu0 %6111
      %6113 = vrot.lane.b32.xlu0 %v6012, 4
      %v6114 = vpop.permute.xlu0 %6113
      %6115 = vrot.lane.b32.xlu0 %v6024, 4
      %v6116 = vpop.permute.xlu0 %6115
      %6117 = vrot.lane.b32.xlu0 %v6036, 4
      %v6118 = vpop.permute.xlu0 %6117
      %6119 = vrot.lane.b32.xlu0 %v6048, 4
      %v6120 = vpop.permute.xlu0 %6119
      %6121 = vrot.lane.b32.xlu0 %v6060, 4
      %v6122 = vpop.permute.xlu0 %6121
      %6123 = vrot.lane.b32.xlu0 %v6072, 4
      %v6124 = vpop.permute.xlu0 %6123
      %6125 = vrot.lane.b32.xlu0 %v6084, 4
      %v6126 = vpop.permute.xlu0 %6125
      %6127 = vrot.lane.b32.xlu0 %v6096, 4
      %v6128 = vpop.permute.xlu0 %6127
      %v6129 = vrot.slane %v5841, 1
      %v6130 = vrot.slane %v5889, 1
      %v6131 = vsel %vm1154, %v6129, %v6130
      %v6132 = vrot.slane %v5842, 1
      %v6133 = vrot.slane %v5890, 1
      %v6134 = vsel %vm1154, %v6132, %v6133
      %v6135 = vrot.slane %v5843, 1
      %v6136 = vrot.slane %v5891, 1
      %v6137 = vsel %vm1154, %v6135, %v6136
      %v6138 = vrot.slane %v5844, 1
      %v6139 = vrot.slane %v5892, 1
      %v6140 = vsel %vm1154, %v6138, %v6139
      %v6141 = vrot.slane %v5845, 1
      %v6142 = vrot.slane %v5893, 1
      %v6143 = vsel %vm1154, %v6141, %v6142
      %v6144 = vrot.slane %v5846, 1
      %v6145 = vrot.slane %v5894, 1
      %v6146 = vsel %vm1154, %v6144, %v6145
      %v6147 = vrot.slane %v5847, 1
      %v6148 = vrot.slane %v5895, 1
      %v6149 = vsel %vm1154, %v6147, %v6148
      %v6150 = vrot.slane %v5848, 1
      %v6151 = vrot.slane %v5896, 1
      %v6152 = vsel %vm1154, %v6150, %v6151
      %v6153 = vrot.slane %v5849, 1
      %v6154 = vrot.slane %v5897, 1
      %v6155 = vsel %vm1154, %v6153, %v6154
      %v6156 = vrot.slane %v5850, 1
      %v6157 = vrot.slane %v5898, 1
      %v6158 = vsel %vm1154, %v6156, %v6157
      %v6159 = vrot.slane %v5851, 1
      %v6160 = vrot.slane %v5899, 1
      %v6161 = vsel %vm1154, %v6159, %v6160
      %v6162 = vrot.slane %v5852, 1
      %v6163 = vrot.slane %v5900, 1
      %v6164 = vsel %vm1154, %v6162, %v6163
      %v6165 = vrot.slane %v5853, 1
      %v6166 = vrot.slane %v5901, 1
      %v6167 = vsel %vm1154, %v6165, %v6166
      %v6168 = vrot.slane %v5854, 1
      %v6169 = vrot.slane %v5902, 1
      %v6170 = vsel %vm1154, %v6168, %v6169
      %v6171 = vrot.slane %v5855, 1
      %v6172 = vrot.slane %v5903, 1
      %v6173 = vsel %vm1154, %v6171, %v6172
      %v6174 = vrot.slane %v5856, 1
      %v6175 = vrot.slane %v5904, 1
      %v6176 = vsel %vm1154, %v6174, %v6175
      %6177 = vrot.lane.b32.xlu0 %v6131, 8
      %v6178 = vpop.permute.xlu0 %6177
      %6179 = vrot.lane.b32.xlu0 %v6134, 8
      %v6180 = vpop.permute.xlu0 %6179
      %6181 = vrot.lane.b32.xlu0 %v6137, 8
      %v6182 = vpop.permute.xlu0 %6181
      %6183 = vrot.lane.b32.xlu0 %v6140, 8
      %v6184 = vpop.permute.xlu0 %6183
      %6185 = vrot.lane.b32.xlu0 %v6143, 8
      %v6186 = vpop.permute.xlu0 %6185
      %6187 = vrot.lane.b32.xlu0 %v6146, 8
      %v6188 = vpop.permute.xlu0 %6187
      %6189 = vrot.lane.b32.xlu0 %v6149, 8
      %v6190 = vpop.permute.xlu0 %6189
      %6191 = vrot.lane.b32.xlu0 %v6152, 8
      %v6192 = vpop.permute.xlu0 %6191
      %6193 = vrot.lane.b32.xlu0 %v6155, 8
      %v6194 = vpop.permute.xlu0 %6193
      %6195 = vrot.lane.b32.xlu0 %v6158, 8
      %v6196 = vpop.permute.xlu0 %6195
      %6197 = vrot.lane.b32.xlu0 %v6161, 8
      %v6198 = vpop.permute.xlu0 %6197
      %6199 = vrot.lane.b32.xlu0 %v6164, 8
      %v6200 = vpop.permute.xlu0 %6199
      %6201 = vrot.lane.b32.xlu0 %v6167, 8
      %v6202 = vpop.permute.xlu0 %6201
      %6203 = vrot.lane.b32.xlu0 %v6170, 8
      %v6204 = vpop.permute.xlu0 %6203
      %6205 = vrot.lane.b32.xlu0 %v6173, 8
      %v6206 = vpop.permute.xlu0 %6205
      %6207 = vrot.lane.b32.xlu0 %v6176, 8
      %v6208 = vpop.permute.xlu0 %6207
      %v6210 = vsel %vm672, %v5841, %v6098
      %v6212 = vsel %vm672, %v5842, %v6100
      %v6214 = vsel %vm672, %v5843, %v6102
      %v6216 = vsel %vm672, %v5844, %v6104
      %v6218 = vsel %vm672, %v5845, %v6106
      %v6220 = vsel %vm672, %v5846, %v6108
      %v6222 = vsel %vm672, %v5847, %v6110
      %v6224 = vsel %vm672, %v5848, %v6112
      %v6226 = vsel %vm672, %v5849, %v6114
      %v6228 = vsel %vm672, %v5850, %v6116
      %v6230 = vsel %vm672, %v5851, %v6118
      %v6232 = vsel %vm672, %v5852, %v6120
      %v6234 = vsel %vm672, %v5853, %v6122
      %v6236 = vsel %vm672, %v5854, %v6124
      %v6238 = vsel %vm672, %v5855, %v6126
      %v6240 = vsel %vm672, %v5856, %v6128
      %v6242 = vsel %vm1267, %v6210, %v6178
      %v6244 = vsel %vm1267, %v6212, %v6180
      %v6246 = vsel %vm1267, %v6214, %v6182
      %v6248 = vsel %vm1267, %v6216, %v6184
      %v6250 = vsel %vm1267, %v6218, %v6186
      %v6252 = vsel %vm1267, %v6220, %v6188
      %v6254 = vsel %vm1267, %v6222, %v6190
      %v6256 = vsel %vm1267, %v6224, %v6192
      %v6258 = vsel %vm1267, %v6226, %v6194
      %v6260 = vsel %vm1267, %v6228, %v6196
      %v6262 = vsel %vm1267, %v6230, %v6198
      %v6264 = vsel %vm1267, %v6232, %v6200
      %v6266 = vsel %vm1267, %v6234, %v6202
      %v6268 = vsel %vm1267, %v6236, %v6204
      %v6270 = vsel %vm1267, %v6238, %v6206
      %v6272 = vsel %vm1267, %v6240, %v6208
      %v6273 = vld [vmem:[%s170] sm:$0xff]
      %v6274 = vld [vmem:[%s170 + $0x8] sm:$0xff]
      %v6275 = vld [vmem:[%s170 + $0x10] sm:$0xff]
      %v6276 = vld [vmem:[%s170 + $0x18] sm:$0xff]
      %v6277 = vld [vmem:[%s170 + $0x20] sm:$0xff]
      %v6278 = vld [vmem:[%s170 + $0x28] sm:$0xff]
      %v6279 = vld [vmem:[%s170 + $0x30] sm:$0xff]
      %v6280 = vld [vmem:[%s170 + $0x38] sm:$0xff]
      %v6281 = vld [vmem:[%s170 + $0x40] sm:$0xff]
      %v6282 = vld [vmem:[%s170 + $0x48] sm:$0xff]
      %v6283 = vld [vmem:[%s170 + $0x50] sm:$0xff]
      %v6284 = vld [vmem:[%s170 + $0x58] sm:$0xff]
      %v6285 = vld [vmem:[%s170 + $0x60] sm:$0xff]
      %v6286 = vld [vmem:[%s170 + $0x68] sm:$0xff]
      %v6287 = vld [vmem:[%s170 + $0x70] sm:$0xff]
      %v6288 = vld [vmem:[%s170 + $0x78] sm:$0xff]
      %v6289 = vld [vmem:[%s170 + $0x80] sm:$0xff]
      %v6290 = vld [vmem:[%s170 + $0x88] sm:$0xff]
      %v6291 = vld [vmem:[%s170 + $0x90] sm:$0xff]
      %v6292 = vld [vmem:[%s170 + $0x98] sm:$0xff]
      %v6293 = vld [vmem:[%s170 + $0xa0] sm:$0xff]
      %v6294 = vld [vmem:[%s170 + $0xa8] sm:$0xff]
      %v6295 = vld [vmem:[%s170 + $0xb0] sm:$0xff]
      %v6296 = vld [vmem:[%s170 + $0xb8] sm:$0xff]
      %v6297 = vld [vmem:[%s170 + $0xc0] sm:$0xff]
      %v6298 = vld [vmem:[%s170 + $0xc8] sm:$0xff]
      %v6299 = vld [vmem:[%s170 + $0xd0] sm:$0xff]
      %v6300 = vld [vmem:[%s170 + $0xd8] sm:$0xff]
      %v6301 = vld [vmem:[%s170 + $0xe0] sm:$0xff]
      %v6302 = vld [vmem:[%s170 + $0xe8] sm:$0xff]
      %v6303 = vld [vmem:[%s170 + $0xf0] sm:$0xff]
      %v6304 = vld [vmem:[%s170 + $0xf8] sm:$0xff]
      %s6305 = scalar_lea.vmem %s2, 16
      %v6306 = vld [vmem:[%s6305] sm:$0xf]
      %v6307 = vld [vmem:[%s6305 + $0x4] sm:$0x3]
      %v6310 = vunpack.c.l.b16 %v6306
      %v6311 = vunpack.c.l.b16 %v6307
      %v6312 = vpack.c.b16 %v6311, %v6310
      %v6313 = vsel %vm1307, %v6242, 0
      %v6315 = vsel %vm1307, %v6244, 0
      %v6317 = vsel %vm1307, %v6246, 0
      %v6319 = vsel %vm1307, %v6248, 0
      %v6321 = vsel %vm1307, %v6250, 0
      %v6323 = vsel %vm1307, %v6252, 0
      %v6325 = vsel %vm1307, %v6254, 0
      %v6327 = vsel %vm1307, %v6256, 0
      %v6329 = vsel %vm1307, %v6258, 0
      %v6331 = vsel %vm1307, %v6260, 0
      %v6333 = vsel %vm1307, %v6262, 0
      %v6335 = vsel %vm1307, %v6264, 0
      %v6337 = vsel %vm1307, %v6266, 0
      %v6339 = vsel %vm1307, %v6268, 0
      %v6341 = vsel %vm1307, %v6270, 0
      %v6343 = vsel %vm1307, %v6272, 0
      %v6346 = vsel %vm1340, %v6312, 0
      %6348 = vmatprep.subr.bf16.mxu0 0
      %6349 = vmatpush1.bf16.msra.mxu0 0
      %6350 = vmatprep.subr.bf16.mxu0 0
      %6351 = vmatpush1.bf16.msra.mxu0 0
      %6352 = vmatprep.subr.bf16.mxu0 0
      %6353 = vmatpush1.bf16.msra.mxu0 0
      %6354 = vmatprep.subr.bf16.mxu0 0
      %6355 = vmatpush1.bf16.msra.mxu0 0
      %6356 = vmatprep.subr.bf16.mxu0 0
      %6357 = vmatpush1.bf16.msra.mxu0 0
      %6358 = vmatprep.subr.bf16.mxu0 0
      %6359 = vmatpush1.bf16.msra.mxu0 0
      %6360 = vmatprep.subr.bf16.mxu0 0
      %6361 = vmatpush1.bf16.msra.mxu0 0
      %6362 = vmatprep.subr.bf16.mxu0 0
      %6363 = vmatpush1.bf16.msra.mxu0 %v6346
      %6364 = vmatprep.subr.bf16.mxu0 0
      %6365 = vmatpush2.bf16.msra.mxu0 0
      %6366 = vmatprep.subr.bf16.mxu0 0
      %6367 = vmatpush2.bf16.msra.mxu0 0
      %6368 = vmatprep.subr.bf16.mxu0 0
      %6369 = vmatpush2.bf16.msra.mxu0 0
      %6370 = vmatprep.subr.bf16.mxu0 0
      %6371 = vmatpush2.bf16.msra.mxu0 0
      %6372 = vmatprep.subr.bf16.mxu0 0
      %6373 = vmatpush2.bf16.msra.mxu0 0
      %6374 = vmatprep.subr.bf16.mxu0 0
      %6375 = vmatpush2.bf16.msra.mxu0 0
      %6376 = vmatprep.subr.bf16.mxu0 0
      %6377 = vmatpush2.bf16.msra.mxu0 0
      %6378 = vmatprep.subr.bf16.mxu0 0
      %6379 = vmatpush2.bf16.msra.mxu0 0
      %6380 = vmatprep.mubr.bf16.mxu0 0
      %6381 = vmatmul.mubr.bf16.gmra.mxu0 %v6313
      %v6382 = vpop.f32.mrf.mxu0
      %v6383 = vadd.f32 0.0, %v6382
      %v6384 = vpop.f32.mrf.mxu0
      %v6385 = vpop.f32.mrf.mxu0
      %v6386 = vadd.f32 0.0, %v6385
      %v6387 = vpop.f32.mrf.mxu0
      %6388 = vmatprep.mubr.bf16.mxu0 0
      %6389 = vmatmul.mubr.bf16.gmra.mxu0 %v6315
      %v6390 = vpop.f32.mrf.mxu0
      %v6391 = vadd.f32 0.0, %v6390
      %v6392 = vpop.f32.mrf.mxu0
      %v6393 = vpop.f32.mrf.mxu0
      %v6394 = vadd.f32 0.0, %v6393
      %v6395 = vpop.f32.mrf.mxu0
      %6396 = vmatprep.mubr.bf16.mxu0 0
      %6397 = vmatmul.mubr.bf16.gmra.mxu0 %v6317
      %v6398 = vpop.f32.mrf.mxu0
      %v6399 = vadd.f32 0.0, %v6398
      %v6400 = vpop.f32.mrf.mxu0
      %v6401 = vpop.f32.mrf.mxu0
      %v6402 = vadd.f32 0.0, %v6401
      %v6403 = vpop.f32.mrf.mxu0
      %6404 = vmatprep.mubr.bf16.mxu0 0
      %6405 = vmatmul.mubr.bf16.gmra.mxu0 %v6319
      %v6406 = vpop.f32.mrf.mxu0
      %v6407 = vadd.f32 0.0, %v6406
      %v6408 = vpop.f32.mrf.mxu0
      %v6409 = vpop.f32.mrf.mxu0
      %v6410 = vadd.f32 0.0, %v6409
      %v6411 = vpop.f32.mrf.mxu0
      %6412 = vmatprep.mubr.bf16.mxu0 0
      %6413 = vmatmul.mubr.bf16.gmra.mxu0 %v6321
      %v6414 = vpop.f32.mrf.mxu0
      %v6415 = vadd.f32 0.0, %v6414
      %v6416 = vpop.f32.mrf.mxu0
      %v6417 = vpop.f32.mrf.mxu0
      %v6418 = vadd.f32 0.0, %v6417
      %v6419 = vpop.f32.mrf.mxu0
      %6420 = vmatprep.mubr.bf16.mxu0 0
      %6421 = vmatmul.mubr.bf16.gmra.mxu0 %v6323
      %v6422 = vpop.f32.mrf.mxu0
      %v6423 = vadd.f32 0.0, %v6422
      %v6424 = vpop.f32.mrf.mxu0
      %v6425 = vpop.f32.mrf.mxu0
      %v6426 = vadd.f32 0.0, %v6425
      %v6427 = vpop.f32.mrf.mxu0
      %6428 = vmatprep.mubr.bf16.mxu0 0
      %6429 = vmatmul.mubr.bf16.gmra.mxu0 %v6325
      %v6430 = vpop.f32.mrf.mxu0
      %v6431 = vadd.f32 0.0, %v6430
      %v6432 = vpop.f32.mrf.mxu0
      %v6433 = vpop.f32.mrf.mxu0
      %v6434 = vadd.f32 0.0, %v6433
      %v6435 = vpop.f32.mrf.mxu0
      %6436 = vmatprep.mubr.bf16.mxu0 0
      %6437 = vmatmul.mubr.bf16.gmra.mxu0 %v6327
      %v6438 = vpop.f32.mrf.mxu0
      %v6439 = vadd.f32 0.0, %v6438
      %v6440 = vpop.f32.mrf.mxu0
      %v6441 = vpop.f32.mrf.mxu0
      %v6442 = vadd.f32 0.0, %v6441
      %v6443 = vpop.f32.mrf.mxu0
      %6444 = vmatprep.mubr.bf16.mxu0 0
      %6445 = vmatmul.mubr.bf16.gmra.mxu0 %v6329
      %v6446 = vpop.f32.mrf.mxu0
      %v6447 = vadd.f32 0.0, %v6446
      %v6448 = vpop.f32.mrf.mxu0
      %v6449 = vpop.f32.mrf.mxu0
      %v6450 = vadd.f32 0.0, %v6449
      %v6451 = vpop.f32.mrf.mxu0
      %6452 = vmatprep.mubr.bf16.mxu0 0
      %6453 = vmatmul.mubr.bf16.gmra.mxu0 %v6331
      %v6454 = vpop.f32.mrf.mxu0
      %v6455 = vadd.f32 0.0, %v6454
      %v6456 = vpop.f32.mrf.mxu0
      %v6457 = vpop.f32.mrf.mxu0
      %v6458 = vadd.f32 0.0, %v6457
      %v6459 = vpop.f32.mrf.mxu0
      %6460 = vmatprep.mubr.bf16.mxu0 0
      %6461 = vmatmul.mubr.bf16.gmra.mxu0 %v6333
      %v6462 = vpop.f32.mrf.mxu0
      %v6463 = vadd.f32 0.0, %v6462
      %v6464 = vpop.f32.mrf.mxu0
      %v6465 = vpop.f32.mrf.mxu0
      %v6466 = vadd.f32 0.0, %v6465
      %v6467 = vpop.f32.mrf.mxu0
      %6468 = vmatprep.mubr.bf16.mxu0 0
      %6469 = vmatmul.mubr.bf16.gmra.mxu0 %v6335
      %v6470 = vpop.f32.mrf.mxu0
      %v6471 = vadd.f32 0.0, %v6470
      %v6472 = vpop.f32.mrf.mxu0
      %v6473 = vpop.f32.mrf.mxu0
      %v6474 = vadd.f32 0.0, %v6473
      %v6475 = vpop.f32.mrf.mxu0
      %6476 = vmatprep.mubr.bf16.mxu0 0
      %6477 = vmatmul.mubr.bf16.gmra.mxu0 %v6337
      %v6478 = vpop.f32.mrf.mxu0
      %v6479 = vadd.f32 0.0, %v6478
      %v6480 = vpop.f32.mrf.mxu0
      %v6481 = vpop.f32.mrf.mxu0
      %v6482 = vadd.f32 0.0, %v6481
      %v6483 = vpop.f32.mrf.mxu0
      %6484 = vmatprep.mubr.bf16.mxu0 0
      %6485 = vmatmul.mubr.bf16.gmra.mxu0 %v6339
      %v6486 = vpop.f32.mrf.mxu0
      %v6487 = vadd.f32 0.0, %v6486
      %v6488 = vpop.f32.mrf.mxu0
      %v6489 = vpop.f32.mrf.mxu0
      %v6490 = vadd.f32 0.0, %v6489
      %v6491 = vpop.f32.mrf.mxu0
      %6492 = vmatprep.mubr.bf16.mxu0 0
      %6493 = vmatmul.mubr.bf16.gmra.mxu0 %v6341
      %v6494 = vpop.f32.mrf.mxu0
      %v6495 = vadd.f32 0.0, %v6494
      %v6496 = vpop.f32.mrf.mxu0
      %v6497 = vpop.f32.mrf.mxu0
      %v6498 = vadd.f32 0.0, %v6497
      %v6499 = vpop.f32.mrf.mxu0
      %6500 = vmatprep.mubr.bf16.mxu0 0
      %6501 = vmatmul.mubr.bf16.gmra.mxu0 %v6343
      %v6502 = vpop.f32.mrf.mxu0
      %v6503 = vadd.f32 0.0, %v6502
      %v6504 = vpop.f32.mrf.mxu0
      %v6505 = vpop.f32.mrf.mxu0
      %v6506 = vadd.f32 0.0, %v6505
      %v6507 = vpop.f32.mrf.mxu0
      %6508 = vdwg.mxu0
      %v6509 = vadd.f32 %v6273, %v6383
      %v6510 = vadd.f32 %v6274, %v6386
      %v6511 = vadd.f32 %v6275, %v6391
      %v6512 = vadd.f32 %v6276, %v6394
      %v6513 = vadd.f32 %v6277, %v6399
      %v6514 = vadd.f32 %v6278, %v6402
      %v6515 = vadd.f32 %v6279, %v6407
      %v6516 = vadd.f32 %v6280, %v6410
      %v6517 = vadd.f32 %v6281, %v6415
      %v6518 = vadd.f32 %v6282, %v6418
      %v6519 = vadd.f32 %v6283, %v6423
      %v6520 = vadd.f32 %v6284, %v6426
      %v6521 = vadd.f32 %v6285, %v6431
      %v6522 = vadd.f32 %v6286, %v6434
      %v6523 = vadd.f32 %v6287, %v6439
      %v6524 = vadd.f32 %v6288, %v6442
      %v6525 = vadd.f32 %v6289, %v6447
      %v6526 = vadd.f32 %v6290, %v6450
      %v6527 = vadd.f32 %v6291, %v6455
      %v6528 = vadd.f32 %v6292, %v6458
      %v6529 = vadd.f32 %v6293, %v6463
      %v6530 = vadd.f32 %v6294, %v6466
      %v6531 = vadd.f32 %v6295, %v6471
      %v6532 = vadd.f32 %v6296, %v6474
      %v6533 = vadd.f32 %v6297, %v6479
      %v6534 = vadd.f32 %v6298, %v6482
      %v6535 = vadd.f32 %v6299, %v6487
      %v6536 = vadd.f32 %v6300, %v6490
      %v6537 = vadd.f32 %v6301, %v6495
      %v6538 = vadd.f32 %v6302, %v6498
      %v6539 = vadd.f32 %v6303, %v6503
      %v6540 = vadd.f32 %v6304, %v6506
      %6541 = vst.msk [vmem:[%s170] sm:$0xff] %vm672, %v6509
      %6542 = vst.msk [vmem:[%s170 + $0x8] sm:$0xff] %vm672, %v6510
      %6543 = vst.msk [vmem:[%s170 + $0x10] sm:$0xff] %vm672, %v6511
      %6544 = vst.msk [vmem:[%s170 + $0x18] sm:$0xff] %vm672, %v6512
      %6545 = vst.msk [vmem:[%s170 + $0x20] sm:$0xff] %vm672, %v6513
      %6546 = vst.msk [vmem:[%s170 + $0x28] sm:$0xff] %vm672, %v6514
      %6547 = vst.msk [vmem:[%s170 + $0x30] sm:$0xff] %vm672, %v6515
      %6548 = vst.msk [vmem:[%s170 + $0x38] sm:$0xff] %vm672, %v6516
      %6549 = vst.msk [vmem:[%s170 + $0x40] sm:$0xff] %vm672, %v6517
      %6550 = vst.msk [vmem:[%s170 + $0x48] sm:$0xff] %vm672, %v6518
      %6551 = vst.msk [vmem:[%s170 + $0x50] sm:$0xff] %vm672, %v6519
      %6552 = vst.msk [vmem:[%s170 + $0x58] sm:$0xff] %vm672, %v6520
      %6553 = vst.msk [vmem:[%s170 + $0x60] sm:$0xff] %vm672, %v6521
      %6554 = vst.msk [vmem:[%s170 + $0x68] sm:$0xff] %vm672, %v6522
      %6555 = vst.msk [vmem:[%s170 + $0x70] sm:$0xff] %vm672, %v6523
      %6556 = vst.msk [vmem:[%s170 + $0x78] sm:$0xff] %vm672, %v6524
      %6557 = vst.msk [vmem:[%s170 + $0x80] sm:$0xff] %vm672, %v6525
      %6558 = vst.msk [vmem:[%s170 + $0x88] sm:$0xff] %vm672, %v6526
      %6559 = vst.msk [vmem:[%s170 + $0x90] sm:$0xff] %vm672, %v6527
      %6560 = vst.msk [vmem:[%s170 + $0x98] sm:$0xff] %vm672, %v6528
      %6561 = vst.msk [vmem:[%s170 + $0xa0] sm:$0xff] %vm672, %v6529
      %6562 = vst.msk [vmem:[%s170 + $0xa8] sm:$0xff] %vm672, %v6530
      %6563 = vst.msk [vmem:[%s170 + $0xb0] sm:$0xff] %vm672, %v6531
      %6564 = vst.msk [vmem:[%s170 + $0xb8] sm:$0xff] %vm672, %v6532
      %6565 = vst.msk [vmem:[%s170 + $0xc0] sm:$0xff] %vm672, %v6533
      %6566 = vst.msk [vmem:[%s170 + $0xc8] sm:$0xff] %vm672, %v6534
      %6567 = vst.msk [vmem:[%s170 + $0xd0] sm:$0xff] %vm672, %v6535
      %6568 = vst.msk [vmem:[%s170 + $0xd8] sm:$0xff] %vm672, %v6536
      %6569 = vst.msk [vmem:[%s170 + $0xe0] sm:$0xff] %vm672, %v6537
      %6570 = vst.msk [vmem:[%s170 + $0xe8] sm:$0xff] %vm672, %v6538
      %6571 = vst.msk [vmem:[%s170 + $0xf0] sm:$0xff] %vm672, %v6539
      %6572 = vst.msk [vmem:[%s170 + $0xf8] sm:$0xff] %vm672, %v6540
      %p6573 = scmp.lt.s32.totalorder %s14, 1
      %s6574 = scalar_select %p6573, %s14, 1
      %s6575 = smul.addr %s6574, 32
      %s6576 = smul.addr %s6575, 8
      %s6577 = scalar_lea.vmem %s3, %s6576
      // Predicated region
      $region33: #{tpu_custom_call.1} parent=31 // pred_check
        %p6578 = pneg %p100
      $region34: #{tpu_custom_call.1} parent=31 // pred_check_branch
        %6580 = sbr.rel (%p6578) target = $region36
      $region35: #{tpu_custom_call.1} parent=31 // pred_region
        _
      $region36: #{tpu_custom_call.1} parent=31 // pred_fallthru
        _
    $region32: #{tpu_custom_call.1} parent=5 // pred_fallthru
      _
    %p6581 = scmp.le.s32.totalorder 2, %s9
    // Predicated region
    $region37: #{tpu_custom_call.1} parent=5 // pred_check
      %p6582 = pneg %p6581
    $region38: #{tpu_custom_call.1} parent=5 // pred_check_branch
      %6584 = sbr.rel (%p6582) target = $region40
    $region39: #{tpu_custom_call.1} parent=5 // pred_region
      %s6585 = ssub.s32 %s9, 2
      // Predicated region
      $region41: #{tpu_custom_call.1} parent=39 // pred_check
        %p6586 = pneg %p106
      $region42: #{tpu_custom_call.1} parent=39 // pred_check_branch
        %6588 = sbr.rel (%p6586) target = $region44
      $region43: #{tpu_custom_call.1} parent=39 // pred_region
        %p6589 = scmp.lt.s32.totalorder %s15, 1
        %s6590 = scalar_select %p6589, %s15, 1
        %s6591 = smul.addr %s6590, 32
        %s6592 = smul.addr %s6591, 8
        %s6593 = scalar_lea.vmem %s3, %s6592
      $region44: #{tpu_custom_call.1} parent=39 // pred_fallthru
        _
    $region40: #{tpu_custom_call.1} parent=5 // pred_fallthru
      _
  $region6: #{tpu_custom_call.1} parent=0 // loop_footer
    %s13 = sadd.s32 1, %s9
  $region7: #{tpu_custom_call.1} parent=0 // loop_footer_branch
    %8 = sbr.rel target = $region3
  $region8: #{tpu_custom_call.1} parent=0 // loop_exit
    _

</llo_original>
